<compile_context>
chip_gen: v7x
topology: tpu7x:2x2x1
jax: 0.10.0
libtpu: 0.0.40
codegen_flags: <defaults>
</compile_context>

<pallas_src>
import math

import jax
import jax.numpy as jnp
from jax.experimental import pallas as pl
from jax.experimental.pallas import tpu as pltpu

BN_EPS = 1e-5          # PyTorch BatchNorm1d default.
LANE = 128             # TPU lane width; activations are padded to a multiple of this.
MXU_DTYPE = jnp.float32  # flip to jnp.bfloat16 on v6e/v7x for ~2x MXU (f32 accumulate kept)


def _vmem_spec():
    return pl.BlockSpec(memory_space=pltpu.MemorySpace.VMEM)


def _round_up(x, m):
    return (x + m - 1) // m * m


def _vmem_capacity_bytes():
    try:
        return int(pltpu.get_tpu_info().vmem_capacity_bytes)
    except Exception:            # interpret mode / older jax: be conservative (v7x per-TC)
        return 64 * 2 ** 20


# ----------------------------------------------------------------------------
# Fused ResBlock kernel: conv+BN+ReLU x2 -> conv+BN -> shortcut BN -> add -> ReLU
# (optionally fused avgpool+linear head).  Single pallas_call, everything in VMEM.
# ----------------------------------------------------------------------------
def _make_res_block_kernel(*, N, L, NLp, Cin, Cout, Ks, has_down, fuse_head):
    NL = N * L
    inv_nl = 1.0 / float(NL)
    K1, K2, K3 = Ks

    def taps(x, K, lane_l, valid_col):
        """K rolled+masked copies of x (cin, NLp); tap k holds x[.., l+k-p] (0 outside)."""
        p = K // 2
        out = []
        for k in range(K):
            off = k - p
            ok = jnp.logical_and(valid_col,
                                 jnp.logical_and(lane_l + off >= 0, lane_l + off < L))
            xr = x if off == 0 else pltpu.roll(x, shift=(p - k) % NLp, axis=1)
            out.append(jnp.where(ok, xr, 0.0))
        return out

    def conv(x, w_ref, K, cin, lane_l, valid_col):
        ts = taps(x, K, lane_l, valid_col)
        if cin == 1:
            # Depth-1 contraction: VPU broadcast-MAC beats an MXU push/drain.
            w = w_ref[...]                                    # (Cout, K)
            acc = w[:, 0:1] * ts[0]
            for k in range(1, K):
                acc = acc + w[:, k:k + 1] * ts[k]
            return acc
        stacked = jnp.concatenate(ts, axis=0)                 # (K*cin, NLp)
        return jnp.dot(w_ref[...].astype(MXU_DTYPE), stacked.astype(MXU_DTYPE),
                       preferred_element_type=jnp.float32)

    def bn(acc, g_ref, b_ref, relu):
        # Training-mode BatchNorm1d folded into one per-channel affine.  Padding lanes
        # of `acc` are exactly zero, so plain lane sums / NL give the batch statistics.
        mean = jnp.sum(acc, axis=1, keepdims=True) * inv_nl
        var = jnp.maximum(jnp.sum(acc * acc, axis=1, keepdims=True) * inv_nl - mean * mean, 0.0)
        scale = g_ref[...] * jax.lax.rsqrt(var + BN_EPS)
        shift = b_ref[...] - mean * scale
        y = acc * scale + shift
        return jnp.maximum(y, 0.0) if relu else y

    def kernel(*args):
        # arg order: x, (w1,g1,b1), (w2,g2,b2), (w3,g3,b3), [wd], gd, bd,
        #            [pool, lin_w, lin_b], o_ref
        (x_ref, w1, g1, b1, w2, g2, b2, w3, g3, b3) = args[:10]
        i = 10
        wd = None
        if has_down:
            wd = args[i]; i += 1
        gd, bd = args[i], args[i + 1]; i += 2
        pool = lw = lb = None
        if fuse_head:
            pool, lw, lb = args[i], args[i + 1], args[i + 2]; i += 3
        o_ref = args[i]

        # Hoisted once per kernel (not per tap / per stage).
        col = jax.lax.broadcasted_iota(jnp.int32, (1, NLp), 1)
        lane_l = col % L                  # position within a sample
        valid_col = col < NL              # real data vs. lane padding

        x = x_ref[...]                                        # (Cin, NLp), padding lanes are 0

        # Main path: all intermediates stay in VMEM.
        h = bn(conv(x, w1, K1, Cin, lane_l, valid_col), g1, b1, relu=True)
        h = bn(conv(h, w2, K2, Cout, lane_l, valid_col), g2, b2, relu=True)
        h = bn(conv(h, w3, K3, Cout, lane_l, valid_col), g3, b3, relu=False)

        # Shortcut: bn(downsample(x)) if Cin != Cout else bn(x) (matches the reference).
        if has_down:
            if Cin == 1:
                res_pre = wd[...] * x                          # (Cout,1)*(1,NLp) VPU outer product
            else:
                res_pre = jnp.dot(wd[...].astype(MXU_DTYPE), x.astype(MXU_DTYPE),
                                  preferred_element_type=jnp.float32)
        else:
            res_pre = x
        res = bn(res_pre, gd, bd, relu=False)

        out = jnp.maximum(h + res, 0.0)
        # Keep lane padding exactly zero so the next block's BN stats / shortcut stay exact.
        out = jnp.where(valid_col, out, 0.0)

        if fuse_head:
            # AdaptiveAvgPool1d(1) as one MXU dot with the (NLp, N) pooling matrix,
            # then Linear(Cout -> 1).  The last activation never round-trips HBM.
            pooled = jnp.dot(out, pool[...], preferred_element_type=jnp.float32)   # (Cout, N)
            o_ref[...] = jnp.dot(lw[...], pooled, preferred_element_type=jnp.float32) + lb[...]
        else:
            o_ref[...] = out

    return kernel


def _fold_conv_weight(w):
    # (K, Cout, Cin) -> (Cout, K*Cin): the conv becomes a single MXU dot per stage.
    K, Cout, Cin = w.shape
    return jnp.transpose(w, (1, 0, 2)).reshape(Cout, K * Cin)


def res_block(x, p, *, N, L, lin_w=None, lin_b=None):
    """One fused ResBlock as a single pallas_call.

    x: (Cin, NLp) f32, lane-dense (NLp = round_up(N*L, 128)), lane padding zeroed.
    Returns (Cout, NLp) f32 activations, or (1, N) logits when the head is fused.
    """
    Cin, NLp = x.shape
    K1, Cout, _ = p["w1"].shape
    K2, K3 = p["w2"].shape[0], p["w3"].shape[0]
    assert K1 % 2 == 1 and K2 % 2 == 1 and K3 % 2 == 1, "odd kernels required ('same' conv)"
    has_down = "wd" in p
    fuse_head = lin_w is not None

    kernel = _make_res_block_kernel(N=N, L=L, NLp=NLp, Cin=Cin, Cout=Cout,
                                    Ks=(K1, K2, K3), has_down=has_down,
                                    fuse_head=fuse_head)

    inputs = [x,
              _fold_conv_weight(p["w1"]), p["g1"], p["b1"],
              _fold_conv_weight(p["w2"]), p["g2"], p["b2"],
              _fold_conv_weight(p["w3"]), p["g3"], p["b3"]]
    if has_down:
        inputs.append(_fold_conv_weight(p["wd"]))
    inputs += [p["gd"], p["bd"]]
    if fuse_head:
        # Pooling matrix: column n averages lanes [n*L, (n+1)*L); padding lanes map to 0.
        pool = jnp.concatenate(
            [jnp.repeat(jnp.eye(N, dtype=jnp.float32), L, axis=0) / float(L),
             jnp.zeros((NLp - N * L, N), jnp.float32)], axis=0)
        inputs += [pool, lin_w, lin_b]

    out_shape = (jax.ShapeDtypeStruct((1, N), jnp.float32) if fuse_head
                 else jax.ShapeDtypeStruct((Cout, NLp), jnp.float32))

    # f32 working-set estimate (bytes): input slab + largest stacked tap slab + a handful
    # of live (Cout, NLp) intermediates.  No BlockSpec double-buffering at grid=().
    kc_max = max(K1 * Cin, K2 * Cout, K3 * Cout)
    est = 4 * NLp * (Cin + kc_max + 6 * Cout)
    cap = _vmem_capacity_bytes()
    # TODO(synk): when est approaches cap, tile N*L with a grid + two-phase BN reduction.
    assert est <= int(0.6 * cap), \
        "fused-block working set too large for this chip's VMEM; tile N*L + two-phase BN"
    vmem_limit = int(min(0.75 * cap, max(4 * 2 ** 20, 1.5 * est)))

    return pl.pallas_call(
        kernel,
        out_shape=out_shape,
        in_specs=[_vmem_spec()] * len(inputs),
        out_specs=_vmem_spec(),
        compiler_params=pltpu.CompilerParams(vmem_limit_bytes=vmem_limit),
    )(*inputs)


# ----------------------------------------------------------------------------
# Parameter init (matches the PyTorch init distributions) + forward
# ----------------------------------------------------------------------------
def _kaiming_normal_conv(key, k, cout, cin):
    # nn.init.kaiming_normal_ on a (Cout, Cin, K) conv weight; stored as (K, Cout, Cin).
    std = math.sqrt(2.0 / (cin * k))
    return std * jax.random.normal(key, (k, cout, cin), jnp.float32)


def _default_conv(key, k, cout, cin):
    # PyTorch default Conv1d init (kaiming_uniform_, a=sqrt(5)) -> U(-b, b), b=1/sqrt(fan_in).
    bound = 1.0 / math.sqrt(cin * k)
    return jax.random.uniform(key, (k, cout, cin), jnp.float32, minval=-bound, maxval=bound)


def init_params(key, num_channels, kernel_sizes):
    blocks = []
    in_ch = 1
    for out_ch in num_channels:
        key, k1, k2, k3, kd = jax.random.split(key, 5)
        ones = jnp.ones((out_ch, 1), jnp.float32)
        beta = jnp.full((out_ch, 1), 0.001, jnp.float32)
        blk = dict(
            w1=_kaiming_normal_conv(k1, kernel_sizes[0], out_ch, in_ch), g1=ones, b1=beta,
            w2=_kaiming_normal_conv(k2, kernel_sizes[1], out_ch, out_ch), g2=ones, b2=beta,
            w3=_default_conv(k3, kernel_sizes[2], out_ch, out_ch), g3=ones, b3=beta,
            gd=ones, bd=beta,
        )
        if in_ch != out_ch:
            blk["wd"] = _default_conv(kd, 1, out_ch, in_ch)   # 1x1 downsample conv
        blocks.append(blk)
        in_ch = out_ch
    key, kw, kb = jax.random.split(key, 3)
    c_last = num_channels[-1]
    bound = 1.0 / math.sqrt(c_last)
    lin_w = jax.random.uniform(kw, (1, c_last), jnp.float32, minval=-bound, maxval=bound)
    lin_b = jax.random.uniform(kb, (1, 1), jnp.float32, minval=-bound, maxval=bound)
    return dict(blocks=blocks, lin_w=lin_w, lin_b=lin_b)


def resnet_forward(x, params):
    """x: (N, L) -> (N,).  Matches ResNet.forward with BatchNorm in training mode."""
    N, L = x.shape
    NLp = _round_up(N * L, LANE)
    # unsqueeze(1) + channels-first lane-dense slab (1, NLp); lane padding is zero.
    h = jnp.zeros((1, NLp), jnp.float32).at[0, :N * L].set(x.reshape(-1).astype(jnp.float32))
    blocks = params["blocks"]
    for i, p in enumerate(blocks):
        if i == len(blocks) - 1:
            h = res_block(h, p, N=N, L=L, lin_w=params["lin_w"], lin_b=params["lin_b"])
        else:
            h = res_block(h, p, N=N, L=L)
    return h.reshape(-1)                                       # (1, N) -> (N,)


# ----------------------------------------------------------------------------
# Pure-JAX/XLA reference (mirror of the PyTorch module) — validation only.
# ----------------------------------------------------------------------------
def reference_forward(x, params):
    def bn(y, g, b):   # y: (N, C, L); training-mode batch stats, biased variance.
        mean = jnp.mean(y, axis=(0, 2), keepdims=True)
        var = jnp.mean((y - mean) ** 2, axis=(0, 2), keepdims=True)
        return (y - mean) * jax.lax.rsqrt(var + BN_EPS) * g.reshape(1, -1, 1) + b.reshape(1, -1, 1)

    def conv(y, w):    # w: (K, Cout, Cin)
        wt = jnp.transpose(w, (1, 2, 0))                       # (Cout, Cin, K)
        k = wt.shape[-1]
        return jax.lax.conv_general_dilated(
            y, wt, window_strides=(1,), padding=[(k // 2, k // 2)],
            dimension_numbers=("NCH", "OIH", "NCH"))

    h = x[:, None, :].astype(jnp.float32)                      # (N, 1, L)
    for p in params["blocks"]:
        out = jax.nn.relu(bn(conv(h, p["w1"]), p["g1"], p["b1"]))
        out = jax.nn.relu(bn(conv(out, p["w2"]), p["g2"], p["b2"]))
        out = bn(conv(out, p["w3"]), p["g3"], p["b3"])
        sc = conv(h, p["wd"]) if "wd" in p else h
        h = jax.nn.relu(out + bn(sc, p["gd"], p["bd"]))
    pooled = jnp.mean(h, axis=2)                               # (N, C)
    y = pooled @ params["lin_w"].reshape(-1, 1) + params["lin_b"].reshape(1, 1)
    return y.reshape(-1)


# ----------------------------------------------------------------------------
if __name__ == "__main__":
    key = jax.random.PRNGKey(0)
    kx, kp = jax.random.split(key)

    # Exercises both shortcut paths: downsample (1->8, 8->16) and identity+BN (8->8),
    # and both conv paths (Cin==1 VPU MAC in block 1, stacked MXU dot elsewhere).
    num_channels = [8, 8, 16]
    kernel_sizes = [3, 5, 3]
    N, L = 2, 16

    x = jax.random.normal(kx, (N, L), jnp.float32)
    params = init_params(kp, num_channels, kernel_sizes)

    out = jax.block_until_ready(jax.jit(resnet_forward)(x, params))
    assert out.shape == (N,), out.shape
    assert bool(jnp.all(jnp.isfinite(out)))

    ref = jax.block_until_ready(jax.jit(reference_forward)(x, params))
    assert bool(jnp.allclose(out, ref, rtol=2e-2, atol=2e-2)), (out, ref)

    print("KERNEL_OK")
</pallas_src>

<mosaic_0001>
module attributes {stable_mosaic.version = 11 : i64} {
  func.func @kernel(%arg0: memref<8x128xf32, #tpu.memory_space<vmem>>, %arg1: memref<8x24xf32, #tpu.memory_space<vmem>>, %arg2: memref<8x1xf32, #tpu.memory_space<vmem>>, %arg3: memref<8x1xf32, #tpu.memory_space<vmem>>, %arg4: memref<8x40xf32, #tpu.memory_space<vmem>>, %arg5: memref<8x1xf32, #tpu.memory_space<vmem>>, %arg6: memref<8x1xf32, #tpu.memory_space<vmem>>, %arg7: memref<8x24xf32, #tpu.memory_space<vmem>>, %arg8: memref<8x1xf32, #tpu.memory_space<vmem>>, %arg9: memref<8x1xf32, #tpu.memory_space<vmem>>, %arg10: memref<8x1xf32, #tpu.memory_space<vmem>>, %arg11: memref<8x1xf32, #tpu.memory_space<vmem>>, %arg12: memref<8x128xf32, #tpu.memory_space<vmem>>) attributes {dimension_semantics = [], scalar_prefetch = 0 : i64, scratch_operands = 0 : i64, tpu.core_type = #tpu.core_type<tc>} {
    %0 = tpu.iota {dimensions = array<i32: 1>} : vector<1x128xi32>
    %c16_i32 = arith.constant 16 : i32
    %c0_i32 = arith.constant 0 : i32
    %1 = arith.cmpi eq, %c16_i32, %c0_i32 : i32
    %c1_i32 = arith.constant 1 : i32
    %2 = arith.select %1, %c1_i32, %c16_i32 : i32
    %3 = vector.broadcast %2 : i32 to vector<1x128xi32>
    %4 = arith.remsi %0, %3 : vector<1x128xi32>
    %c0_i32_0 = arith.constant 0 : i32
    %5 = vector.broadcast %c0_i32_0 : i32 to vector<1x128xi32>
    %6 = arith.cmpi ne, %4, %5 : vector<1x128xi32>
    %c0_i32_1 = arith.constant 0 : i32
    %7 = vector.broadcast %c0_i32_1 : i32 to vector<1x128xi32>
    %8 = arith.cmpi slt, %4, %7 : vector<1x128xi32>
    %c0_i32_2 = arith.constant 0 : i32
    %9 = arith.cmpi slt, %2, %c0_i32_2 : i32
    %10 = vector.broadcast %9 : i1 to vector<1x128xi1>
    %11 = vector.broadcast %10 : vector<1x128xi1> to vector<1x128xi1>
    %12 = arith.xori %8, %11 : vector<1x128xi1>
    %13 = arith.andi %12, %6 : vector<1x128xi1>
    %14 = vector.broadcast %2 : i32 to vector<1x128xi32>
    %15 = arith.addi %4, %14 : vector<1x128xi32>
    %16 = arith.select %13, %15, %4 : vector<1x128xi1>, vector<1x128xi32>
    %c32_i32 = arith.constant 32 : i32
    %17 = vector.broadcast %c32_i32 : i32 to vector<1x128xi32>
    %18 = arith.cmpi slt, %0, %17 : vector<1x128xi32>
    %c0 = arith.constant 0 : index
    %c0_3 = arith.constant 0 : index
    %19 = vector.load %arg0[%c0, %c0_3] : memref<8x128xf32, #tpu.memory_space<vmem>>, vector<8x128xf32>
    %c-1_i32 = arith.constant -1 : i32
    %20 = vector.broadcast %c-1_i32 : i32 to vector<1x128xi32>
    %21 = arith.addi %16, %20 : vector<1x128xi32>
    %c0_i32_4 = arith.constant 0 : i32
    %22 = vector.broadcast %c0_i32_4 : i32 to vector<1x128xi32>
    %23 = arith.cmpi sge, %21, %22 : vector<1x128xi32>
    %c-1_i32_5 = arith.constant -1 : i32
    %24 = vector.broadcast %c-1_i32_5 : i32 to vector<1x128xi32>
    %25 = arith.addi %16, %24 : vector<1x128xi32>
    %c16_i32_6 = arith.constant 16 : i32
    %26 = vector.broadcast %c16_i32_6 : i32 to vector<1x128xi32>
    %27 = arith.cmpi slt, %25, %26 : vector<1x128xi32>
    %28 = arith.andi %23, %27 : vector<1x128xi1>
    %29 = arith.andi %18, %28 : vector<1x128xi1>
    %c1_i32_7 = arith.constant 1 : i32
    %30 = tpu.dynamic_rotate %19 by %c1_i32_7 dim 1 : vector<8x128xf32>, i32 -> vector<8x128xf32>
    %cst = arith.constant 0.000000e+00 : f32
    %31 = vector.shape_cast %29 : vector<1x128xi1> to vector<1x128xi1>
    %32 = vector.broadcast %31 : vector<1x128xi1> to vector<8x128xi1>
    %33 = vector.broadcast %cst : f32 to vector<8x128xf32>
    %34 = arith.select %32, %30, %33 : vector<8x128xi1>, vector<8x128xf32>
    %c0_i32_8 = arith.constant 0 : i32
    %35 = vector.broadcast %c0_i32_8 : i32 to vector<1x128xi32>
    %36 = arith.addi %16, %35 : vector<1x128xi32>
    %c0_i32_9 = arith.constant 0 : i32
    %37 = vector.broadcast %c0_i32_9 : i32 to vector<1x128xi32>
    %38 = arith.cmpi sge, %36, %37 : vector<1x128xi32>
    %c0_i32_10 = arith.constant 0 : i32
    %39 = vector.broadcast %c0_i32_10 : i32 to vector<1x128xi32>
    %40 = arith.addi %16, %39 : vector<1x128xi32>
    %c16_i32_11 = arith.constant 16 : i32
    %41 = vector.broadcast %c16_i32_11 : i32 to vector<1x128xi32>
    %42 = arith.cmpi slt, %40, %41 : vector<1x128xi32>
    %43 = arith.andi %38, %42 : vector<1x128xi1>
    %44 = arith.andi %18, %43 : vector<1x128xi1>
    %cst_12 = arith.constant 0.000000e+00 : f32
    %45 = vector.shape_cast %44 : vector<1x128xi1> to vector<1x128xi1>
    %46 = vector.broadcast %45 : vector<1x128xi1> to vector<8x128xi1>
    %47 = vector.broadcast %cst_12 : f32 to vector<8x128xf32>
    %48 = arith.select %46, %19, %47 : vector<8x128xi1>, vector<8x128xf32>
    %c1_i32_13 = arith.constant 1 : i32
    %49 = vector.broadcast %c1_i32_13 : i32 to vector<1x128xi32>
    %50 = arith.addi %16, %49 : vector<1x128xi32>
    %c0_i32_14 = arith.constant 0 : i32
    %51 = vector.broadcast %c0_i32_14 : i32 to vector<1x128xi32>
    %52 = arith.cmpi sge, %50, %51 : vector<1x128xi32>
    %c1_i32_15 = arith.constant 1 : i32
    %53 = vector.broadcast %c1_i32_15 : i32 to vector<1x128xi32>
    %54 = arith.addi %16, %53 : vector<1x128xi32>
    %c16_i32_16 = arith.constant 16 : i32
    %55 = vector.broadcast %c16_i32_16 : i32 to vector<1x128xi32>
    %56 = arith.cmpi slt, %54, %55 : vector<1x128xi32>
    %57 = arith.andi %52, %56 : vector<1x128xi1>
    %58 = arith.andi %18, %57 : vector<1x128xi1>
    %c127_i32 = arith.constant 127 : i32
    %59 = tpu.dynamic_rotate %19 by %c127_i32 dim 1 : vector<8x128xf32>, i32 -> vector<8x128xf32>
    %cst_17 = arith.constant 0.000000e+00 : f32
    %60 = vector.shape_cast %58 : vector<1x128xi1> to vector<1x128xi1>
    %61 = vector.broadcast %60 : vector<1x128xi1> to vector<8x128xi1>
    %62 = vector.broadcast %cst_17 : f32 to vector<8x128xf32>
    %63 = arith.select %61, %59, %62 : vector<8x128xi1>, vector<8x128xf32>
    %64 = tpu.concatenate %34, %48, %63 in 0 : vector<8x128xf32>, vector<8x128xf32>, vector<8x128xf32> -> vector<24x128xf32>
    %c0_18 = arith.constant 0 : index
    %c0_19 = arith.constant 0 : index
    %65 = vector.load %arg1[%c0_18, %c0_19] : memref<8x24xf32, #tpu.memory_space<vmem>>, vector<8x24xf32>
    %cst_20 = arith.constant dense<0.000000e+00> : vector<8x128xf32>
    %66 = tpu.matmul %65, %64, %cst_20 {dimension_numbers = #tpu.dot_dimension_numbers<[1], [0], [0], [1], [0, 0, 1, 1], [], []>} : vector<8x24xf32>, vector<24x128xf32>, vector<8x128xf32> -> vector<8x128xf32>
    %cst_21 = arith.constant dense<0.000000e+00> : vector<8xf32>
    %67 = vector.multi_reduction <add>, %66, %cst_21 [1] : vector<8x128xf32> to vector<8xf32>
    %68 = vector.shape_cast %67 : vector<8xf32> to vector<8x1xf32>
    %cst_22 = arith.constant 3.125000e-02 : f32
    %69 = vector.broadcast %cst_22 : f32 to vector<8x1xf32>
    %70 = arith.mulf %68, %69 : vector<8x1xf32>
    %71 = arith.mulf %66, %66 : vector<8x128xf32>
    %cst_23 = arith.constant dense<0.000000e+00> : vector<8xf32>
    %72 = vector.multi_reduction <add>, %71, %cst_23 [1] : vector<8x128xf32> to vector<8xf32>
    %73 = vector.shape_cast %72 : vector<8xf32> to vector<8x1xf32>
    %cst_24 = arith.constant 3.125000e-02 : f32
    %74 = vector.broadcast %cst_24 : f32 to vector<8x1xf32>
    %75 = arith.mulf %73, %74 : vector<8x1xf32>
    %76 = arith.mulf %70, %70 : vector<8x1xf32>
    %77 = arith.subf %75, %76 : vector<8x1xf32>
    %cst_25 = arith.constant 0.000000e+00 : f32
    %78 = vector.broadcast %cst_25 : f32 to vector<8x1xf32>
    %79 = arith.maximumf %77, %78 : vector<8x1xf32>
    %c0_26 = arith.constant 0 : index
    %c0_27 = arith.constant 0 : index
    %80 = vector.load %arg2[%c0_26, %c0_27] : memref<8x1xf32, #tpu.memory_space<vmem>>, vector<8x1xf32>
    %cst_28 = arith.constant 9.99999974E-6 : f32
    %81 = vector.broadcast %cst_28 : f32 to vector<8x1xf32>
    %82 = arith.addf %79, %81 : vector<8x1xf32>
    %83 = math.rsqrt %82 : vector<8x1xf32>
    %84 = arith.mulf %80, %83 : vector<8x1xf32>
    %c0_29 = arith.constant 0 : index
    %c0_30 = arith.constant 0 : index
    %85 = vector.load %arg3[%c0_29, %c0_30] : memref<8x1xf32, #tpu.memory_space<vmem>>, vector<8x1xf32>
    %86 = arith.mulf %70, %84 : vector<8x1xf32>
    %87 = arith.subf %85, %86 : vector<8x1xf32>
    %88 = vector.broadcast %84 : vector<8x1xf32> to vector<8x128xf32>
    %89 = arith.mulf %66, %88 : vector<8x128xf32>
    %90 = vector.broadcast %87 : vector<8x1xf32> to vector<8x128xf32>
    %91 = arith.addf %89, %90 : vector<8x128xf32>
    %cst_31 = arith.constant 0.000000e+00 : f32
    %92 = vector.broadcast %cst_31 : f32 to vector<8x128xf32>
    %93 = arith.maximumf %91, %92 : vector<8x128xf32>
    %c-2_i32 = arith.constant -2 : i32
    %94 = vector.broadcast %c-2_i32 : i32 to vector<1x128xi32>
    %95 = arith.addi %16, %94 : vector<1x128xi32>
    %c0_i32_32 = arith.constant 0 : i32
    %96 = vector.broadcast %c0_i32_32 : i32 to vector<1x128xi32>
    %97 = arith.cmpi sge, %95, %96 : vector<1x128xi32>
    %c-2_i32_33 = arith.constant -2 : i32
    %98 = vector.broadcast %c-2_i32_33 : i32 to vector<1x128xi32>
    %99 = arith.addi %16, %98 : vector<1x128xi32>
    %c16_i32_34 = arith.constant 16 : i32
    %100 = vector.broadcast %c16_i32_34 : i32 to vector<1x128xi32>
    %101 = arith.cmpi slt, %99, %100 : vector<1x128xi32>
    %102 = arith.andi %97, %101 : vector<1x128xi1>
    %103 = arith.andi %18, %102 : vector<1x128xi1>
    %c2_i32 = arith.constant 2 : i32
    %104 = tpu.dynamic_rotate %93 by %c2_i32 dim 1 : vector<8x128xf32>, i32 -> vector<8x128xf32>
    %cst_35 = arith.constant 0.000000e+00 : f32
    %105 = vector.shape_cast %103 : vector<1x128xi1> to vector<1x128xi1>
    %106 = vector.broadcast %105 : vector<1x128xi1> to vector<8x128xi1>
    %107 = vector.broadcast %cst_35 : f32 to vector<8x128xf32>
    %108 = arith.select %106, %104, %107 : vector<8x128xi1>, vector<8x128xf32>
    %c-1_i32_36 = arith.constant -1 : i32
    %109 = vector.broadcast %c-1_i32_36 : i32 to vector<1x128xi32>
    %110 = arith.addi %16, %109 : vector<1x128xi32>
    %c0_i32_37 = arith.constant 0 : i32
    %111 = vector.broadcast %c0_i32_37 : i32 to vector<1x128xi32>
    %112 = arith.cmpi sge, %110, %111 : vector<1x128xi32>
    %c-1_i32_38 = arith.constant -1 : i32
    %113 = vector.broadcast %c-1_i32_38 : i32 to vector<1x128xi32>
    %114 = arith.addi %16, %113 : vector<1x128xi32>
    %c16_i32_39 = arith.constant 16 : i32
    %115 = vector.broadcast %c16_i32_39 : i32 to vector<1x128xi32>
    %116 = arith.cmpi slt, %114, %115 : vector<1x128xi32>
    %117 = arith.andi %112, %116 : vector<1x128xi1>
    %118 = arith.andi %18, %117 : vector<1x128xi1>
    %c1_i32_40 = arith.constant 1 : i32
    %119 = tpu.dynamic_rotate %93 by %c1_i32_40 dim 1 : vector<8x128xf32>, i32 -> vector<8x128xf32>
    %cst_41 = arith.constant 0.000000e+00 : f32
    %120 = vector.shape_cast %118 : vector<1x128xi1> to vector<1x128xi1>
    %121 = vector.broadcast %120 : vector<1x128xi1> to vector<8x128xi1>
    %122 = vector.broadcast %cst_41 : f32 to vector<8x128xf32>
    %123 = arith.select %121, %119, %122 : vector<8x128xi1>, vector<8x128xf32>
    %c0_i32_42 = arith.constant 0 : i32
    %124 = vector.broadcast %c0_i32_42 : i32 to vector<1x128xi32>
    %125 = arith.addi %16, %124 : vector<1x128xi32>
    %c0_i32_43 = arith.constant 0 : i32
    %126 = vector.broadcast %c0_i32_43 : i32 to vector<1x128xi32>
    %127 = arith.cmpi sge, %125, %126 : vector<1x128xi32>
    %c0_i32_44 = arith.constant 0 : i32
    %128 = vector.broadcast %c0_i32_44 : i32 to vector<1x128xi32>
    %129 = arith.addi %16, %128 : vector<1x128xi32>
    %c16_i32_45 = arith.constant 16 : i32
    %130 = vector.broadcast %c16_i32_45 : i32 to vector<1x128xi32>
    %131 = arith.cmpi slt, %129, %130 : vector<1x128xi32>
    %132 = arith.andi %127, %131 : vector<1x128xi1>
    %133 = arith.andi %18, %132 : vector<1x128xi1>
    %cst_46 = arith.constant 0.000000e+00 : f32
    %134 = vector.shape_cast %133 : vector<1x128xi1> to vector<1x128xi1>
    %135 = vector.broadcast %134 : vector<1x128xi1> to vector<8x128xi1>
    %136 = vector.broadcast %cst_46 : f32 to vector<8x128xf32>
    %137 = arith.select %135, %93, %136 : vector<8x128xi1>, vector<8x128xf32>
    %c1_i32_47 = arith.constant 1 : i32
    %138 = vector.broadcast %c1_i32_47 : i32 to vector<1x128xi32>
    %139 = arith.addi %16, %138 : vector<1x128xi32>
    %c0_i32_48 = arith.constant 0 : i32
    %140 = vector.broadcast %c0_i32_48 : i32 to vector<1x128xi32>
    %141 = arith.cmpi sge, %139, %140 : vector<1x128xi32>
    %c1_i32_49 = arith.constant 1 : i32
    %142 = vector.broadcast %c1_i32_49 : i32 to vector<1x128xi32>
    %143 = arith.addi %16, %142 : vector<1x128xi32>
    %c16_i32_50 = arith.constant 16 : i32
    %144 = vector.broadcast %c16_i32_50 : i32 to vector<1x128xi32>
    %145 = arith.cmpi slt, %143, %144 : vector<1x128xi32>
    %146 = arith.andi %141, %145 : vector<1x128xi1>
    %147 = arith.andi %18, %146 : vector<1x128xi1>
    %c127_i32_51 = arith.constant 127 : i32
    %148 = tpu.dynamic_rotate %93 by %c127_i32_51 dim 1 : vector<8x128xf32>, i32 -> vector<8x128xf32>
    %cst_52 = arith.constant 0.000000e+00 : f32
    %149 = vector.shape_cast %147 : vector<1x128xi1> to vector<1x128xi1>
    %150 = vector.broadcast %149 : vector<1x128xi1> to vector<8x128xi1>
    %151 = vector.broadcast %cst_52 : f32 to vector<8x128xf32>
    %152 = arith.select %150, %148, %151 : vector<8x128xi1>, vector<8x128xf32>
    %c2_i32_53 = arith.constant 2 : i32
    %153 = vector.broadcast %c2_i32_53 : i32 to vector<1x128xi32>
    %154 = arith.addi %16, %153 : vector<1x128xi32>
    %c0_i32_54 = arith.constant 0 : i32
    %155 = vector.broadcast %c0_i32_54 : i32 to vector<1x128xi32>
    %156 = arith.cmpi sge, %154, %155 : vector<1x128xi32>
    %c2_i32_55 = arith.constant 2 : i32
    %157 = vector.broadcast %c2_i32_55 : i32 to vector<1x128xi32>
    %158 = arith.addi %16, %157 : vector<1x128xi32>
    %c16_i32_56 = arith.constant 16 : i32
    %159 = vector.broadcast %c16_i32_56 : i32 to vector<1x128xi32>
    %160 = arith.cmpi slt, %158, %159 : vector<1x128xi32>
    %161 = arith.andi %156, %160 : vector<1x128xi1>
    %162 = arith.andi %18, %161 : vector<1x128xi1>
    %c126_i32 = arith.constant 126 : i32
    %163 = tpu.dynamic_rotate %93 by %c126_i32 dim 1 : vector<8x128xf32>, i32 -> vector<8x128xf32>
    %cst_57 = arith.constant 0.000000e+00 : f32
    %164 = vector.shape_cast %162 : vector<1x128xi1> to vector<1x128xi1>
    %165 = vector.broadcast %164 : vector<1x128xi1> to vector<8x128xi1>
    %166 = vector.broadcast %cst_57 : f32 to vector<8x128xf32>
    %167 = arith.select %165, %163, %166 : vector<8x128xi1>, vector<8x128xf32>
    %168 = tpu.concatenate %108, %123, %137, %152, %167 in 0 : vector<8x128xf32>, vector<8x128xf32>, vector<8x128xf32>, vector<8x128xf32>, vector<8x128xf32> -> vector<40x128xf32>
    %c0_58 = arith.constant 0 : index
    %c0_59 = arith.constant 0 : index
    %169 = vector.load %arg4[%c0_58, %c0_59] : memref<8x40xf32, #tpu.memory_space<vmem>>, vector<8x40xf32>
    %cst_60 = arith.constant dense<0.000000e+00> : vector<8x128xf32>
    %170 = tpu.matmul %169, %168, %cst_60 {dimension_numbers = #tpu.dot_dimension_numbers<[1], [0], [0], [1], [0, 0, 1, 1], [], []>} : vector<8x40xf32>, vector<40x128xf32>, vector<8x128xf32> -> vector<8x128xf32>
    %cst_61 = arith.constant dense<0.000000e+00> : vector<8xf32>
    %171 = vector.multi_reduction <add>, %170, %cst_61 [1] : vector<8x128xf32> to vector<8xf32>
    %172 = vector.shape_cast %171 : vector<8xf32> to vector<8x1xf32>
    %cst_62 = arith.constant 3.125000e-02 : f32
    %173 = vector.broadcast %cst_62 : f32 to vector<8x1xf32>
    %174 = arith.mulf %172, %173 : vector<8x1xf32>
    %175 = arith.mulf %170, %170 : vector<8x128xf32>
    %cst_63 = arith.constant dense<0.000000e+00> : vector<8xf32>
    %176 = vector.multi_reduction <add>, %175, %cst_63 [1] : vector<8x128xf32> to vector<8xf32>
    %177 = vector.shape_cast %176 : vector<8xf32> to vector<8x1xf32>
    %cst_64 = arith.constant 3.125000e-02 : f32
    %178 = vector.broadcast %cst_64 : f32 to vector<8x1xf32>
    %179 = arith.mulf %177, %178 : vector<8x1xf32>
    %180 = arith.mulf %174, %174 : vector<8x1xf32>
    %181 = arith.subf %179, %180 : vector<8x1xf32>
    %cst_65 = arith.constant 0.000000e+00 : f32
    %182 = vector.broadcast %cst_65 : f32 to vector<8x1xf32>
    %183 = arith.maximumf %181, %182 : vector<8x1xf32>
    %c0_66 = arith.constant 0 : index
    %c0_67 = arith.constant 0 : index
    %184 = vector.load %arg5[%c0_66, %c0_67] : memref<8x1xf32, #tpu.memory_space<vmem>>, vector<8x1xf32>
    %cst_68 = arith.constant 9.99999974E-6 : f32
    %185 = vector.broadcast %cst_68 : f32 to vector<8x1xf32>
    %186 = arith.addf %183, %185 : vector<8x1xf32>
    %187 = math.rsqrt %186 : vector<8x1xf32>
    %188 = arith.mulf %184, %187 : vector<8x1xf32>
    %c0_69 = arith.constant 0 : index
    %c0_70 = arith.constant 0 : index
    %189 = vector.load %arg6[%c0_69, %c0_70] : memref<8x1xf32, #tpu.memory_space<vmem>>, vector<8x1xf32>
    %190 = arith.mulf %174, %188 : vector<8x1xf32>
    %191 = arith.subf %189, %190 : vector<8x1xf32>
    %192 = vector.broadcast %188 : vector<8x1xf32> to vector<8x128xf32>
    %193 = arith.mulf %170, %192 : vector<8x128xf32>
    %194 = vector.broadcast %191 : vector<8x1xf32> to vector<8x128xf32>
    %195 = arith.addf %193, %194 : vector<8x128xf32>
    %cst_71 = arith.constant 0.000000e+00 : f32
    %196 = vector.broadcast %cst_71 : f32 to vector<8x128xf32>
    %197 = arith.maximumf %195, %196 : vector<8x128xf32>
    %c-1_i32_72 = arith.constant -1 : i32
    %198 = vector.broadcast %c-1_i32_72 : i32 to vector<1x128xi32>
    %199 = arith.addi %16, %198 : vector<1x128xi32>
    %c0_i32_73 = arith.constant 0 : i32
    %200 = vector.broadcast %c0_i32_73 : i32 to vector<1x128xi32>
    %201 = arith.cmpi sge, %199, %200 : vector<1x128xi32>
    %c-1_i32_74 = arith.constant -1 : i32
    %202 = vector.broadcast %c-1_i32_74 : i32 to vector<1x128xi32>
    %203 = arith.addi %16, %202 : vector<1x128xi32>
    %c16_i32_75 = arith.constant 16 : i32
    %204 = vector.broadcast %c16_i32_75 : i32 to vector<1x128xi32>
    %205 = arith.cmpi slt, %203, %204 : vector<1x128xi32>
    %206 = arith.andi %201, %205 : vector<1x128xi1>
    %207 = arith.andi %18, %206 : vector<1x128xi1>
    %c1_i32_76 = arith.constant 1 : i32
    %208 = tpu.dynamic_rotate %197 by %c1_i32_76 dim 1 : vector<8x128xf32>, i32 -> vector<8x128xf32>
    %cst_77 = arith.constant 0.000000e+00 : f32
    %209 = vector.shape_cast %207 : vector<1x128xi1> to vector<1x128xi1>
    %210 = vector.broadcast %209 : vector<1x128xi1> to vector<8x128xi1>
    %211 = vector.broadcast %cst_77 : f32 to vector<8x128xf32>
    %212 = arith.select %210, %208, %211 : vector<8x128xi1>, vector<8x128xf32>
    %c0_i32_78 = arith.constant 0 : i32
    %213 = vector.broadcast %c0_i32_78 : i32 to vector<1x128xi32>
    %214 = arith.addi %16, %213 : vector<1x128xi32>
    %c0_i32_79 = arith.constant 0 : i32
    %215 = vector.broadcast %c0_i32_79 : i32 to vector<1x128xi32>
    %216 = arith.cmpi sge, %214, %215 : vector<1x128xi32>
    %c0_i32_80 = arith.constant 0 : i32
    %217 = vector.broadcast %c0_i32_80 : i32 to vector<1x128xi32>
    %218 = arith.addi %16, %217 : vector<1x128xi32>
    %c16_i32_81 = arith.constant 16 : i32
    %219 = vector.broadcast %c16_i32_81 : i32 to vector<1x128xi32>
    %220 = arith.cmpi slt, %218, %219 : vector<1x128xi32>
    %221 = arith.andi %216, %220 : vector<1x128xi1>
    %222 = arith.andi %18, %221 : vector<1x128xi1>
    %cst_82 = arith.constant 0.000000e+00 : f32
    %223 = vector.shape_cast %222 : vector<1x128xi1> to vector<1x128xi1>
    %224 = vector.broadcast %223 : vector<1x128xi1> to vector<8x128xi1>
    %225 = vector.broadcast %cst_82 : f32 to vector<8x128xf32>
    %226 = arith.select %224, %197, %225 : vector<8x128xi1>, vector<8x128xf32>
    %c1_i32_83 = arith.constant 1 : i32
    %227 = vector.broadcast %c1_i32_83 : i32 to vector<1x128xi32>
    %228 = arith.addi %16, %227 : vector<1x128xi32>
    %c0_i32_84 = arith.constant 0 : i32
    %229 = vector.broadcast %c0_i32_84 : i32 to vector<1x128xi32>
    %230 = arith.cmpi sge, %228, %229 : vector<1x128xi32>
    %c1_i32_85 = arith.constant 1 : i32
    %231 = vector.broadcast %c1_i32_85 : i32 to vector<1x128xi32>
    %232 = arith.addi %16, %231 : vector<1x128xi32>
    %c16_i32_86 = arith.constant 16 : i32
    %233 = vector.broadcast %c16_i32_86 : i32 to vector<1x128xi32>
    %234 = arith.cmpi slt, %232, %233 : vector<1x128xi32>
    %235 = arith.andi %230, %234 : vector<1x128xi1>
    %236 = arith.andi %18, %235 : vector<1x128xi1>
    %c127_i32_87 = arith.constant 127 : i32
    %237 = tpu.dynamic_rotate %197 by %c127_i32_87 dim 1 : vector<8x128xf32>, i32 -> vector<8x128xf32>
    %cst_88 = arith.constant 0.000000e+00 : f32
    %238 = vector.shape_cast %236 : vector<1x128xi1> to vector<1x128xi1>
    %239 = vector.broadcast %238 : vector<1x128xi1> to vector<8x128xi1>
    %240 = vector.broadcast %cst_88 : f32 to vector<8x128xf32>
    %241 = arith.select %239, %237, %240 : vector<8x128xi1>, vector<8x128xf32>
    %242 = tpu.concatenate %212, %226, %241 in 0 : vector<8x128xf32>, vector<8x128xf32>, vector<8x128xf32> -> vector<24x128xf32>
    %c0_89 = arith.constant 0 : index
    %c0_90 = arith.constant 0 : index
    %243 = vector.load %arg7[%c0_89, %c0_90] : memref<8x24xf32, #tpu.memory_space<vmem>>, vector<8x24xf32>
    %cst_91 = arith.constant dense<0.000000e+00> : vector<8x128xf32>
    %244 = tpu.matmul %243, %242, %cst_91 {dimension_numbers = #tpu.dot_dimension_numbers<[1], [0], [0], [1], [0, 0, 1, 1], [], []>} : vector<8x24xf32>, vector<24x128xf32>, vector<8x128xf32> -> vector<8x128xf32>
    %cst_92 = arith.constant dense<0.000000e+00> : vector<8xf32>
    %245 = vector.multi_reduction <add>, %244, %cst_92 [1] : vector<8x128xf32> to vector<8xf32>
    %246 = vector.shape_cast %245 : vector<8xf32> to vector<8x1xf32>
    %cst_93 = arith.constant 3.125000e-02 : f32
    %247 = vector.broadcast %cst_93 : f32 to vector<8x1xf32>
    %248 = arith.mulf %246, %247 : vector<8x1xf32>
    %249 = arith.mulf %244, %244 : vector<8x128xf32>
    %cst_94 = arith.constant dense<0.000000e+00> : vector<8xf32>
    %250 = vector.multi_reduction <add>, %249, %cst_94 [1] : vector<8x128xf32> to vector<8xf32>
    %251 = vector.shape_cast %250 : vector<8xf32> to vector<8x1xf32>
    %cst_95 = arith.constant 3.125000e-02 : f32
    %252 = vector.broadcast %cst_95 : f32 to vector<8x1xf32>
    %253 = arith.mulf %251, %252 : vector<8x1xf32>
    %254 = arith.mulf %248, %248 : vector<8x1xf32>
    %255 = arith.subf %253, %254 : vector<8x1xf32>
    %cst_96 = arith.constant 0.000000e+00 : f32
    %256 = vector.broadcast %cst_96 : f32 to vector<8x1xf32>
    %257 = arith.maximumf %255, %256 : vector<8x1xf32>
    %c0_97 = arith.constant 0 : index
    %c0_98 = arith.constant 0 : index
    %258 = vector.load %arg8[%c0_97, %c0_98] : memref<8x1xf32, #tpu.memory_space<vmem>>, vector<8x1xf32>
    %cst_99 = arith.constant 9.99999974E-6 : f32
    %259 = vector.broadcast %cst_99 : f32 to vector<8x1xf32>
    %260 = arith.addf %257, %259 : vector<8x1xf32>
    %261 = math.rsqrt %260 : vector<8x1xf32>
    %262 = arith.mulf %258, %261 : vector<8x1xf32>
    %c0_100 = arith.constant 0 : index
    %c0_101 = arith.constant 0 : index
    %263 = vector.load %arg9[%c0_100, %c0_101] : memref<8x1xf32, #tpu.memory_space<vmem>>, vector<8x1xf32>
    %264 = arith.mulf %248, %262 : vector<8x1xf32>
    %265 = arith.subf %263, %264 : vector<8x1xf32>
    %266 = vector.broadcast %262 : vector<8x1xf32> to vector<8x128xf32>
    %267 = arith.mulf %244, %266 : vector<8x128xf32>
    %268 = vector.broadcast %265 : vector<8x1xf32> to vector<8x128xf32>
    %269 = arith.addf %267, %268 : vector<8x128xf32>
    %cst_102 = arith.constant dense<0.000000e+00> : vector<8xf32>
    %270 = vector.multi_reduction <add>, %19, %cst_102 [1] : vector<8x128xf32> to vector<8xf32>
    %271 = vector.shape_cast %270 : vector<8xf32> to vector<8x1xf32>
    %cst_103 = arith.constant 3.125000e-02 : f32
    %272 = vector.broadcast %cst_103 : f32 to vector<8x1xf32>
    %273 = arith.mulf %271, %272 : vector<8x1xf32>
    %274 = arith.mulf %19, %19 : vector<8x128xf32>
    %cst_104 = arith.constant dense<0.000000e+00> : vector<8xf32>
    %275 = vector.multi_reduction <add>, %274, %cst_104 [1] : vector<8x128xf32> to vector<8xf32>
    %276 = vector.shape_cast %275 : vector<8xf32> to vector<8x1xf32>
    %cst_105 = arith.constant 3.125000e-02 : f32
    %277 = vector.broadcast %cst_105 : f32 to vector<8x1xf32>
    %278 = arith.mulf %276, %277 : vector<8x1xf32>
    %279 = arith.mulf %273, %273 : vector<8x1xf32>
    %280 = arith.subf %278, %279 : vector<8x1xf32>
    %cst_106 = arith.constant 0.000000e+00 : f32
    %281 = vector.broadcast %cst_106 : f32 to vector<8x1xf32>
    %282 = arith.maximumf %280, %281 : vector<8x1xf32>
    %c0_107 = arith.constant 0 : index
    %c0_108 = arith.constant 0 : index
    %283 = vector.load %arg10[%c0_107, %c0_108] : memref<8x1xf32, #tpu.memory_space<vmem>>, vector<8x1xf32>
    %cst_109 = arith.constant 9.99999974E-6 : f32
    %284 = vector.broadcast %cst_109 : f32 to vector<8x1xf32>
    %285 = arith.addf %282, %284 : vector<8x1xf32>
    %286 = math.rsqrt %285 : vector<8x1xf32>
    %287 = arith.mulf %283, %286 : vector<8x1xf32>
    %c0_110 = arith.constant 0 : index
    %c0_111 = arith.constant 0 : index
    %288 = vector.load %arg11[%c0_110, %c0_111] : memref<8x1xf32, #tpu.memory_space<vmem>>, vector<8x1xf32>
    %289 = arith.mulf %273, %287 : vector<8x1xf32>
    %290 = arith.subf %288, %289 : vector<8x1xf32>
    %291 = vector.broadcast %287 : vector<8x1xf32> to vector<8x128xf32>
    %292 = arith.mulf %19, %291 : vector<8x128xf32>
    %293 = vector.broadcast %290 : vector<8x1xf32> to vector<8x128xf32>
    %294 = arith.addf %292, %293 : vector<8x128xf32>
    %295 = arith.addf %269, %294 : vector<8x128xf32>
    %cst_112 = arith.constant 0.000000e+00 : f32
    %296 = vector.broadcast %cst_112 : f32 to vector<8x128xf32>
    %297 = arith.maximumf %295, %296 : vector<8x128xf32>
    %cst_113 = arith.constant 0.000000e+00 : f32
    %298 = vector.shape_cast %18 : vector<1x128xi1> to vector<1x128xi1>
    %299 = vector.broadcast %298 : vector<1x128xi1> to vector<8x128xi1>
    %300 = vector.broadcast %cst_113 : f32 to vector<8x128xf32>
    %301 = arith.select %299, %297, %300 : vector<8x128xi1>, vector<8x128xf32>
    %c0_114 = arith.constant 0 : index
    %c0_115 = arith.constant 0 : index
    %302 = vector.load %arg12[%c0_114, %c0_115] : memref<8x128xf32, #tpu.memory_space<vmem>>, vector<8x128xf32>
    tpu.vector_store %arg12[%c0_114, %c0_115], %301 {strides = array<i32>} : memref<8x128xf32, #tpu.memory_space<vmem>>, vector<8x128xf32>,
    return
  }
}

module attributes {stable_mosaic.version = 11 : i64} {
  func.func @kernel(%arg0: memref<1x128xf32, #tpu.memory_space<vmem>>, %arg1: memref<8x3xf32, #tpu.memory_space<vmem>>, %arg2: memref<8x1xf32, #tpu.memory_space<vmem>>, %arg3: memref<8x1xf32, #tpu.memory_space<vmem>>, %arg4: memref<8x40xf32, #tpu.memory_space<vmem>>, %arg5: memref<8x1xf32, #tpu.memory_space<vmem>>, %arg6: memref<8x1xf32, #tpu.memory_space<vmem>>, %arg7: memref<8x24xf32, #tpu.memory_space<vmem>>, %arg8: memref<8x1xf32, #tpu.memory_space<vmem>>, %arg9: memref<8x1xf32, #tpu.memory_space<vmem>>, %arg10: memref<8x1xf32, #tpu.memory_space<vmem>>, %arg11: memref<8x1xf32, #tpu.memory_space<vmem>>, %arg12: memref<8x1xf32, #tpu.memory_space<vmem>>, %arg13: memref<8x128xf32, #tpu.memory_space<vmem>>) attributes {dimension_semantics = [], scalar_prefetch = 0 : i64, scratch_operands = 0 : i64, tpu.core_type = #tpu.core_type<tc>} {
    %0 = tpu.iota {dimensions = array<i32: 1>} : vector<1x128xi32>
    %c16_i32 = arith.constant 16 : i32
    %c0_i32 = arith.constant 0 : i32
    %1 = arith.cmpi eq, %c16_i32, %c0_i32 : i32
    %c1_i32 = arith.constant 1 : i32
    %2 = arith.select %1, %c1_i32, %c16_i32 : i32
    %3 = vector.broadcast %2 : i32 to vector<1x128xi32>
    %4 = arith.remsi %0, %3 : vector<1x128xi32>
    %c0_i32_0 = arith.constant 0 : i32
    %5 = vector.broadcast %c0_i32_0 : i32 to vector<1x128xi32>
    %6 = arith.cmpi ne, %4, %5 : vector<1x128xi32>
    %c0_i32_1 = arith.constant 0 : i32
    %7 = vector.broadcast %c0_i32_1 : i32 to vector<1x128xi32>
    %8 = arith.cmpi slt, %4, %7 : vector<1x128xi32>
    %c0_i32_2 = arith.constant 0 : i32
    %9 = arith.cmpi slt, %2, %c0_i32_2 : i32
    %10 = vector.broadcast %9 : i1 to vector<1x128xi1>
    %11 = vector.broadcast %10 : vector<1x128xi1> to vector<1x128xi1>
    %12 = arith.xori %8, %11 : vector<1x128xi1>
    %13 = arith.andi %12, %6 : vector<1x128xi1>
    %14 = vector.broadcast %2 : i32 to vector<1x128xi32>
    %15 = arith.addi %4, %14 : vector<1x128xi32>
    %16 = arith.select %13, %15, %4 : vector<1x128xi1>, vector<1x128xi32>
    %c32_i32 = arith.constant 32 : i32
    %17 = vector.broadcast %c32_i32 : i32 to vector<1x128xi32>
    %18 = arith.cmpi slt, %0, %17 : vector<1x128xi32>
    %c0 = arith.constant 0 : index
    %c0_3 = arith.constant 0 : index
    %19 = vector.load %arg0[%c0, %c0_3] : memref<1x128xf32, #tpu.memory_space<vmem>>, vector<1x128xf32>
    %c-1_i32 = arith.constant -1 : i32
    %20 = vector.broadcast %c-1_i32 : i32 to vector<1x128xi32>
    %21 = arith.addi %16, %20 : vector<1x128xi32>
    %c0_i32_4 = arith.constant 0 : i32
    %22 = vector.broadcast %c0_i32_4 : i32 to vector<1x128xi32>
    %23 = arith.cmpi sge, %21, %22 : vector<1x128xi32>
    %c-1_i32_5 = arith.constant -1 : i32
    %24 = vector.broadcast %c-1_i32_5 : i32 to vector<1x128xi32>
    %25 = arith.addi %16, %24 : vector<1x128xi32>
    %c16_i32_6 = arith.constant 16 : i32
    %26 = vector.broadcast %c16_i32_6 : i32 to vector<1x128xi32>
    %27 = arith.cmpi slt, %25, %26 : vector<1x128xi32>
    %28 = arith.andi %23, %27 : vector<1x128xi1>
    %29 = arith.andi %18, %28 : vector<1x128xi1>
    %c1_i32_7 = arith.constant 1 : i32
    %30 = tpu.dynamic_rotate %19 by %c1_i32_7 dim 1 : vector<1x128xf32>, i32 -> vector<1x128xf32>
    %cst = arith.constant 0.000000e+00 : f32
    %31 = vector.broadcast %cst : f32 to vector<1x128xf32>
    %32 = arith.select %29, %30, %31 : vector<1x128xi1>, vector<1x128xf32>
    %c0_i32_8 = arith.constant 0 : i32
    %33 = vector.broadcast %c0_i32_8 : i32 to vector<1x128xi32>
    %34 = arith.addi %16, %33 : vector<1x128xi32>
    %c0_i32_9 = arith.constant 0 : i32
    %35 = vector.broadcast %c0_i32_9 : i32 to vector<1x128xi32>
    %36 = arith.cmpi sge, %34, %35 : vector<1x128xi32>
    %c0_i32_10 = arith.constant 0 : i32
    %37 = vector.broadcast %c0_i32_10 : i32 to vector<1x128xi32>
    %38 = arith.addi %16, %37 : vector<1x128xi32>
    %c16_i32_11 = arith.constant 16 : i32
    %39 = vector.broadcast %c16_i32_11 : i32 to vector<1x128xi32>
    %40 = arith.cmpi slt, %38, %39 : vector<1x128xi32>
    %41 = arith.andi %36, %40 : vector<1x128xi1>
    %42 = arith.andi %18, %41 : vector<1x128xi1>
    %cst_12 = arith.constant 0.000000e+00 : f32
    %43 = vector.broadcast %cst_12 : f32 to vector<1x128xf32>
    %44 = arith.select %42, %19, %43 : vector<1x128xi1>, vector<1x128xf32>
    %c1_i32_13 = arith.constant 1 : i32
    %45 = vector.broadcast %c1_i32_13 : i32 to vector<1x128xi32>
    %46 = arith.addi %16, %45 : vector<1x128xi32>
    %c0_i32_14 = arith.constant 0 : i32
    %47 = vector.broadcast %c0_i32_14 : i32 to vector<1x128xi32>
    %48 = arith.cmpi sge, %46, %47 : vector<1x128xi32>
    %c1_i32_15 = arith.constant 1 : i32
    %49 = vector.broadcast %c1_i32_15 : i32 to vector<1x128xi32>
    %50 = arith.addi %16, %49 : vector<1x128xi32>
    %c16_i32_16 = arith.constant 16 : i32
    %51 = vector.broadcast %c16_i32_16 : i32 to vector<1x128xi32>
    %52 = arith.cmpi slt, %50, %51 : vector<1x128xi32>
    %53 = arith.andi %48, %52 : vector<1x128xi1>
    %54 = arith.andi %18, %53 : vector<1x128xi1>
    %c127_i32 = arith.constant 127 : i32
    %55 = tpu.dynamic_rotate %19 by %c127_i32 dim 1 : vector<1x128xf32>, i32 -> vector<1x128xf32>
    %cst_17 = arith.constant 0.000000e+00 : f32
    %56 = vector.broadcast %cst_17 : f32 to vector<1x128xf32>
    %57 = arith.select %54, %55, %56 : vector<1x128xi1>, vector<1x128xf32>
    %c0_18 = arith.constant 0 : index
    %c0_19 = arith.constant 0 : index
    %58 = vector.load %arg1[%c0_18, %c0_19] : memref<8x3xf32, #tpu.memory_space<vmem>>, vector<8x3xf32>
    %59 = vector.extract_strided_slice %58 {offsets = [0, 0], sizes = [8, 1], strides = [1, 1]} : vector<8x3xf32> to vector<8x1xf32>
    %60 = vector.broadcast %59 : vector<8x1xf32> to vector<8x128xf32>
    %61 = vector.broadcast %32 : vector<1x128xf32> to vector<8x128xf32>
    %62 = arith.mulf %60, %61 : vector<8x128xf32>
    %63 = vector.extract_strided_slice %58 {offsets = [0, 1], sizes = [8, 1], strides = [1, 1]} : vector<8x3xf32> to vector<8x1xf32>
    %64 = vector.broadcast %63 : vector<8x1xf32> to vector<8x128xf32>
    %65 = vector.broadcast %44 : vector<1x128xf32> to vector<8x128xf32>
    %66 = arith.mulf %64, %65 : vector<8x128xf32>
    %67 = arith.addf %62, %66 : vector<8x128xf32>
    %68 = vector.extract_strided_slice %58 {offsets = [0, 2], sizes = [8, 1], strides = [1, 1]} : vector<8x3xf32> to vector<8x1xf32>
    %69 = vector.broadcast %68 : vector<8x1xf32> to vector<8x128xf32>
    %70 = vector.broadcast %57 : vector<1x128xf32> to vector<8x128xf32>
    %71 = arith.mulf %69, %70 : vector<8x128xf32>
    %72 = arith.addf %67, %71 : vector<8x128xf32>
    %cst_20 = arith.constant dense<0.000000e+00> : vector<8xf32>
    %73 = vector.multi_reduction <add>, %72, %cst_20 [1] : vector<8x128xf32> to vector<8xf32>
    %74 = vector.shape_cast %73 : vector<8xf32> to vector<8x1xf32>
    %cst_21 = arith.constant 3.125000e-02 : f32
    %75 = vector.broadcast %cst_21 : f32 to vector<8x1xf32>
    %76 = arith.mulf %74, %75 : vector<8x1xf32>
    %77 = arith.mulf %72, %72 : vector<8x128xf32>
    %cst_22 = arith.constant dense<0.000000e+00> : vector<8xf32>
    %78 = vector.multi_reduction <add>, %77, %cst_22 [1] : vector<8x128xf32> to vector<8xf32>
    %79 = vector.shape_cast %78 : vector<8xf32> to vector<8x1xf32>
    %cst_23 = arith.constant 3.125000e-02 : f32
    %80 = vector.broadcast %cst_23 : f32 to vector<8x1xf32>
    %81 = arith.mulf %79, %80 : vector<8x1xf32>
    %82 = arith.mulf %76, %76 : vector<8x1xf32>
    %83 = arith.subf %81, %82 : vector<8x1xf32>
    %cst_24 = arith.constant 0.000000e+00 : f32
    %84 = vector.broadcast %cst_24 : f32 to vector<8x1xf32>
    %85 = arith.maximumf %83, %84 : vector<8x1xf32>
    %c0_25 = arith.constant 0 : index
    %c0_26 = arith.constant 0 : index
    %86 = vector.load %arg2[%c0_25, %c0_26] : memref<8x1xf32, #tpu.memory_space<vmem>>, vector<8x1xf32>
    %cst_27 = arith.constant 9.99999974E-6 : f32
    %87 = vector.broadcast %cst_27 : f32 to vector<8x1xf32>
    %88 = arith.addf %85, %87 : vector<8x1xf32>
    %89 = math.rsqrt %88 : vector<8x1xf32>
    %90 = arith.mulf %86, %89 : vector<8x1xf32>
    %c0_28 = arith.constant 0 : index
    %c0_29 = arith.constant 0 : index
    %91 = vector.load %arg3[%c0_28, %c0_29] : memref<8x1xf32, #tpu.memory_space<vmem>>, vector<8x1xf32>
    %92 = arith.mulf %76, %90 : vector<8x1xf32>
    %93 = arith.subf %91, %92 : vector<8x1xf32>
    %94 = vector.broadcast %90 : vector<8x1xf32> to vector<8x128xf32>
    %95 = arith.mulf %72, %94 : vector<8x128xf32>
    %96 = vector.broadcast %93 : vector<8x1xf32> to vector<8x128xf32>
    %97 = arith.addf %95, %96 : vector<8x128xf32>
    %cst_30 = arith.constant 0.000000e+00 : f32
    %98 = vector.broadcast %cst_30 : f32 to vector<8x128xf32>
    %99 = arith.maximumf %97, %98 : vector<8x128xf32>
    %c-2_i32 = arith.constant -2 : i32
    %100 = vector.broadcast %c-2_i32 : i32 to vector<1x128xi32>
    %101 = arith.addi %16, %100 : vector<1x128xi32>
    %c0_i32_31 = arith.constant 0 : i32
    %102 = vector.broadcast %c0_i32_31 : i32 to vector<1x128xi32>
    %103 = arith.cmpi sge, %101, %102 : vector<1x128xi32>
    %c-2_i32_32 = arith.constant -2 : i32
    %104 = vector.broadcast %c-2_i32_32 : i32 to vector<1x128xi32>
    %105 = arith.addi %16, %104 : vector<1x128xi32>
    %c16_i32_33 = arith.constant 16 : i32
    %106 = vector.broadcast %c16_i32_33 : i32 to vector<1x128xi32>
    %107 = arith.cmpi slt, %105, %106 : vector<1x128xi32>
    %108 = arith.andi %103, %107 : vector<1x128xi1>
    %109 = arith.andi %18, %108 : vector<1x128xi1>
    %c2_i32 = arith.constant 2 : i32
    %110 = tpu.dynamic_rotate %99 by %c2_i32 dim 1 : vector<8x128xf32>, i32 -> vector<8x128xf32>
    %cst_34 = arith.constant 0.000000e+00 : f32
    %111 = vector.shape_cast %109 : vector<1x128xi1> to vector<1x128xi1>
    %112 = vector.broadcast %111 : vector<1x128xi1> to vector<8x128xi1>
    %113 = vector.broadcast %cst_34 : f32 to vector<8x128xf32>
    %114 = arith.select %112, %110, %113 : vector<8x128xi1>, vector<8x128xf32>
    %c-1_i32_35 = arith.constant -1 : i32
    %115 = vector.broadcast %c-1_i32_35 : i32 to vector<1x128xi32>
    %116 = arith.addi %16, %115 : vector<1x128xi32>
    %c0_i32_36 = arith.constant 0 : i32
    %117 = vector.broadcast %c0_i32_36 : i32 to vector<1x128xi32>
    %118 = arith.cmpi sge, %116, %117 : vector<1x128xi32>
    %c-1_i32_37 = arith.constant -1 : i32
    %119 = vector.broadcast %c-1_i32_37 : i32 to vector<1x128xi32>
    %120 = arith.addi %16, %119 : vector<1x128xi32>
    %c16_i32_38 = arith.constant 16 : i32
    %121 = vector.broadcast %c16_i32_38 : i32 to vector<1x128xi32>
    %122 = arith.cmpi slt, %120, %121 : vector<1x128xi32>
    %123 = arith.andi %118, %122 : vector<1x128xi1>
    %124 = arith.andi %18, %123 : vector<1x128xi1>
    %c1_i32_39 = arith.constant 1 : i32
    %125 = tpu.dynamic_rotate %99 by %c1_i32_39 dim 1 : vector<8x128xf32>, i32 -> vector<8x128xf32>
    %cst_40 = arith.constant 0.000000e+00 : f32
    %126 = vector.shape_cast %124 : vector<1x128xi1> to vector<1x128xi1>
    %127 = vector.broadcast %126 : vector<1x128xi1> to vector<8x128xi1>
    %128 = vector.broadcast %cst_40 : f32 to vector<8x128xf32>
    %129 = arith.select %127, %125, %128 : vector<8x128xi1>, vector<8x128xf32>
    %c0_i32_41 = arith.constant 0 : i32
    %130 = vector.broadcast %c0_i32_41 : i32 to vector<1x128xi32>
    %131 = arith.addi %16, %130 : vector<1x128xi32>
    %c0_i32_42 = arith.constant 0 : i32
    %132 = vector.broadcast %c0_i32_42 : i32 to vector<1x128xi32>
    %133 = arith.cmpi sge, %131, %132 : vector<1x128xi32>
    %c0_i32_43 = arith.constant 0 : i32
    %134 = vector.broadcast %c0_i32_43 : i32 to vector<1x128xi32>
    %135 = arith.addi %16, %134 : vector<1x128xi32>
    %c16_i32_44 = arith.constant 16 : i32
    %136 = vector.broadcast %c16_i32_44 : i32 to vector<1x128xi32>
    %137 = arith.cmpi slt, %135, %136 : vector<1x128xi32>
    %138 = arith.andi %133, %137 : vector<1x128xi1>
    %139 = arith.andi %18, %138 : vector<1x128xi1>
    %cst_45 = arith.constant 0.000000e+00 : f32
    %140 = vector.shape_cast %139 : vector<1x128xi1> to vector<1x128xi1>
    %141 = vector.broadcast %140 : vector<1x128xi1> to vector<8x128xi1>
    %142 = vector.broadcast %cst_45 : f32 to vector<8x128xf32>
    %143 = arith.select %141, %99, %142 : vector<8x128xi1>, vector<8x128xf32>
    %c1_i32_46 = arith.constant 1 : i32
    %144 = vector.broadcast %c1_i32_46 : i32 to vector<1x128xi32>
    %145 = arith.addi %16, %144 : vector<1x128xi32>
    %c0_i32_47 = arith.constant 0 : i32
    %146 = vector.broadcast %c0_i32_47 : i32 to vector<1x128xi32>
    %147 = arith.cmpi sge, %145, %146 : vector<1x128xi32>
    %c1_i32_48 = arith.constant 1 : i32
    %148 = vector.broadcast %c1_i32_48 : i32 to vector<1x128xi32>
    %149 = arith.addi %16, %148 : vector<1x128xi32>
    %c16_i32_49 = arith.constant 16 : i32
    %150 = vector.broadcast %c16_i32_49 : i32 to vector<1x128xi32>
    %151 = arith.cmpi slt, %149, %150 : vector<1x128xi32>
    %152 = arith.andi %147, %151 : vector<1x128xi1>
    %153 = arith.andi %18, %152 : vector<1x128xi1>
    %c127_i32_50 = arith.constant 127 : i32
    %154 = tpu.dynamic_rotate %99 by %c127_i32_50 dim 1 : vector<8x128xf32>, i32 -> vector<8x128xf32>
    %cst_51 = arith.constant 0.000000e+00 : f32
    %155 = vector.shape_cast %153 : vector<1x128xi1> to vector<1x128xi1>
    %156 = vector.broadcast %155 : vector<1x128xi1> to vector<8x128xi1>
    %157 = vector.broadcast %cst_51 : f32 to vector<8x128xf32>
    %158 = arith.select %156, %154, %157 : vector<8x128xi1>, vector<8x128xf32>
    %c2_i32_52 = arith.constant 2 : i32
    %159 = vector.broadcast %c2_i32_52 : i32 to vector<1x128xi32>
    %160 = arith.addi %16, %159 : vector<1x128xi32>
    %c0_i32_53 = arith.constant 0 : i32
    %161 = vector.broadcast %c0_i32_53 : i32 to vector<1x128xi32>
    %162 = arith.cmpi sge, %160, %161 : vector<1x128xi32>
    %c2_i32_54 = arith.constant 2 : i32
    %163 = vector.broadcast %c2_i32_54 : i32 to vector<1x128xi32>
    %164 = arith.addi %16, %163 : vector<1x128xi32>
    %c16_i32_55 = arith.constant 16 : i32
    %165 = vector.broadcast %c16_i32_55 : i32 to vector<1x128xi32>
    %166 = arith.cmpi slt, %164, %165 : vector<1x128xi32>
    %167 = arith.andi %162, %166 : vector<1x128xi1>
    %168 = arith.andi %18, %167 : vector<1x128xi1>
    %c126_i32 = arith.constant 126 : i32
    %169 = tpu.dynamic_rotate %99 by %c126_i32 dim 1 : vector<8x128xf32>, i32 -> vector<8x128xf32>
    %cst_56 = arith.constant 0.000000e+00 : f32
    %170 = vector.shape_cast %168 : vector<1x128xi1> to vector<1x128xi1>
    %171 = vector.broadcast %170 : vector<1x128xi1> to vector<8x128xi1>
    %172 = vector.broadcast %cst_56 : f32 to vector<8x128xf32>
    %173 = arith.select %171, %169, %172 : vector<8x128xi1>, vector<8x128xf32>
    %174 = tpu.concatenate %114, %129, %143, %158, %173 in 0 : vector<8x128xf32>, vector<8x128xf32>, vector<8x128xf32>, vector<8x128xf32>, vector<8x128xf32> -> vector<40x128xf32>
    %c0_57 = arith.constant 0 : index
    %c0_58 = arith.constant 0 : index
    %175 = vector.load %arg4[%c0_57, %c0_58] : memref<8x40xf32, #tpu.memory_space<vmem>>, vector<8x40xf32>
    %cst_59 = arith.constant dense<0.000000e+00> : vector<8x128xf32>
    %176 = tpu.matmul %175, %174, %cst_59 {dimension_numbers = #tpu.dot_dimension_numbers<[1], [0], [0], [1], [0, 0, 1, 1], [], []>} : vector<8x40xf32>, vector<40x128xf32>, vector<8x128xf32> -> vector<8x128xf32>
    %cst_60 = arith.constant dense<0.000000e+00> : vector<8xf32>
    %177 = vector.multi_reduction <add>, %176, %cst_60 [1] : vector<8x128xf32> to vector<8xf32>
    %178 = vector.shape_cast %177 : vector<8xf32> to vector<8x1xf32>
    %cst_61 = arith.constant 3.125000e-02 : f32
    %179 = vector.broadcast %cst_61 : f32 to vector<8x1xf32>
    %180 = arith.mulf %178, %179 : vector<8x1xf32>
    %181 = arith.mulf %176, %176 : vector<8x128xf32>
    %cst_62 = arith.constant dense<0.000000e+00> : vector<8xf32>
    %182 = vector.multi_reduction <add>, %181, %cst_62 [1] : vector<8x128xf32> to vector<8xf32>
    %183 = vector.shape_cast %182 : vector<8xf32> to vector<8x1xf32>
    %cst_63 = arith.constant 3.125000e-02 : f32
    %184 = vector.broadcast %cst_63 : f32 to vector<8x1xf32>
    %185 = arith.mulf %183, %184 : vector<8x1xf32>
    %186 = arith.mulf %180, %180 : vector<8x1xf32>
    %187 = arith.subf %185, %186 : vector<8x1xf32>
    %cst_64 = arith.constant 0.000000e+00 : f32
    %188 = vector.broadcast %cst_64 : f32 to vector<8x1xf32>
    %189 = arith.maximumf %187, %188 : vector<8x1xf32>
    %c0_65 = arith.constant 0 : index
    %c0_66 = arith.constant 0 : index
    %190 = vector.load %arg5[%c0_65, %c0_66] : memref<8x1xf32, #tpu.memory_space<vmem>>, vector<8x1xf32>
    %cst_67 = arith.constant 9.99999974E-6 : f32
    %191 = vector.broadcast %cst_67 : f32 to vector<8x1xf32>
    %192 = arith.addf %189, %191 : vector<8x1xf32>
    %193 = math.rsqrt %192 : vector<8x1xf32>
    %194 = arith.mulf %190, %193 : vector<8x1xf32>
    %c0_68 = arith.constant 0 : index
    %c0_69 = arith.constant 0 : index
    %195 = vector.load %arg6[%c0_68, %c0_69] : memref<8x1xf32, #tpu.memory_space<vmem>>, vector<8x1xf32>
    %196 = arith.mulf %180, %194 : vector<8x1xf32>
    %197 = arith.subf %195, %196 : vector<8x1xf32>
    %198 = vector.broadcast %194 : vector<8x1xf32> to vector<8x128xf32>
    %199 = arith.mulf %176, %198 : vector<8x128xf32>
    %200 = vector.broadcast %197 : vector<8x1xf32> to vector<8x128xf32>
    %201 = arith.addf %199, %200 : vector<8x128xf32>
    %cst_70 = arith.constant 0.000000e+00 : f32
    %202 = vector.broadcast %cst_70 : f32 to vector<8x128xf32>
    %203 = arith.maximumf %201, %202 : vector<8x128xf32>
    %c-1_i32_71 = arith.constant -1 : i32
    %204 = vector.broadcast %c-1_i32_71 : i32 to vector<1x128xi32>
    %205 = arith.addi %16, %204 : vector<1x128xi32>
    %c0_i32_72 = arith.constant 0 : i32
    %206 = vector.broadcast %c0_i32_72 : i32 to vector<1x128xi32>
    %207 = arith.cmpi sge, %205, %206 : vector<1x128xi32>
    %c-1_i32_73 = arith.constant -1 : i32
    %208 = vector.broadcast %c-1_i32_73 : i32 to vector<1x128xi32>
    %209 = arith.addi %16, %208 : vector<1x128xi32>
    %c16_i32_74 = arith.constant 16 : i32
    %210 = vector.broadcast %c16_i32_74 : i32 to vector<1x128xi32>
    %211 = arith.cmpi slt, %209, %210 : vector<1x128xi32>
    %212 = arith.andi %207, %211 : vector<1x128xi1>
    %213 = arith.andi %18, %212 : vector<1x128xi1>
    %c1_i32_75 = arith.constant 1 : i32
    %214 = tpu.dynamic_rotate %203 by %c1_i32_75 dim 1 : vector<8x128xf32>, i32 -> vector<8x128xf32>
    %cst_76 = arith.constant 0.000000e+00 : f32
    %215 = vector.shape_cast %213 : vector<1x128xi1> to vector<1x128xi1>
    %216 = vector.broadcast %215 : vector<1x128xi1> to vector<8x128xi1>
    %217 = vector.broadcast %cst_76 : f32 to vector<8x128xf32>
    %218 = arith.select %216, %214, %217 : vector<8x128xi1>, vector<8x128xf32>
    %c0_i32_77 = arith.constant 0 : i32
    %219 = vector.broadcast %c0_i32_77 : i32 to vector<1x128xi32>
    %220 = arith.addi %16, %219 : vector<1x128xi32>
    %c0_i32_78 = arith.constant 0 : i32
    %221 = vector.broadcast %c0_i32_78 : i32 to vector<1x128xi32>
    %222 = arith.cmpi sge, %220, %221 : vector<1x128xi32>
    %c0_i32_79 = arith.constant 0 : i32
    %223 = vector.broadcast %c0_i32_79 : i32 to vector<1x128xi32>
    %224 = arith.addi %16, %223 : vector<1x128xi32>
    %c16_i32_80 = arith.constant 16 : i32
    %225 = vector.broadcast %c16_i32_80 : i32 to vector<1x128xi32>
    %226 = arith.cmpi slt, %224, %225 : vector<1x128xi32>
    %227 = arith.andi %222, %226 : vector<1x128xi1>
    %228 = arith.andi %18, %227 : vector<1x128xi1>
    %cst_81 = arith.constant 0.000000e+00 : f32
    %229 = vector.shape_cast %228 : vector<1x128xi1> to vector<1x128xi1>
    %230 = vector.broadcast %229 : vector<1x128xi1> to vector<8x128xi1>
    %231 = vector.broadcast %cst_81 : f32 to vector<8x128xf32>
    %232 = arith.select %230, %203, %231 : vector<8x128xi1>, vector<8x128xf32>
    %c1_i32_82 = arith.constant 1 : i32
    %233 = vector.broadcast %c1_i32_82 : i32 to vector<1x128xi32>
    %234 = arith.addi %16, %233 : vector<1x128xi32>
    %c0_i32_83 = arith.constant 0 : i32
    %235 = vector.broadcast %c0_i32_83 : i32 to vector<1x128xi32>
    %236 = arith.cmpi sge, %234, %235 : vector<1x128xi32>
    %c1_i32_84 = arith.constant 1 : i32
    %237 = vector.broadcast %c1_i32_84 : i32 to vector<1x128xi32>
    %238 = arith.addi %16, %237 : vector<1x128xi32>
    %c16_i32_85 = arith.constant 16 : i32
    %239 = vector.broadcast %c16_i32_85 : i32 to vector<1x128xi32>
    %240 = arith.cmpi slt, %238, %239 : vector<1x128xi32>
    %241 = arith.andi %236, %240 : vector<1x128xi1>
    %242 = arith.andi %18, %241 : vector<1x128xi1>
    %c127_i32_86 = arith.constant 127 : i32
    %243 = tpu.dynamic_rotate %203 by %c127_i32_86 dim 1 : vector<8x128xf32>, i32 -> vector<8x128xf32>
    %cst_87 = arith.constant 0.000000e+00 : f32
    %244 = vector.shape_cast %242 : vector<1x128xi1> to vector<1x128xi1>
    %245 = vector.broadcast %244 : vector<1x128xi1> to vector<8x128xi1>
    %246 = vector.broadcast %cst_87 : f32 to vector<8x128xf32>
    %247 = arith.select %245, %243, %246 : vector<8x128xi1>, vector<8x128xf32>
    %248 = tpu.concatenate %218, %232, %247 in 0 : vector<8x128xf32>, vector<8x128xf32>, vector<8x128xf32> -> vector<24x128xf32>
    %c0_88 = arith.constant 0 : index
    %c0_89 = arith.constant 0 : index
    %249 = vector.load %arg7[%c0_88, %c0_89] : memref<8x24xf32, #tpu.memory_space<vmem>>, vector<8x24xf32>
    %cst_90 = arith.constant dense<0.000000e+00> : vector<8x128xf32>
    %250 = tpu.matmul %249, %248, %cst_90 {dimension_numbers = #tpu.dot_dimension_numbers<[1], [0], [0], [1], [0, 0, 1, 1], [], []>} : vector<8x24xf32>, vector<24x128xf32>, vector<8x128xf32> -> vector<8x128xf32>
    %cst_91 = arith.constant dense<0.000000e+00> : vector<8xf32>
    %251 = vector.multi_reduction <add>, %250, %cst_91 [1] : vector<8x128xf32> to vector<8xf32>
    %252 = vector.shape_cast %251 : vector<8xf32> to vector<8x1xf32>
    %cst_92 = arith.constant 3.125000e-02 : f32
    %253 = vector.broadcast %cst_92 : f32 to vector<8x1xf32>
    %254 = arith.mulf %252, %253 : vector<8x1xf32>
    %255 = arith.mulf %250, %250 : vector<8x128xf32>
    %cst_93 = arith.constant dense<0.000000e+00> : vector<8xf32>
    %256 = vector.multi_reduction <add>, %255, %cst_93 [1] : vector<8x128xf32> to vector<8xf32>
    %257 = vector.shape_cast %256 : vector<8xf32> to vector<8x1xf32>
    %cst_94 = arith.constant 3.125000e-02 : f32
    %258 = vector.broadcast %cst_94 : f32 to vector<8x1xf32>
    %259 = arith.mulf %257, %258 : vector<8x1xf32>
    %260 = arith.mulf %254, %254 : vector<8x1xf32>
    %261 = arith.subf %259, %260 : vector<8x1xf32>
    %cst_95 = arith.constant 0.000000e+00 : f32
    %262 = vector.broadcast %cst_95 : f32 to vector<8x1xf32>
    %263 = arith.maximumf %261, %262 : vector<8x1xf32>
    %c0_96 = arith.constant 0 : index
    %c0_97 = arith.constant 0 : index
    %264 = vector.load %arg8[%c0_96, %c0_97] : memref<8x1xf32, #tpu.memory_space<vmem>>, vector<8x1xf32>
    %cst_98 = arith.constant 9.99999974E-6 : f32
    %265 = vector.broadcast %cst_98 : f32 to vector<8x1xf32>
    %266 = arith.addf %263, %265 : vector<8x1xf32>
    %267 = math.rsqrt %266 : vector<8x1xf32>
    %268 = arith.mulf %264, %267 : vector<8x1xf32>
    %c0_99 = arith.constant 0 : index
    %c0_100 = arith.constant 0 : index
    %269 = vector.load %arg9[%c0_99, %c0_100] : memref<8x1xf32, #tpu.memory_space<vmem>>, vector<8x1xf32>
    %270 = arith.mulf %254, %268 : vector<8x1xf32>
    %271 = arith.subf %269, %270 : vector<8x1xf32>
    %272 = vector.broadcast %268 : vector<8x1xf32> to vector<8x128xf32>
    %273 = arith.mulf %250, %272 : vector<8x128xf32>
    %274 = vector.broadcast %271 : vector<8x1xf32> to vector<8x128xf32>
    %275 = arith.addf %273, %274 : vector<8x128xf32>
    %c0_101 = arith.constant 0 : index
    %c0_102 = arith.constant 0 : index
    %276 = vector.load %arg10[%c0_101, %c0_102] : memref<8x1xf32, #tpu.memory_space<vmem>>, vector<8x1xf32>
    %277 = vector.broadcast %276 : vector<8x1xf32> to vector<8x128xf32>
    %278 = vector.broadcast %19 : vector<1x128xf32> to vector<8x128xf32>
    %279 = arith.mulf %277, %278 : vector<8x128xf32>
    %cst_103 = arith.constant dense<0.000000e+00> : vector<8xf32>
    %280 = vector.multi_reduction <add>, %279, %cst_103 [1] : vector<8x128xf32> to vector<8xf32>
    %281 = vector.shape_cast %280 : vector<8xf32> to vector<8x1xf32>
    %cst_104 = arith.constant 3.125000e-02 : f32
    %282 = vector.broadcast %cst_104 : f32 to vector<8x1xf32>
    %283 = arith.mulf %281, %282 : vector<8x1xf32>
    %284 = arith.mulf %279, %279 : vector<8x128xf32>
    %cst_105 = arith.constant dense<0.000000e+00> : vector<8xf32>
    %285 = vector.multi_reduction <add>, %284, %cst_105 [1] : vector<8x128xf32> to vector<8xf32>
    %286 = vector.shape_cast %285 : vector<8xf32> to vector<8x1xf32>
    %cst_106 = arith.constant 3.125000e-02 : f32
    %287 = vector.broadcast %cst_106 : f32 to vector<8x1xf32>
    %288 = arith.mulf %286, %287 : vector<8x1xf32>
    %289 = arith.mulf %283, %283 : vector<8x1xf32>
    %290 = arith.subf %288, %289 : vector<8x1xf32>
    %cst_107 = arith.constant 0.000000e+00 : f32
    %291 = vector.broadcast %cst_107 : f32 to vector<8x1xf32>
    %292 = arith.maximumf %290, %291 : vector<8x1xf32>
    %c0_108 = arith.constant 0 : index
    %c0_109 = arith.constant 0 : index
    %293 = vector.load %arg11[%c0_108, %c0_109] : memref<8x1xf32, #tpu.memory_space<vmem>>, vector<8x1xf32>
    %cst_110 = arith.constant 9.99999974E-6 : f32
    %294 = vector.broadcast %cst_110 : f32 to vector<8x1xf32>
    %295 = arith.addf %292, %294 : vector<8x1xf32>
    %296 = math.rsqrt %295 : vector<8x1xf32>
    %297 = arith.mulf %293, %296 : vector<8x1xf32>
    %c0_111 = arith.constant 0 : index
    %c0_112 = arith.constant 0 : index
    %298 = vector.load %arg12[%c0_111, %c0_112] : memref<8x1xf32, #tpu.memory_space<vmem>>, vector<8x1xf32>
    %299 = arith.mulf %283, %297 : vector<8x1xf32>
    %300 = arith.subf %298, %299 : vector<8x1xf32>
    %301 = vector.broadcast %297 : vector<8x1xf32> to vector<8x128xf32>
    %302 = arith.mulf %279, %301 : vector<8x128xf32>
    %303 = vector.broadcast %300 : vector<8x1xf32> to vector<8x128xf32>
    %304 = arith.addf %302, %303 : vector<8x128xf32>
    %305 = arith.addf %275, %304 : vector<8x128xf32>
    %cst_113 = arith.constant 0.000000e+00 : f32
    %306 = vector.broadcast %cst_113 : f32 to vector<8x128xf32>
    %307 = arith.maximumf %305, %306 : vector<8x128xf32>
    %cst_114 = arith.constant 0.000000e+00 : f32
    %308 = vector.shape_cast %18 : vector<1x128xi1> to vector<1x128xi1>
    %309 = vector.broadcast %308 : vector<1x128xi1> to vector<8x128xi1>
    %310 = vector.broadcast %cst_114 : f32 to vector<8x128xf32>
    %311 = arith.select %309, %307, %310 : vector<8x128xi1>, vector<8x128xf32>
    %c0_115 = arith.constant 0 : index
    %c0_116 = arith.constant 0 : index
    %312 = vector.load %arg13[%c0_115, %c0_116] : memref<8x128xf32, #tpu.memory_space<vmem>>, vector<8x128xf32>
    tpu.vector_store %arg13[%c0_115, %c0_116], %311 {strides = array<i32>} : memref<8x128xf32, #tpu.memory_space<vmem>>, vector<8x128xf32>,
    return
  }
}

module attributes {stable_mosaic.version = 11 : i64} {
  func.func @kernel(%arg0: memref<8x128xf32, #tpu.memory_space<vmem>>, %arg1: memref<16x24xf32, #tpu.memory_space<vmem>>, %arg2: memref<16x1xf32, #tpu.memory_space<vmem>>, %arg3: memref<16x1xf32, #tpu.memory_space<vmem>>, %arg4: memref<16x80xf32, #tpu.memory_space<vmem>>, %arg5: memref<16x1xf32, #tpu.memory_space<vmem>>, %arg6: memref<16x1xf32, #tpu.memory_space<vmem>>, %arg7: memref<16x48xf32, #tpu.memory_space<vmem>>, %arg8: memref<16x1xf32, #tpu.memory_space<vmem>>, %arg9: memref<16x1xf32, #tpu.memory_space<vmem>>, %arg10: memref<16x8xf32, #tpu.memory_space<vmem>>, %arg11: memref<16x1xf32, #tpu.memory_space<vmem>>, %arg12: memref<16x1xf32, #tpu.memory_space<vmem>>, %arg13: memref<128x2xf32, #tpu.memory_space<vmem>>, %arg14: memref<1x16xf32, #tpu.memory_space<vmem>>, %arg15: memref<1x1xf32, #tpu.memory_space<vmem>>, %arg16: memref<1x2xf32, #tpu.memory_space<vmem>>) attributes {dimension_semantics = [], scalar_prefetch = 0 : i64, scratch_operands = 0 : i64, tpu.core_type = #tpu.core_type<tc>} {
    %0 = tpu.iota {dimensions = array<i32: 1>} : vector<1x128xi32>
    %c16_i32 = arith.constant 16 : i32
    %c0_i32 = arith.constant 0 : i32
    %1 = arith.cmpi eq, %c16_i32, %c0_i32 : i32
    %c1_i32 = arith.constant 1 : i32
    %2 = arith.select %1, %c1_i32, %c16_i32 : i32
    %3 = vector.broadcast %2 : i32 to vector<1x128xi32>
    %4 = arith.remsi %0, %3 : vector<1x128xi32>
    %c0_i32_0 = arith.constant 0 : i32
    %5 = vector.broadcast %c0_i32_0 : i32 to vector<1x128xi32>
    %6 = arith.cmpi ne, %4, %5 : vector<1x128xi32>
    %c0_i32_1 = arith.constant 0 : i32
    %7 = vector.broadcast %c0_i32_1 : i32 to vector<1x128xi32>
    %8 = arith.cmpi slt, %4, %7 : vector<1x128xi32>
    %c0_i32_2 = arith.constant 0 : i32
    %9 = arith.cmpi slt, %2, %c0_i32_2 : i32
    %10 = vector.broadcast %9 : i1 to vector<1x128xi1>
    %11 = vector.broadcast %10 : vector<1x128xi1> to vector<1x128xi1>
    %12 = arith.xori %8, %11 : vector<1x128xi1>
    %13 = arith.andi %12, %6 : vector<1x128xi1>
    %14 = vector.broadcast %2 : i32 to vector<1x128xi32>
    %15 = arith.addi %4, %14 : vector<1x128xi32>
    %16 = arith.select %13, %15, %4 : vector<1x128xi1>, vector<1x128xi32>
    %c32_i32 = arith.constant 32 : i32
    %17 = vector.broadcast %c32_i32 : i32 to vector<1x128xi32>
    %18 = arith.cmpi slt, %0, %17 : vector<1x128xi32>
    %c0 = arith.constant 0 : index
    %c0_3 = arith.constant 0 : index
    %19 = vector.load %arg0[%c0, %c0_3] : memref<8x128xf32, #tpu.memory_space<vmem>>, vector<8x128xf32>
    %c-1_i32 = arith.constant -1 : i32
    %20 = vector.broadcast %c-1_i32 : i32 to vector<1x128xi32>
    %21 = arith.addi %16, %20 : vector<1x128xi32>
    %c0_i32_4 = arith.constant 0 : i32
    %22 = vector.broadcast %c0_i32_4 : i32 to vector<1x128xi32>
    %23 = arith.cmpi sge, %21, %22 : vector<1x128xi32>
    %c-1_i32_5 = arith.constant -1 : i32
    %24 = vector.broadcast %c-1_i32_5 : i32 to vector<1x128xi32>
    %25 = arith.addi %16, %24 : vector<1x128xi32>
    %c16_i32_6 = arith.constant 16 : i32
    %26 = vector.broadcast %c16_i32_6 : i32 to vector<1x128xi32>
    %27 = arith.cmpi slt, %25, %26 : vector<1x128xi32>
    %28 = arith.andi %23, %27 : vector<1x128xi1>
    %29 = arith.andi %18, %28 : vector<1x128xi1>
    %c1_i32_7 = arith.constant 1 : i32
    %30 = tpu.dynamic_rotate %19 by %c1_i32_7 dim 1 : vector<8x128xf32>, i32 -> vector<8x128xf32>
    %cst = arith.constant 0.000000e+00 : f32
    %31 = vector.shape_cast %29 : vector<1x128xi1> to vector<1x128xi1>
    %32 = vector.broadcast %31 : vector<1x128xi1> to vector<8x128xi1>
    %33 = vector.broadcast %cst : f32 to vector<8x128xf32>
    %34 = arith.select %32, %30, %33 : vector<8x128xi1>, vector<8x128xf32>
    %c0_i32_8 = arith.constant 0 : i32
    %35 = vector.broadcast %c0_i32_8 : i32 to vector<1x128xi32>
    %36 = arith.addi %16, %35 : vector<1x128xi32>
    %c0_i32_9 = arith.constant 0 : i32
    %37 = vector.broadcast %c0_i32_9 : i32 to vector<1x128xi32>
    %38 = arith.cmpi sge, %36, %37 : vector<1x128xi32>
    %c0_i32_10 = arith.constant 0 : i32
    %39 = vector.broadcast %c0_i32_10 : i32 to vector<1x128xi32>
    %40 = arith.addi %16, %39 : vector<1x128xi32>
    %c16_i32_11 = arith.constant 16 : i32
    %41 = vector.broadcast %c16_i32_11 : i32 to vector<1x128xi32>
    %42 = arith.cmpi slt, %40, %41 : vector<1x128xi32>
    %43 = arith.andi %38, %42 : vector<1x128xi1>
    %44 = arith.andi %18, %43 : vector<1x128xi1>
    %cst_12 = arith.constant 0.000000e+00 : f32
    %45 = vector.shape_cast %44 : vector<1x128xi1> to vector<1x128xi1>
    %46 = vector.broadcast %45 : vector<1x128xi1> to vector<8x128xi1>
    %47 = vector.broadcast %cst_12 : f32 to vector<8x128xf32>
    %48 = arith.select %46, %19, %47 : vector<8x128xi1>, vector<8x128xf32>
    %c1_i32_13 = arith.constant 1 : i32
    %49 = vector.broadcast %c1_i32_13 : i32 to vector<1x128xi32>
    %50 = arith.addi %16, %49 : vector<1x128xi32>
    %c0_i32_14 = arith.constant 0 : i32
    %51 = vector.broadcast %c0_i32_14 : i32 to vector<1x128xi32>
    %52 = arith.cmpi sge, %50, %51 : vector<1x128xi32>
    %c1_i32_15 = arith.constant 1 : i32
    %53 = vector.broadcast %c1_i32_15 : i32 to vector<1x128xi32>
    %54 = arith.addi %16, %53 : vector<1x128xi32>
    %c16_i32_16 = arith.constant 16 : i32
    %55 = vector.broadcast %c16_i32_16 : i32 to vector<1x128xi32>
    %56 = arith.cmpi slt, %54, %55 : vector<1x128xi32>
    %57 = arith.andi %52, %56 : vector<1x128xi1>
    %58 = arith.andi %18, %57 : vector<1x128xi1>
    %c127_i32 = arith.constant 127 : i32
    %59 = tpu.dynamic_rotate %19 by %c127_i32 dim 1 : vector<8x128xf32>, i32 -> vector<8x128xf32>
    %cst_17 = arith.constant 0.000000e+00 : f32
    %60 = vector.shape_cast %58 : vector<1x128xi1> to vector<1x128xi1>
    %61 = vector.broadcast %60 : vector<1x128xi1> to vector<8x128xi1>
    %62 = vector.broadcast %cst_17 : f32 to vector<8x128xf32>
    %63 = arith.select %61, %59, %62 : vector<8x128xi1>, vector<8x128xf32>
    %64 = tpu.concatenate %34, %48, %63 in 0 : vector<8x128xf32>, vector<8x128xf32>, vector<8x128xf32> -> vector<24x128xf32>
    %c0_18 = arith.constant 0 : index
    %c0_19 = arith.constant 0 : index
    %65 = vector.load %arg1[%c0_18, %c0_19] : memref<16x24xf32, #tpu.memory_space<vmem>>, vector<16x24xf32>
    %cst_20 = arith.constant dense<0.000000e+00> : vector<16x128xf32>
    %66 = tpu.matmul %65, %64, %cst_20 {dimension_numbers = #tpu.dot_dimension_numbers<[1], [0], [0], [1], [0, 0, 1, 1], [], []>} : vector<16x24xf32>, vector<24x128xf32>, vector<16x128xf32> -> vector<16x128xf32>
    %cst_21 = arith.constant dense<0.000000e+00> : vector<16xf32>
    %67 = vector.multi_reduction <add>, %66, %cst_21 [1] : vector<16x128xf32> to vector<16xf32>
    %68 = vector.shape_cast %67 : vector<16xf32> to vector<16x1xf32>
    %cst_22 = arith.constant 3.125000e-02 : f32
    %69 = vector.broadcast %cst_22 : f32 to vector<16x1xf32>
    %70 = arith.mulf %68, %69 : vector<16x1xf32>
    %71 = arith.mulf %66, %66 : vector<16x128xf32>
    %cst_23 = arith.constant dense<0.000000e+00> : vector<16xf32>
    %72 = vector.multi_reduction <add>, %71, %cst_23 [1] : vector<16x128xf32> to vector<16xf32>
    %73 = vector.shape_cast %72 : vector<16xf32> to vector<16x1xf32>
    %cst_24 = arith.constant 3.125000e-02 : f32
    %74 = vector.broadcast %cst_24 : f32 to vector<16x1xf32>
    %75 = arith.mulf %73, %74 : vector<16x1xf32>
    %76 = arith.mulf %70, %70 : vector<16x1xf32>
    %77 = arith.subf %75, %76 : vector<16x1xf32>
    %cst_25 = arith.constant 0.000000e+00 : f32
    %78 = vector.broadcast %cst_25 : f32 to vector<16x1xf32>
    %79 = arith.maximumf %77, %78 : vector<16x1xf32>
    %c0_26 = arith.constant 0 : index
    %c0_27 = arith.constant 0 : index
    %80 = vector.load %arg2[%c0_26, %c0_27] : memref<16x1xf32, #tpu.memory_space<vmem>>, vector<16x1xf32>
    %cst_28 = arith.constant 9.99999974E-6 : f32
    %81 = vector.broadcast %cst_28 : f32 to vector<16x1xf32>
    %82 = arith.addf %79, %81 : vector<16x1xf32>
    %83 = math.rsqrt %82 : vector<16x1xf32>
    %84 = arith.mulf %80, %83 : vector<16x1xf32>
    %c0_29 = arith.constant 0 : index
    %c0_30 = arith.constant 0 : index
    %85 = vector.load %arg3[%c0_29, %c0_30] : memref<16x1xf32, #tpu.memory_space<vmem>>, vector<16x1xf32>
    %86 = arith.mulf %70, %84 : vector<16x1xf32>
    %87 = arith.subf %85, %86 : vector<16x1xf32>
    %88 = vector.broadcast %84 : vector<16x1xf32> to vector<16x128xf32>
    %89 = arith.mulf %66, %88 : vector<16x128xf32>
    %90 = vector.broadcast %87 : vector<16x1xf32> to vector<16x128xf32>
    %91 = arith.addf %89, %90 : vector<16x128xf32>
    %cst_31 = arith.constant 0.000000e+00 : f32
    %92 = vector.broadcast %cst_31 : f32 to vector<16x128xf32>
    %93 = arith.maximumf %91, %92 : vector<16x128xf32>
    %c-2_i32 = arith.constant -2 : i32
    %94 = vector.broadcast %c-2_i32 : i32 to vector<1x128xi32>
    %95 = arith.addi %16, %94 : vector<1x128xi32>
    %c0_i32_32 = arith.constant 0 : i32
    %96 = vector.broadcast %c0_i32_32 : i32 to vector<1x128xi32>
    %97 = arith.cmpi sge, %95, %96 : vector<1x128xi32>
    %c-2_i32_33 = arith.constant -2 : i32
    %98 = vector.broadcast %c-2_i32_33 : i32 to vector<1x128xi32>
    %99 = arith.addi %16, %98 : vector<1x128xi32>
    %c16_i32_34 = arith.constant 16 : i32
    %100 = vector.broadcast %c16_i32_34 : i32 to vector<1x128xi32>
    %101 = arith.cmpi slt, %99, %100 : vector<1x128xi32>
    %102 = arith.andi %97, %101 : vector<1x128xi1>
    %103 = arith.andi %18, %102 : vector<1x128xi1>
    %c2_i32 = arith.constant 2 : i32
    %104 = tpu.dynamic_rotate %93 by %c2_i32 dim 1 : vector<16x128xf32>, i32 -> vector<16x128xf32>
    %cst_35 = arith.constant 0.000000e+00 : f32
    %105 = vector.shape_cast %103 : vector<1x128xi1> to vector<1x128xi1>
    %106 = vector.broadcast %105 : vector<1x128xi1> to vector<16x128xi1>
    %107 = vector.broadcast %cst_35 : f32 to vector<16x128xf32>
    %108 = arith.select %106, %104, %107 : vector<16x128xi1>, vector<16x128xf32>
    %c-1_i32_36 = arith.constant -1 : i32
    %109 = vector.broadcast %c-1_i32_36 : i32 to vector<1x128xi32>
    %110 = arith.addi %16, %109 : vector<1x128xi32>
    %c0_i32_37 = arith.constant 0 : i32
    %111 = vector.broadcast %c0_i32_37 : i32 to vector<1x128xi32>
    %112 = arith.cmpi sge, %110, %111 : vector<1x128xi32>
    %c-1_i32_38 = arith.constant -1 : i32
    %113 = vector.broadcast %c-1_i32_38 : i32 to vector<1x128xi32>
    %114 = arith.addi %16, %113 : vector<1x128xi32>
    %c16_i32_39 = arith.constant 16 : i32
    %115 = vector.broadcast %c16_i32_39 : i32 to vector<1x128xi32>
    %116 = arith.cmpi slt, %114, %115 : vector<1x128xi32>
    %117 = arith.andi %112, %116 : vector<1x128xi1>
    %118 = arith.andi %18, %117 : vector<1x128xi1>
    %c1_i32_40 = arith.constant 1 : i32
    %119 = tpu.dynamic_rotate %93 by %c1_i32_40 dim 1 : vector<16x128xf32>, i32 -> vector<16x128xf32>
    %cst_41 = arith.constant 0.000000e+00 : f32
    %120 = vector.shape_cast %118 : vector<1x128xi1> to vector<1x128xi1>
    %121 = vector.broadcast %120 : vector<1x128xi1> to vector<16x128xi1>
    %122 = vector.broadcast %cst_41 : f32 to vector<16x128xf32>
    %123 = arith.select %121, %119, %122 : vector<16x128xi1>, vector<16x128xf32>
    %c0_i32_42 = arith.constant 0 : i32
    %124 = vector.broadcast %c0_i32_42 : i32 to vector<1x128xi32>
    %125 = arith.addi %16, %124 : vector<1x128xi32>
    %c0_i32_43 = arith.constant 0 : i32
    %126 = vector.broadcast %c0_i32_43 : i32 to vector<1x128xi32>
    %127 = arith.cmpi sge, %125, %126 : vector<1x128xi32>
    %c0_i32_44 = arith.constant 0 : i32
    %128 = vector.broadcast %c0_i32_44 : i32 to vector<1x128xi32>
    %129 = arith.addi %16, %128 : vector<1x128xi32>
    %c16_i32_45 = arith.constant 16 : i32
    %130 = vector.broadcast %c16_i32_45 : i32 to vector<1x128xi32>
    %131 = arith.cmpi slt, %129, %130 : vector<1x128xi32>
    %132 = arith.andi %127, %131 : vector<1x128xi1>
    %133 = arith.andi %18, %132 : vector<1x128xi1>
    %cst_46 = arith.constant 0.000000e+00 : f32
    %134 = vector.shape_cast %133 : vector<1x128xi1> to vector<1x128xi1>
    %135 = vector.broadcast %134 : vector<1x128xi1> to vector<16x128xi1>
    %136 = vector.broadcast %cst_46 : f32 to vector<16x128xf32>
    %137 = arith.select %135, %93, %136 : vector<16x128xi1>, vector<16x128xf32>
    %c1_i32_47 = arith.constant 1 : i32
    %138 = vector.broadcast %c1_i32_47 : i32 to vector<1x128xi32>
    %139 = arith.addi %16, %138 : vector<1x128xi32>
    %c0_i32_48 = arith.constant 0 : i32
    %140 = vector.broadcast %c0_i32_48 : i32 to vector<1x128xi32>
    %141 = arith.cmpi sge, %139, %140 : vector<1x128xi32>
    %c1_i32_49 = arith.constant 1 : i32
    %142 = vector.broadcast %c1_i32_49 : i32 to vector<1x128xi32>
    %143 = arith.addi %16, %142 : vector<1x128xi32>
    %c16_i32_50 = arith.constant 16 : i32
    %144 = vector.broadcast %c16_i32_50 : i32 to vector<1x128xi32>
    %145 = arith.cmpi slt, %143, %144 : vector<1x128xi32>
    %146 = arith.andi %141, %145 : vector<1x128xi1>
    %147 = arith.andi %18, %146 : vector<1x128xi1>
    %c127_i32_51 = arith.constant 127 : i32
    %148 = tpu.dynamic_rotate %93 by %c127_i32_51 dim 1 : vector<16x128xf32>, i32 -> vector<16x128xf32>
    %cst_52 = arith.constant 0.000000e+00 : f32
    %149 = vector.shape_cast %147 : vector<1x128xi1> to vector<1x128xi1>
    %150 = vector.broadcast %149 : vector<1x128xi1> to vector<16x128xi1>
    %151 = vector.broadcast %cst_52 : f32 to vector<16x128xf32>
    %152 = arith.select %150, %148, %151 : vector<16x128xi1>, vector<16x128xf32>
    %c2_i32_53 = arith.constant 2 : i32
    %153 = vector.broadcast %c2_i32_53 : i32 to vector<1x128xi32>
    %154 = arith.addi %16, %153 : vector<1x128xi32>
    %c0_i32_54 = arith.constant 0 : i32
    %155 = vector.broadcast %c0_i32_54 : i32 to vector<1x128xi32>
    %156 = arith.cmpi sge, %154, %155 : vector<1x128xi32>
    %c2_i32_55 = arith.constant 2 : i32
    %157 = vector.broadcast %c2_i32_55 : i32 to vector<1x128xi32>
    %158 = arith.addi %16, %157 : vector<1x128xi32>
    %c16_i32_56 = arith.constant 16 : i32
    %159 = vector.broadcast %c16_i32_56 : i32 to vector<1x128xi32>
    %160 = arith.cmpi slt, %158, %159 : vector<1x128xi32>
    %161 = arith.andi %156, %160 : vector<1x128xi1>
    %162 = arith.andi %18, %161 : vector<1x128xi1>
    %c126_i32 = arith.constant 126 : i32
    %163 = tpu.dynamic_rotate %93 by %c126_i32 dim 1 : vector<16x128xf32>, i32 -> vector<16x128xf32>
    %cst_57 = arith.constant 0.000000e+00 : f32
    %164 = vector.shape_cast %162 : vector<1x128xi1> to vector<1x128xi1>
    %165 = vector.broadcast %164 : vector<1x128xi1> to vector<16x128xi1>
    %166 = vector.broadcast %cst_57 : f32 to vector<16x128xf32>
    %167 = arith.select %165, %163, %166 : vector<16x128xi1>, vector<16x128xf32>
    %168 = tpu.concatenate %108, %123, %137, %152, %167 in 0 : vector<16x128xf32>, vector<16x128xf32>, vector<16x128xf32>, vector<16x128xf32>, vector<16x128xf32> -> vector<80x128xf32>
    %c0_58 = arith.constant 0 : index
    %c0_59 = arith.constant 0 : index
    %169 = vector.load %arg4[%c0_58, %c0_59] : memref<16x80xf32, #tpu.memory_space<vmem>>, vector<16x80xf32>
    %cst_60 = arith.constant dense<0.000000e+00> : vector<16x128xf32>
    %170 = tpu.matmul %169, %168, %cst_60 {dimension_numbers = #tpu.dot_dimension_numbers<[1], [0], [0], [1], [0, 0, 1, 1], [], []>} : vector<16x80xf32>, vector<80x128xf32>, vector<16x128xf32> -> vector<16x128xf32>
    %cst_61 = arith.constant dense<0.000000e+00> : vector<16xf32>
    %171 = vector.multi_reduction <add>, %170, %cst_61 [1] : vector<16x128xf32> to vector<16xf32>
    %172 = vector.shape_cast %171 : vector<16xf32> to vector<16x1xf32>
    %cst_62 = arith.constant 3.125000e-02 : f32
    %173 = vector.broadcast %cst_62 : f32 to vector<16x1xf32>
    %174 = arith.mulf %172, %173 : vector<16x1xf32>
    %175 = arith.mulf %170, %170 : vector<16x128xf32>
    %cst_63 = arith.constant dense<0.000000e+00> : vector<16xf32>
    %176 = vector.multi_reduction <add>, %175, %cst_63 [1] : vector<16x128xf32> to vector<16xf32>
    %177 = vector.shape_cast %176 : vector<16xf32> to vector<16x1xf32>
    %cst_64 = arith.constant 3.125000e-02 : f32
    %178 = vector.broadcast %cst_64 : f32 to vector<16x1xf32>
    %179 = arith.mulf %177, %178 : vector<16x1xf32>
    %180 = arith.mulf %174, %174 : vector<16x1xf32>
    %181 = arith.subf %179, %180 : vector<16x1xf32>
    %cst_65 = arith.constant 0.000000e+00 : f32
    %182 = vector.broadcast %cst_65 : f32 to vector<16x1xf32>
    %183 = arith.maximumf %181, %182 : vector<16x1xf32>
    %c0_66 = arith.constant 0 : index
    %c0_67 = arith.constant 0 : index
    %184 = vector.load %arg5[%c0_66, %c0_67] : memref<16x1xf32, #tpu.memory_space<vmem>>, vector<16x1xf32>
    %cst_68 = arith.constant 9.99999974E-6 : f32
    %185 = vector.broadcast %cst_68 : f32 to vector<16x1xf32>
    %186 = arith.addf %183, %185 : vector<16x1xf32>
    %187 = math.rsqrt %186 : vector<16x1xf32>
    %188 = arith.mulf %184, %187 : vector<16x1xf32>
    %c0_69 = arith.constant 0 : index
    %c0_70 = arith.constant 0 : index
    %189 = vector.load %arg6[%c0_69, %c0_70] : memref<16x1xf32, #tpu.memory_space<vmem>>, vector<16x1xf32>
    %190 = arith.mulf %174, %188 : vector<16x1xf32>
    %191 = arith.subf %189, %190 : vector<16x1xf32>
    %192 = vector.broadcast %188 : vector<16x1xf32> to vector<16x128xf32>
    %193 = arith.mulf %170, %192 : vector<16x128xf32>
    %194 = vector.broadcast %191 : vector<16x1xf32> to vector<16x128xf32>
    %195 = arith.addf %193, %194 : vector<16x128xf32>
    %cst_71 = arith.constant 0.000000e+00 : f32
    %196 = vector.broadcast %cst_71 : f32 to vector<16x128xf32>
    %197 = arith.maximumf %195, %196 : vector<16x128xf32>
    %c-1_i32_72 = arith.constant -1 : i32
    %198 = vector.broadcast %c-1_i32_72 : i32 to vector<1x128xi32>
    %199 = arith.addi %16, %198 : vector<1x128xi32>
    %c0_i32_73 = arith.constant 0 : i32
    %200 = vector.broadcast %c0_i32_73 : i32 to vector<1x128xi32>
    %201 = arith.cmpi sge, %199, %200 : vector<1x128xi32>
    %c-1_i32_74 = arith.constant -1 : i32
    %202 = vector.broadcast %c-1_i32_74 : i32 to vector<1x128xi32>
    %203 = arith.addi %16, %202 : vector<1x128xi32>
    %c16_i32_75 = arith.constant 16 : i32
    %204 = vector.broadcast %c16_i32_75 : i32 to vector<1x128xi32>
    %205 = arith.cmpi slt, %203, %204 : vector<1x128xi32>
    %206 = arith.andi %201, %205 : vector<1x128xi1>
    %207 = arith.andi %18, %206 : vector<1x128xi1>
    %c1_i32_76 = arith.constant 1 : i32
    %208 = tpu.dynamic_rotate %197 by %c1_i32_76 dim 1 : vector<16x128xf32>, i32 -> vector<16x128xf32>
    %cst_77 = arith.constant 0.000000e+00 : f32
    %209 = vector.shape_cast %207 : vector<1x128xi1> to vector<1x128xi1>
    %210 = vector.broadcast %209 : vector<1x128xi1> to vector<16x128xi1>
    %211 = vector.broadcast %cst_77 : f32 to vector<16x128xf32>
    %212 = arith.select %210, %208, %211 : vector<16x128xi1>, vector<16x128xf32>
    %c0_i32_78 = arith.constant 0 : i32
    %213 = vector.broadcast %c0_i32_78 : i32 to vector<1x128xi32>
    %214 = arith.addi %16, %213 : vector<1x128xi32>
    %c0_i32_79 = arith.constant 0 : i32
    %215 = vector.broadcast %c0_i32_79 : i32 to vector<1x128xi32>
    %216 = arith.cmpi sge, %214, %215 : vector<1x128xi32>
    %c0_i32_80 = arith.constant 0 : i32
    %217 = vector.broadcast %c0_i32_80 : i32 to vector<1x128xi32>
    %218 = arith.addi %16, %217 : vector<1x128xi32>
    %c16_i32_81 = arith.constant 16 : i32
    %219 = vector.broadcast %c16_i32_81 : i32 to vector<1x128xi32>
    %220 = arith.cmpi slt, %218, %219 : vector<1x128xi32>
    %221 = arith.andi %216, %220 : vector<1x128xi1>
    %222 = arith.andi %18, %221 : vector<1x128xi1>
    %cst_82 = arith.constant 0.000000e+00 : f32
    %223 = vector.shape_cast %222 : vector<1x128xi1> to vector<1x128xi1>
    %224 = vector.broadcast %223 : vector<1x128xi1> to vector<16x128xi1>
    %225 = vector.broadcast %cst_82 : f32 to vector<16x128xf32>
    %226 = arith.select %224, %197, %225 : vector<16x128xi1>, vector<16x128xf32>
    %c1_i32_83 = arith.constant 1 : i32
    %227 = vector.broadcast %c1_i32_83 : i32 to vector<1x128xi32>
    %228 = arith.addi %16, %227 : vector<1x128xi32>
    %c0_i32_84 = arith.constant 0 : i32
    %229 = vector.broadcast %c0_i32_84 : i32 to vector<1x128xi32>
    %230 = arith.cmpi sge, %228, %229 : vector<1x128xi32>
    %c1_i32_85 = arith.constant 1 : i32
    %231 = vector.broadcast %c1_i32_85 : i32 to vector<1x128xi32>
    %232 = arith.addi %16, %231 : vector<1x128xi32>
    %c16_i32_86 = arith.constant 16 : i32
    %233 = vector.broadcast %c16_i32_86 : i32 to vector<1x128xi32>
    %234 = arith.cmpi slt, %232, %233 : vector<1x128xi32>
    %235 = arith.andi %230, %234 : vector<1x128xi1>
    %236 = arith.andi %18, %235 : vector<1x128xi1>
    %c127_i32_87 = arith.constant 127 : i32
    %237 = tpu.dynamic_rotate %197 by %c127_i32_87 dim 1 : vector<16x128xf32>, i32 -> vector<16x128xf32>
    %cst_88 = arith.constant 0.000000e+00 : f32
    %238 = vector.shape_cast %236 : vector<1x128xi1> to vector<1x128xi1>
    %239 = vector.broadcast %238 : vector<1x128xi1> to vector<16x128xi1>
    %240 = vector.broadcast %cst_88 : f32 to vector<16x128xf32>
    %241 = arith.select %239, %237, %240 : vector<16x128xi1>, vector<16x128xf32>
    %242 = tpu.concatenate %212, %226, %241 in 0 : vector<16x128xf32>, vector<16x128xf32>, vector<16x128xf32> -> vector<48x128xf32>
    %c0_89 = arith.constant 0 : index
    %c0_90 = arith.constant 0 : index
    %243 = vector.load %arg7[%c0_89, %c0_90] : memref<16x48xf32, #tpu.memory_space<vmem>>, vector<16x48xf32>
    %cst_91 = arith.constant dense<0.000000e+00> : vector<16x128xf32>
    %244 = tpu.matmul %243, %242, %cst_91 {dimension_numbers = #tpu.dot_dimension_numbers<[1], [0], [0], [1], [0, 0, 1, 1], [], []>} : vector<16x48xf32>, vector<48x128xf32>, vector<16x128xf32> -> vector<16x128xf32>
    %cst_92 = arith.constant dense<0.000000e+00> : vector<16xf32>
    %245 = vector.multi_reduction <add>, %244, %cst_92 [1] : vector<16x128xf32> to vector<16xf32>
    %246 = vector.shape_cast %245 : vector<16xf32> to vector<16x1xf32>
    %cst_93 = arith.constant 3.125000e-02 : f32
    %247 = vector.broadcast %cst_93 : f32 to vector<16x1xf32>
    %248 = arith.mulf %246, %247 : vector<16x1xf32>
    %249 = arith.mulf %244, %244 : vector<16x128xf32>
    %cst_94 = arith.constant dense<0.000000e+00> : vector<16xf32>
    %250 = vector.multi_reduction <add>, %249, %cst_94 [1] : vector<16x128xf32> to vector<16xf32>
    %251 = vector.shape_cast %250 : vector<16xf32> to vector<16x1xf32>
    %cst_95 = arith.constant 3.125000e-02 : f32
    %252 = vector.broadcast %cst_95 : f32 to vector<16x1xf32>
    %253 = arith.mulf %251, %252 : vector<16x1xf32>
    %254 = arith.mulf %248, %248 : vector<16x1xf32>
    %255 = arith.subf %253, %254 : vector<16x1xf32>
    %cst_96 = arith.constant 0.000000e+00 : f32
    %256 = vector.broadcast %cst_96 : f32 to vector<16x1xf32>
    %257 = arith.maximumf %255, %256 : vector<16x1xf32>
    %c0_97 = arith.constant 0 : index
    %c0_98 = arith.constant 0 : index
    %258 = vector.load %arg8[%c0_97, %c0_98] : memref<16x1xf32, #tpu.memory_space<vmem>>, vector<16x1xf32>
    %cst_99 = arith.constant 9.99999974E-6 : f32
    %259 = vector.broadcast %cst_99 : f32 to vector<16x1xf32>
    %260 = arith.addf %257, %259 : vector<16x1xf32>
    %261 = math.rsqrt %260 : vector<16x1xf32>
    %262 = arith.mulf %258, %261 : vector<16x1xf32>
    %c0_100 = arith.constant 0 : index
    %c0_101 = arith.constant 0 : index
    %263 = vector.load %arg9[%c0_100, %c0_101] : memref<16x1xf32, #tpu.memory_space<vmem>>, vector<16x1xf32>
    %264 = arith.mulf %248, %262 : vector<16x1xf32>
    %265 = arith.subf %263, %264 : vector<16x1xf32>
    %266 = vector.broadcast %262 : vector<16x1xf32> to vector<16x128xf32>
    %267 = arith.mulf %244, %266 : vector<16x128xf32>
    %268 = vector.broadcast %265 : vector<16x1xf32> to vector<16x128xf32>
    %269 = arith.addf %267, %268 : vector<16x128xf32>
    %c0_102 = arith.constant 0 : index
    %c0_103 = arith.constant 0 : index
    %270 = vector.load %arg10[%c0_102, %c0_103] : memref<16x8xf32, #tpu.memory_space<vmem>>, vector<16x8xf32>
    %cst_104 = arith.constant dense<0.000000e+00> : vector<16x128xf32>
    %271 = tpu.matmul %270, %19, %cst_104 {dimension_numbers = #tpu.dot_dimension_numbers<[1], [0], [0], [1], [0, 0, 1, 1], [], []>} : vector<16x8xf32>, vector<8x128xf32>, vector<16x128xf32> -> vector<16x128xf32>
    %cst_105 = arith.constant dense<0.000000e+00> : vector<16xf32>
    %272 = vector.multi_reduction <add>, %271, %cst_105 [1] : vector<16x128xf32> to vector<16xf32>
    %273 = vector.shape_cast %272 : vector<16xf32> to vector<16x1xf32>
    %cst_106 = arith.constant 3.125000e-02 : f32
    %274 = vector.broadcast %cst_106 : f32 to vector<16x1xf32>
    %275 = arith.mulf %273, %274 : vector<16x1xf32>
    %276 = arith.mulf %271, %271 : vector<16x128xf32>
    %cst_107 = arith.constant dense<0.000000e+00> : vector<16xf32>
    %277 = vector.multi_reduction <add>, %276, %cst_107 [1] : vector<16x128xf32> to vector<16xf32>
    %278 = vector.shape_cast %277 : vector<16xf32> to vector<16x1xf32>
    %cst_108 = arith.constant 3.125000e-02 : f32
    %279 = vector.broadcast %cst_108 : f32 to vector<16x1xf32>
    %280 = arith.mulf %278, %279 : vector<16x1xf32>
    %281 = arith.mulf %275, %275 : vector<16x1xf32>
    %282 = arith.subf %280, %281 : vector<16x1xf32>
    %cst_109 = arith.constant 0.000000e+00 : f32
    %283 = vector.broadcast %cst_109 : f32 to vector<16x1xf32>
    %284 = arith.maximumf %282, %283 : vector<16x1xf32>
    %c0_110 = arith.constant 0 : index
    %c0_111 = arith.constant 0 : index
    %285 = vector.load %arg11[%c0_110, %c0_111] : memref<16x1xf32, #tpu.memory_space<vmem>>, vector<16x1xf32>
    %cst_112 = arith.constant 9.99999974E-6 : f32
    %286 = vector.broadcast %cst_112 : f32 to vector<16x1xf32>
    %287 = arith.addf %284, %286 : vector<16x1xf32>
    %288 = math.rsqrt %287 : vector<16x1xf32>
    %289 = arith.mulf %285, %288 : vector<16x1xf32>
    %c0_113 = arith.constant 0 : index
    %c0_114 = arith.constant 0 : index
    %290 = vector.load %arg12[%c0_113, %c0_114] : memref<16x1xf32, #tpu.memory_space<vmem>>, vector<16x1xf32>
    %291 = arith.mulf %275, %289 : vector<16x1xf32>
    %292 = arith.subf %290, %291 : vector<16x1xf32>
    %293 = vector.broadcast %289 : vector<16x1xf32> to vector<16x128xf32>
    %294 = arith.mulf %271, %293 : vector<16x128xf32>
    %295 = vector.broadcast %292 : vector<16x1xf32> to vector<16x128xf32>
    %296 = arith.addf %294, %295 : vector<16x128xf32>
    %297 = arith.addf %269, %296 : vector<16x128xf32>
    %cst_115 = arith.constant 0.000000e+00 : f32
    %298 = vector.broadcast %cst_115 : f32 to vector<16x128xf32>
    %299 = arith.maximumf %297, %298 : vector<16x128xf32>
    %cst_116 = arith.constant 0.000000e+00 : f32
    %300 = vector.shape_cast %18 : vector<1x128xi1> to vector<1x128xi1>
    %301 = vector.broadcast %300 : vector<1x128xi1> to vector<16x128xi1>
    %302 = vector.broadcast %cst_116 : f32 to vector<16x128xf32>
    %303 = arith.select %301, %299, %302 : vector<16x128xi1>, vector<16x128xf32>
    %c0_117 = arith.constant 0 : index
    %c0_118 = arith.constant 0 : index
    %304 = vector.load %arg13[%c0_117, %c0_118] : memref<128x2xf32, #tpu.memory_space<vmem>>, vector<128x2xf32>
    %cst_119 = arith.constant dense<0.000000e+00> : vector<16x2xf32>
    %305 = tpu.matmul %303, %304, %cst_119 {dimension_numbers = #tpu.dot_dimension_numbers<[1], [0], [0], [1], [0, 0, 1, 1], [], []>} : vector<16x128xf32>, vector<128x2xf32>, vector<16x2xf32> -> vector<16x2xf32>
    %c0_120 = arith.constant 0 : index
    %c0_121 = arith.constant 0 : index
    %306 = vector.load %arg14[%c0_120, %c0_121] : memref<1x16xf32, #tpu.memory_space<vmem>>, vector<1x16xf32>
    %cst_122 = arith.constant dense<0.000000e+00> : vector<1x2xf32>
    %307 = tpu.matmul %306, %305, %cst_122 {dimension_numbers = #tpu.dot_dimension_numbers<[1], [0], [0], [1], [0, 0, 1, 1], [], []>} : vector<1x16xf32>, vector<16x2xf32>, vector<1x2xf32> -> vector<1x2xf32>
    %c0_123 = arith.constant 0 : index
    %c0_124 = arith.constant 0 : index
    %308 = vector.load %arg15[%c0_123, %c0_124] : memref<1x1xf32, #tpu.memory_space<vmem>>, vector<1x1xf32>
    %309 = vector.broadcast %308 : vector<1x1xf32> to vector<1x2xf32>
    %310 = arith.addf %307, %309 : vector<1x2xf32>
    %c0_125 = arith.constant 0 : index
    %c0_126 = arith.constant 0 : index
    %311 = vector.load %arg16[%c0_125, %c0_126] : memref<1x2xf32, #tpu.memory_space<vmem>>, vector<1x2xf32>
    tpu.vector_store %arg16[%c0_125, %c0_126], %310 {strides = array<i32>} : memref<1x2xf32, #tpu.memory_space<vmem>>, vector<1x2xf32>,
    return
  }
}

</mosaic_0001>

<llo_original>
// kernel: resnet_forward.4
$region0: #{resnet_forward.4}
  #allocation0 [shape = 'u32[]', space=smem, size = 0x4, offset = 0x4, fixed_abs, tag = 'smem constant byte address 0x4 - core index']
  #allocation1 [shape = 'u32[144,128]{1,0:T(1,128)}', space=vmem, size = 0x12000, scoped, tag = 'internal scratch']
  %s0 = inlined_call_operand.vmem [shape: f32[8,128], index: 0, kind: input, shape index: {}]
  %s1 = inlined_call_operand.vmem [shape: f32[8,24], index: 1, kind: input, shape index: {}]
  %s2 = inlined_call_operand.vmem [shape: f32[8,1], index: 2, kind: input, shape index: {}]
  %s3 = inlined_call_operand.vmem [shape: f32[8,1], index: 3, kind: input, shape index: {}]
  %s4 = inlined_call_operand.vmem [shape: f32[8,40], index: 4, kind: input, shape index: {}]
  %s5 = inlined_call_operand.vmem [shape: f32[8,1], index: 5, kind: input, shape index: {}]
  %s6 = inlined_call_operand.vmem [shape: f32[8,1], index: 6, kind: input, shape index: {}]
  %s7 = inlined_call_operand.vmem [shape: f32[8,24], index: 7, kind: input, shape index: {}]
  %s8 = inlined_call_operand.vmem [shape: f32[8,1], index: 8, kind: input, shape index: {}]
  %s9 = inlined_call_operand.vmem [shape: f32[8,1], index: 9, kind: input, shape index: {}]
  %s10 = inlined_call_operand.vmem [shape: f32[8,1], index: 10, kind: input, shape index: {}]
  %s11 = inlined_call_operand.vmem [shape: f32[8,1], index: 11, kind: input, shape index: {}]
  %s12 = inlined_call_operand.vmem [shape: f32[8,128], index: 12, kind: output, shape index: {}]
  %s13 = sld [smem:[#allocation0]]
  $region58: #{resnet_forward.4} parent=0
    _
  %s15 = ssub.s32 1, %s13
  %s16 = scalar_select 0, %s15, %s13
  // Predicated region
  $region2: #{resnet_forward.4} parent=0 // pred_check
    _
  $region3: #{resnet_forward.4} parent=0 // pred_check_branch
    %18 = sbr.rel (0) target = $region5
  $region4: #{resnet_forward.4} parent=0 // pred_region
    _
  $region5: #{resnet_forward.4} parent=0 // pred_fallthru
    _
  // Predicated region
  $region6: #{resnet_forward.4} parent=0 // pred_check
    _
  $region7: #{resnet_forward.4} parent=0 // pred_check_branch
    %20 = sbr.rel (0) target = $region9
  $region8: #{resnet_forward.4} parent=0 // pred_region
    _
  $region9: #{resnet_forward.4} parent=0 // pred_fallthru
    _
  // Predicated region
  $region10: #{resnet_forward.4} parent=0 // pred_check
    _
  $region11: #{resnet_forward.4} parent=0 // pred_check_branch
    %22 = sbr.rel (0) target = $region13
  $region12: #{resnet_forward.4} parent=0 // pred_region
    _
  $region13: #{resnet_forward.4} parent=0 // pred_fallthru
    _
  // Predicated region
  $region14: #{resnet_forward.4} parent=0 // pred_check
    _
  $region15: #{resnet_forward.4} parent=0 // pred_check_branch
    %24 = sbr.rel (0) target = $region17
  $region16: #{resnet_forward.4} parent=0 // pred_region
    _
  $region17: #{resnet_forward.4} parent=0 // pred_fallthru
    _
  // Predicated region
  $region18: #{resnet_forward.4} parent=0 // pred_check
    _
  $region19: #{resnet_forward.4} parent=0 // pred_check_branch
    %26 = sbr.rel (0) target = $region21
  $region20: #{resnet_forward.4} parent=0 // pred_region
    _
  $region21: #{resnet_forward.4} parent=0 // pred_fallthru
    _
  // Predicated region
  $region22: #{resnet_forward.4} parent=0 // pred_check
    _
  $region23: #{resnet_forward.4} parent=0 // pred_check_branch
    %28 = sbr.rel (0) target = $region25
  $region24: #{resnet_forward.4} parent=0 // pred_region
    _
  $region25: #{resnet_forward.4} parent=0 // pred_fallthru
    _
  // Predicated region
  $region26: #{resnet_forward.4} parent=0 // pred_check
    _
  $region27: #{resnet_forward.4} parent=0 // pred_check_branch
    %30 = sbr.rel (0) target = $region29
  $region28: #{resnet_forward.4} parent=0 // pred_region
    _
  $region29: #{resnet_forward.4} parent=0 // pred_fallthru
    _
  // Predicated region
  $region30: #{resnet_forward.4} parent=0 // pred_check
    _
  $region31: #{resnet_forward.4} parent=0 // pred_check_branch
    %32 = sbr.rel (0) target = $region33
  $region32: #{resnet_forward.4} parent=0 // pred_region
    _
  $region33: #{resnet_forward.4} parent=0 // pred_fallthru
    _
  // Predicated region
  $region34: #{resnet_forward.4} parent=0 // pred_check
    _
  $region35: #{resnet_forward.4} parent=0 // pred_check_branch
    %34 = sbr.rel (0) target = $region37
  $region36: #{resnet_forward.4} parent=0 // pred_region
    _
  $region37: #{resnet_forward.4} parent=0 // pred_fallthru
    _
  // Predicated region
  $region38: #{resnet_forward.4} parent=0 // pred_check
    _
  $region39: #{resnet_forward.4} parent=0 // pred_check_branch
    %36 = sbr.rel (0) target = $region41
  $region40: #{resnet_forward.4} parent=0 // pred_region
    _
  $region41: #{resnet_forward.4} parent=0 // pred_fallthru
    _
  // Predicated region
  $region42: #{resnet_forward.4} parent=0 // pred_check
    _
  $region43: #{resnet_forward.4} parent=0 // pred_check_branch
    %38 = sbr.rel (0) target = $region45
  $region44: #{resnet_forward.4} parent=0 // pred_region
    _
  $region45: #{resnet_forward.4} parent=0 // pred_fallthru
    _
  // Predicated region
  $region46: #{resnet_forward.4} parent=0 // pred_check
    _
  $region47: #{resnet_forward.4} parent=0 // pred_check_branch
    %40 = sbr.rel (0) target = $region49
  $region48: #{resnet_forward.4} parent=0 // pred_region
    _
  $region49: #{resnet_forward.4} parent=0 // pred_fallthru
    _
  %v41 = vlaneseq
  %v42 = vand.u32 %v41, 127
  %vm43 = vcmp.lt.s32.totalorder %v42, 0
  %v44 = vsub.s32 0, %v42
  %v45 = vsel %vm43, %v44, %v42
  %v46 = vshrl.u32 %v45, 4
  %v47 = vand.u32 %v45, 15
  %v48 = vsub.s32 0, %v47
  %v49 = vsel %vm43, %v48, %v47
  %vm50 = vcmp.ne.s32.totalorder %v49, 0
  %vm51 = vcmp.lt.s32.totalorder %v49, 0
  %vm52 = vmand %vm51, %vm50
  %v53 = vadd.s32 %v49, 16
  %v54 = vsel %vm52, %v53, %v49
  %vm55 = vcmp.lt.s32.totalorder %v42, 32
  %v56 = vld [vmem:[%s0] sm:$0xff]
  %v57 = vadd.s32 %v54, 4294967295
  %vm58 = vcmp.ge.s32.totalorder %v57, 0
  %vm59 = vcmp.lt.s32.totalorder %v57, 16
  %vm60 = vmand %vm58, %vm59
  %vm61 = vmand %vm55, %vm60
  %62 = vrot.lane.b32.xlu0 %v56, 1
  %v63 = vpop.permute.xlu0 %62
  %v64 = vsel %vm61, 1, 0
  %vm65 = vcmp.eq.s32.totalorder %v64, 1
  %v66 = vsel %vm65, %v63, 0.0
  %vm67 = vcmp.ge.s32.totalorder %v54, 0
  %vm68 = vcmp.lt.s32.totalorder %v54, 16
  %vm69 = vmand %vm67, %vm68
  %vm70 = vmand %vm55, %vm69
  %v71 = vsel %vm70, 1, 0
  %vm72 = vcmp.eq.s32.totalorder %v71, 1
  %v73 = vsel %vm72, %v56, 0.0
  %v74 = vadd.s32 %v54, 1
  %vm75 = vcmp.ge.s32.totalorder %v74, 0
  %vm76 = vcmp.lt.s32.totalorder %v74, 16
  %vm77 = vmand %vm75, %vm76
  %vm78 = vmand %vm55, %vm77
  %79 = vrot.lane.b32.xlu0 %v56, 127
  %v80 = vpop.permute.xlu0 %79
  %v81 = vsel %vm78, 1, 0
  %vm82 = vcmp.eq.s32.totalorder %v81, 1
  %v83 = vsel %vm82, %v80, 0.0
  %v84 = vld [vmem:[%s1] sm:$0xff]
  %vm85 = vcmask 195584
  %v87 = vsel %vm85, %v84, 0
  %89 = vmatprep.subr.mxu0 0.0
  %90 = vmatpush1.msra.mxu0 %v66
  %91 = vmatprep.subr.mxu0 0.0
  %92 = vmatpush1.msra.mxu0 %v73
  %93 = vmatprep.subr.mxu0 0.0
  %94 = vmatpush1.msra.mxu0 %v83
  %95 = vmatprep.subr.mxu0 0.0
  %96 = vmatpush1.msra.mxu0 0.0
  %97 = vmatprep.subr.mxu0 0.0
  %98 = vmatpush1.msra.mxu0 0.0
  %99 = vmatprep.subr.mxu0 0.0
  %100 = vmatpush1.msra.mxu0 0.0
  %101 = vmatprep.subr.mxu0 0.0
  %102 = vmatpush1.msra.mxu0 0.0
  %103 = vmatprep.subr.mxu0 0.0
  %104 = vmatpush1.msra.mxu0 0.0
  %105 = vmatprep.subr.mxu0 0.0
  %106 = vmatpush1.msra.mxu0 0.0
  %107 = vmatprep.subr.mxu0 0.0
  %108 = vmatpush1.msra.mxu0 0.0
  %109 = vmatprep.subr.mxu0 0.0
  %110 = vmatpush1.msra.mxu0 0.0
  %111 = vmatprep.subr.mxu0 0.0
  %112 = vmatpush1.msra.mxu0 0.0
  %113 = vmatprep.subr.mxu0 0.0
  %114 = vmatpush1.msra.mxu0 0.0
  %115 = vmatprep.subr.mxu0 0.0
  %116 = vmatpush1.msra.mxu0 0.0
  %117 = vmatprep.subr.mxu0 0.0
  %118 = vmatpush1.msra.mxu0 0.0
  %119 = vmatprep.subr.mxu0 0.0
  %120 = vmatpush1.msra.mxu0 0.0
  %121 = vmatprep.subr.mxu0 0.0
  %122 = vmatpush1.msra.mxu0 0.0
  %123 = vmatprep.subr.mxu0 0.0
  %124 = vmatpush1.msra.mxu0 0.0
  %125 = vmatprep.subr.mxu0 0.0
  %126 = vmatpush1.msra.mxu0 0.0
  %127 = vmatprep.subr.mxu0 0.0
  %128 = vmatpush1.msra.mxu0 0.0
  %129 = vmatprep.subr.mxu0 0.0
  %130 = vmatpush1.msra.mxu0 0.0
  %131 = vmatprep.subr.mxu0 0.0
  %132 = vmatpush1.msra.mxu0 0.0
  %133 = vmatprep.subr.mxu0 0.0
  %134 = vmatpush1.msra.mxu0 0.0
  %135 = vmatprep.subr.mxu0 0.0
  %136 = vmatpush1.msra.mxu0 0.0
  %137 = vmatprep.subr.mxu0 0.0
  %138 = vmatpush1.msra.mxu0 0.0
  %139 = vmatprep.subr.mxu0 0.0
  %140 = vmatpush1.msra.mxu0 0.0
  %141 = vmatprep.subr.mxu0 0.0
  %142 = vmatpush1.msra.mxu0 0.0
  %143 = vmatprep.subr.mxu0 0.0
  %144 = vmatpush1.msra.mxu0 0.0
  %145 = vmatprep.subr.mxu0 0.0
  %146 = vmatpush1.msra.mxu0 0.0
  %147 = vmatprep.subr.mxu0 0.0
  %148 = vmatpush1.msra.mxu0 0.0
  %149 = vmatprep.subr.mxu0 0.0
  %150 = vmatpush1.msra.mxu0 0.0
  %151 = vmatprep.subr.mxu0 0.0
  %152 = vmatpush1.msra.mxu0 0.0
  %153 = vmatprep.mubr.f32.mxu0 0.0
  %154 = vmatmul.mubr.f32.gmra.mrb[0].mxu0 %v87
  %v155 = vpop.f32.mrb[0].mxu0
  %v156 = vadd.f32 0.0, %v155
  %v157 = vpop.f32.mrb[0].mxu0
  %158 = vdwg.mxu0
  %159 = vadd.xlane.f32.xlu0 %v156
  %v160 = vpop.xlane.xlu0 %159
  %v161 = vmul.f32 %v160, 0.03125
  %v162 = vmul.f32 %v156, %v156
  %163 = vadd.xlane.f32.xlu0 %v162
  %v164 = vpop.xlane.xlu0 %163
  %v165 = vmul.f32 %v164, 0.03125
  %v166 = vmul.f32 %v161, %v161
  %v167 = vsub.f32 %v165, %v166
  %v168 = vmax.f32 %v167, 0.0
  %v169 = vld [vmem:[%s2] sm:$0xff]
  %v170 = vadd.f32 %v168, 1e-05
  %v171 = vrsqrt.pop %v170
  %v172 = vmul.f32 %v169, %v171
  %v173 = vld [vmem:[%s3] sm:$0xff]
  %v174 = vmul.f32 %v161, %v172
  %v175 = vsub.f32 %v173, %v174
  %177 = vset.pattern.permute.xlu0 0
  %178 = vperm.xlu0 %177, %v172
  %v179 = vpop.permute.xlu0 %178
  %v181 = vmul.f32 %v156, %v179
  %183 = vset.pattern.permute.xlu0 0
  %184 = vperm.xlu0 %183, %v175
  %v185 = vpop.permute.xlu0 %184
  %v187 = vadd.f32 %v181, %v185
  %v188 = vmax.f32 %v187, 0.0
  %v189 = vadd.s32 %v54, 4294967294
  %vm190 = vcmp.ge.s32.totalorder %v189, 0
  %vm191 = vcmp.lt.s32.totalorder %v189, 16
  %vm192 = vmand %vm190, %vm191
  %vm193 = vmand %vm55, %vm192
  %194 = vrot.lane.b32.xlu0 %v188, 2
  %v195 = vpop.permute.xlu0 %194
  %v196 = vsel %vm193, 1, 0
  %vm197 = vcmp.eq.s32.totalorder %v196, 1
  %v198 = vsel %vm197, %v195, 0.0
  %199 = vrot.lane.b32.xlu0 %v188, 1
  %v200 = vpop.permute.xlu0 %199
  %v201 = vsel %vm65, %v200, 0.0
  %v202 = vsel %vm72, %v188, 0.0
  %203 = vrot.lane.b32.xlu0 %v188, 127
  %v204 = vpop.permute.xlu0 %203
  %v205 = vsel %vm82, %v204, 0.0
  %v206 = vadd.s32 %v54, 2
  %vm207 = vcmp.ge.s32.totalorder %v206, 0
  %vm208 = vcmp.lt.s32.totalorder %v206, 16
  %vm209 = vmand %vm207, %vm208
  %vm210 = vmand %vm55, %vm209
  %211 = vrot.lane.b32.xlu0 %v188, 126
  %v212 = vpop.permute.xlu0 %211
  %v213 = vsel %vm210, 1, 0
  %vm214 = vcmp.eq.s32.totalorder %v213, 1
  %v215 = vsel %vm214, %v212, 0.0
  %v216 = vld [vmem:[%s4] sm:$0xff]
  %vm217 = vcmask 326656
  %v219 = vsel %vm217, %v216, 0
  %221 = vmatprep.subr.mxu0 0.0
  %222 = vmatpush1.msra.mxu0 %v198
  %223 = vmatprep.subr.mxu0 0.0
  %224 = vmatpush1.msra.mxu0 %v201
  %225 = vmatprep.subr.mxu0 0.0
  %226 = vmatpush1.msra.mxu0 %v202
  %227 = vmatprep.subr.mxu0 0.0
  %228 = vmatpush1.msra.mxu0 %v205
  %229 = vmatprep.subr.mxu0 0.0
  %230 = vmatpush1.msra.mxu0 %v215
  %231 = vmatprep.subr.mxu0 0.0
  %232 = vmatpush1.msra.mxu0 0.0
  %233 = vmatprep.subr.mxu0 0.0
  %234 = vmatpush1.msra.mxu0 0.0
  %235 = vmatprep.subr.mxu0 0.0
  %236 = vmatpush1.msra.mxu0 0.0
  %237 = vmatprep.subr.mxu0 0.0
  %238 = vmatpush1.msra.mxu0 0.0
  %239 = vmatprep.subr.mxu0 0.0
  %240 = vmatpush1.msra.mxu0 0.0
  %241 = vmatprep.subr.mxu0 0.0
  %242 = vmatpush1.msra.mxu0 0.0
  %243 = vmatprep.subr.mxu0 0.0
  %244 = vmatpush1.msra.mxu0 0.0
  %245 = vmatprep.subr.mxu0 0.0
  %246 = vmatpush1.msra.mxu0 0.0
  %247 = vmatprep.subr.mxu0 0.0
  %248 = vmatpush1.msra.mxu0 0.0
  %249 = vmatprep.subr.mxu0 0.0
  %250 = vmatpush1.msra.mxu0 0.0
  %251 = vmatprep.subr.mxu0 0.0
  %252 = vmatpush1.msra.mxu0 0.0
  %253 = vmatprep.subr.mxu0 0.0
  %254 = vmatpush1.msra.mxu0 0.0
  %255 = vmatprep.subr.mxu0 0.0
  %256 = vmatpush1.msra.mxu0 0.0
  %257 = vmatprep.subr.mxu0 0.0
  %258 = vmatpush1.msra.mxu0 0.0
  %259 = vmatprep.subr.mxu0 0.0
  %260 = vmatpush1.msra.mxu0 0.0
  %261 = vmatprep.subr.mxu0 0.0
  %262 = vmatpush1.msra.mxu0 0.0
  %263 = vmatprep.subr.mxu0 0.0
  %264 = vmatpush1.msra.mxu0 0.0
  %265 = vmatprep.subr.mxu0 0.0
  %266 = vmatpush1.msra.mxu0 0.0
  %267 = vmatprep.subr.mxu0 0.0
  %268 = vmatpush1.msra.mxu0 0.0
  %269 = vmatprep.subr.mxu0 0.0
  %270 = vmatpush1.msra.mxu0 0.0
  %271 = vmatprep.subr.mxu0 0.0
  %272 = vmatpush1.msra.mxu0 0.0
  %273 = vmatprep.subr.mxu0 0.0
  %274 = vmatpush1.msra.mxu0 0.0
  %275 = vmatprep.subr.mxu0 0.0
  %276 = vmatpush1.msra.mxu0 0.0
  %277 = vmatprep.subr.mxu0 0.0
  %278 = vmatpush1.msra.mxu0 0.0
  %279 = vmatprep.subr.mxu0 0.0
  %280 = vmatpush1.msra.mxu0 0.0
  %281 = vmatprep.subr.mxu0 0.0
  %282 = vmatpush1.msra.mxu0 0.0
  %283 = vmatprep.subr.mxu0 0.0
  %284 = vmatpush1.msra.mxu0 0.0
  %285 = vmatprep.mubr.f32.mxu0 0.0
  %286 = vmatmul.mubr.f32.gmra.mrb[0].mxu0 %v219
  %v287 = vpop.f32.mrb[0].mxu0
  %v288 = vadd.f32 0.0, %v287
  %v289 = vpop.f32.mrb[0].mxu0
  %290 = vdwg.mxu0
  %291 = vadd.xlane.f32.xlu0 %v288
  %v292 = vpop.xlane.xlu0 %291
  %v293 = vmul.f32 %v292, 0.03125
  %v294 = vmul.f32 %v288, %v288
  %295 = vadd.xlane.f32.xlu0 %v294
  %v296 = vpop.xlane.xlu0 %295
  %v297 = vmul.f32 %v296, 0.03125
  %v298 = vmul.f32 %v293, %v293
  %v299 = vsub.f32 %v297, %v298
  %v300 = vmax.f32 %v299, 0.0
  %v301 = vld [vmem:[%s5] sm:$0xff]
  %v302 = vadd.f32 %v300, 1e-05
  %v303 = vrsqrt.pop %v302
  %v304 = vmul.f32 %v301, %v303
  %v305 = vld [vmem:[%s6] sm:$0xff]
  %v306 = vmul.f32 %v293, %v304
  %v307 = vsub.f32 %v305, %v306
  %309 = vset.pattern.permute.xlu0 0
  %310 = vperm.xlu0 %309, %v304
  %v311 = vpop.permute.xlu0 %310
  %v313 = vmul.f32 %v288, %v311
  %315 = vset.pattern.permute.xlu0 0
  %316 = vperm.xlu0 %315, %v307
  %v317 = vpop.permute.xlu0 %316
  %v319 = vadd.f32 %v313, %v317
  %v320 = vmax.f32 %v319, 0.0
  %321 = vrot.lane.b32.xlu0 %v320, 1
  %v322 = vpop.permute.xlu0 %321
  %v323 = vsel %vm65, %v322, 0.0
  %v324 = vsel %vm72, %v320, 0.0
  %325 = vrot.lane.b32.xlu0 %v320, 127
  %v326 = vpop.permute.xlu0 %325
  %v327 = vsel %vm82, %v326, 0.0
  %v328 = vld [vmem:[%s7] sm:$0xff]
  %v330 = vsel %vm85, %v328, 0
  %332 = vmatprep.subr.mxu0 0.0
  %333 = vmatpush1.msra.mxu0 %v323
  %334 = vmatprep.subr.mxu0 0.0
  %335 = vmatpush1.msra.mxu0 %v324
  %336 = vmatprep.subr.mxu0 0.0
  %337 = vmatpush1.msra.mxu0 %v327
  %338 = vmatprep.subr.mxu0 0.0
  %339 = vmatpush1.msra.mxu0 0.0
  %340 = vmatprep.subr.mxu0 0.0
  %341 = vmatpush1.msra.mxu0 0.0
  %342 = vmatprep.subr.mxu0 0.0
  %343 = vmatpush1.msra.mxu0 0.0
  %344 = vmatprep.subr.mxu0 0.0
  %345 = vmatpush1.msra.mxu0 0.0
  %346 = vmatprep.subr.mxu0 0.0
  %347 = vmatpush1.msra.mxu0 0.0
  %348 = vmatprep.subr.mxu0 0.0
  %349 = vmatpush1.msra.mxu0 0.0
  %350 = vmatprep.subr.mxu0 0.0
  %351 = vmatpush1.msra.mxu0 0.0
  %352 = vmatprep.subr.mxu0 0.0
  %353 = vmatpush1.msra.mxu0 0.0
  %354 = vmatprep.subr.mxu0 0.0
  %355 = vmatpush1.msra.mxu0 0.0
  %356 = vmatprep.subr.mxu0 0.0
  %357 = vmatpush1.msra.mxu0 0.0
  %358 = vmatprep.subr.mxu0 0.0
  %359 = vmatpush1.msra.mxu0 0.0
  %360 = vmatprep.subr.mxu0 0.0
  %361 = vmatpush1.msra.mxu0 0.0
  %362 = vmatprep.subr.mxu0 0.0
  %363 = vmatpush1.msra.mxu0 0.0
  %364 = vmatprep.subr.mxu0 0.0
  %365 = vmatpush1.msra.mxu0 0.0
  %366 = vmatprep.subr.mxu0 0.0
  %367 = vmatpush1.msra.mxu0 0.0
  %368 = vmatprep.subr.mxu0 0.0
  %369 = vmatpush1.msra.mxu0 0.0
  %370 = vmatprep.subr.mxu0 0.0
  %371 = vmatpush1.msra.mxu0 0.0
  %372 = vmatprep.subr.mxu0 0.0
  %373 = vmatpush1.msra.mxu0 0.0
  %374 = vmatprep.subr.mxu0 0.0
  %375 = vmatpush1.msra.mxu0 0.0
  %376 = vmatprep.subr.mxu0 0.0
  %377 = vmatpush1.msra.mxu0 0.0
  %378 = vmatprep.subr.mxu0 0.0
  %379 = vmatpush1.msra.mxu0 0.0
  %380 = vmatprep.subr.mxu0 0.0
  %381 = vmatpush1.msra.mxu0 0.0
  %382 = vmatprep.subr.mxu0 0.0
  %383 = vmatpush1.msra.mxu0 0.0
  %384 = vmatprep.subr.mxu0 0.0
  %385 = vmatpush1.msra.mxu0 0.0
  %386 = vmatprep.subr.mxu0 0.0
  %387 = vmatpush1.msra.mxu0 0.0
  %388 = vmatprep.subr.mxu0 0.0
  %389 = vmatpush1.msra.mxu0 0.0
  %390 = vmatprep.subr.mxu0 0.0
  %391 = vmatpush1.msra.mxu0 0.0
  %392 = vmatprep.subr.mxu0 0.0
  %393 = vmatpush1.msra.mxu0 0.0
  %394 = vmatprep.subr.mxu0 0.0
  %395 = vmatpush1.msra.mxu0 0.0
  %396 = vmatprep.mubr.f32.mxu0 0.0
  %397 = vmatmul.mubr.f32.gmra.mrb[0].mxu0 %v330
  %v398 = vpop.f32.mrb[0].mxu0
  %v399 = vadd.f32 0.0, %v398
  %v400 = vpop.f32.mrb[0].mxu0
  %401 = vdwg.mxu0
  %402 = vadd.xlane.f32.xlu0 %v399
  %v403 = vpop.xlane.xlu0 %402
  %v404 = vmul.f32 %v403, 0.03125
  %v405 = vmul.f32 %v399, %v399
  %406 = vadd.xlane.f32.xlu0 %v405
  %v407 = vpop.xlane.xlu0 %406
  %v408 = vmul.f32 %v407, 0.03125
  %v409 = vmul.f32 %v404, %v404
  %v410 = vsub.f32 %v408, %v409
  %v411 = vmax.f32 %v410, 0.0
  %v412 = vld [vmem:[%s8] sm:$0xff]
  %v413 = vadd.f32 %v411, 1e-05
  %v414 = vrsqrt.pop %v413
  %v415 = vmul.f32 %v412, %v414
  %v416 = vld [vmem:[%s9] sm:$0xff]
  %v417 = vmul.f32 %v404, %v415
  %v418 = vsub.f32 %v416, %v417
  %420 = vset.pattern.permute.xlu0 0
  %421 = vperm.xlu0 %420, %v415
  %v422 = vpop.permute.xlu0 %421
  %v424 = vmul.f32 %v399, %v422
  %426 = vset.pattern.permute.xlu0 0
  %427 = vperm.xlu0 %426, %v418
  %v428 = vpop.permute.xlu0 %427
  %v430 = vadd.f32 %v424, %v428
  %431 = vadd.xlane.f32.xlu0 %v56
  %v432 = vpop.xlane.xlu0 %431
  %v433 = vmul.f32 %v432, 0.03125
  %v434 = vmul.f32 %v56, %v56
  %435 = vadd.xlane.f32.xlu0 %v434
  %v436 = vpop.xlane.xlu0 %435
  %v437 = vmul.f32 %v436, 0.03125
  %v438 = vmul.f32 %v433, %v433
  %v439 = vsub.f32 %v437, %v438
  %v440 = vmax.f32 %v439, 0.0
  %v441 = vld [vmem:[%s10] sm:$0xff]
  %v442 = vadd.f32 %v440, 1e-05
  %v443 = vrsqrt.pop %v442
  %v444 = vmul.f32 %v441, %v443
  %v445 = vld [vmem:[%s11] sm:$0xff]
  %v446 = vmul.f32 %v433, %v444
  %v447 = vsub.f32 %v445, %v446
  %449 = vset.pattern.permute.xlu0 0
  %450 = vperm.xlu0 %449, %v444
  %v451 = vpop.permute.xlu0 %450
  %v453 = vmul.f32 %v56, %v451
  %455 = vset.pattern.permute.xlu0 0
  %456 = vperm.xlu0 %455, %v447
  %v457 = vpop.permute.xlu0 %456
  %v459 = vadd.f32 %v453, %v457
  %v460 = vadd.f32 %v430, %v459
  %v461 = vmax.f32 %v460, 0.0
  %v462 = vsel %vm55, 1, 0
  %vm463 = vcmp.eq.s32.totalorder %v462, 1
  %v464 = vsel %vm463, %v461, 0.0
  %465 = vst [vmem:[%s12] sm:$0xff] %v464
  // Predicated region
  $region50: #{resnet_forward.4} parent=0 // pred_check
    _
  $region51: #{resnet_forward.4} parent=0 // pred_check_branch
    %467 = sbr.rel (0) target = $region53
  $region52: #{resnet_forward.4} parent=0 // pred_region
    _
  $region53: #{resnet_forward.4} parent=0 // pred_fallthru
    _
  // Predicated region
  $region54: #{resnet_forward.4} parent=0 // pred_check
    _
  $region55: #{resnet_forward.4} parent=0 // pred_check_branch
    %469 = sbr.rel (0) target = $region57
  $region56: #{resnet_forward.4} parent=0 // pred_region
    _
  $region57: #{resnet_forward.4} parent=0 // pred_fallthru
    _

// kernel: resnet_forward.3
$region0: #{resnet_forward.3}
  #allocation0 [shape = 'u32[]', space=smem, size = 0x4, offset = 0x4, fixed_abs, tag = 'smem constant byte address 0x4 - core index']
  #allocation1 [shape = 'u32[144,128]{1,0:T(1,128)}', space=vmem, size = 0x12000, scoped, tag = 'internal scratch']
  %s0 = inlined_call_operand.vmem [shape: f32[1,128], index: 0, kind: input, shape index: {}]
  %s1 = inlined_call_operand.vmem [shape: f32[8,3], index: 1, kind: input, shape index: {}]
  %s2 = inlined_call_operand.vmem [shape: f32[8,1], index: 2, kind: input, shape index: {}]
  %s3 = inlined_call_operand.vmem [shape: f32[8,1], index: 3, kind: input, shape index: {}]
  %s4 = inlined_call_operand.vmem [shape: f32[8,40], index: 4, kind: input, shape index: {}]
  %s5 = inlined_call_operand.vmem [shape: f32[8,1], index: 5, kind: input, shape index: {}]
  %s6 = inlined_call_operand.vmem [shape: f32[8,1], index: 6, kind: input, shape index: {}]
  %s7 = inlined_call_operand.vmem [shape: f32[8,24], index: 7, kind: input, shape index: {}]
  %s8 = inlined_call_operand.vmem [shape: f32[8,1], index: 8, kind: input, shape index: {}]
  %s9 = inlined_call_operand.vmem [shape: f32[8,1], index: 9, kind: input, shape index: {}]
  %s10 = inlined_call_operand.vmem [shape: f32[8,1], index: 10, kind: input, shape index: {}]
  %s11 = inlined_call_operand.vmem [shape: f32[8,1], index: 11, kind: input, shape index: {}]
  %s12 = inlined_call_operand.vmem [shape: f32[8,1], index: 12, kind: input, shape index: {}]
  %s13 = inlined_call_operand.vmem [shape: f32[8,128], index: 13, kind: output, shape index: {}]
  %s14 = sld [smem:[#allocation0]]
  $region62: #{resnet_forward.3} parent=0
    _
  %s16 = ssub.s32 1, %s14
  %s17 = scalar_select 0, %s16, %s14
  // Predicated region
  $region2: #{resnet_forward.3} parent=0 // pred_check
    _
  $region3: #{resnet_forward.3} parent=0 // pred_check_branch
    %19 = sbr.rel (0) target = $region5
  $region4: #{resnet_forward.3} parent=0 // pred_region
    _
  $region5: #{resnet_forward.3} parent=0 // pred_fallthru
    _
  // Predicated region
  $region6: #{resnet_forward.3} parent=0 // pred_check
    _
  $region7: #{resnet_forward.3} parent=0 // pred_check_branch
    %21 = sbr.rel (0) target = $region9
  $region8: #{resnet_forward.3} parent=0 // pred_region
    _
  $region9: #{resnet_forward.3} parent=0 // pred_fallthru
    _
  // Predicated region
  $region10: #{resnet_forward.3} parent=0 // pred_check
    _
  $region11: #{resnet_forward.3} parent=0 // pred_check_branch
    %23 = sbr.rel (0) target = $region13
  $region12: #{resnet_forward.3} parent=0 // pred_region
    _
  $region13: #{resnet_forward.3} parent=0 // pred_fallthru
    _
  // Predicated region
  $region14: #{resnet_forward.3} parent=0 // pred_check
    _
  $region15: #{resnet_forward.3} parent=0 // pred_check_branch
    %25 = sbr.rel (0) target = $region17
  $region16: #{resnet_forward.3} parent=0 // pred_region
    _
  $region17: #{resnet_forward.3} parent=0 // pred_fallthru
    _
  // Predicated region
  $region18: #{resnet_forward.3} parent=0 // pred_check
    _
  $region19: #{resnet_forward.3} parent=0 // pred_check_branch
    %27 = sbr.rel (0) target = $region21
  $region20: #{resnet_forward.3} parent=0 // pred_region
    _
  $region21: #{resnet_forward.3} parent=0 // pred_fallthru
    _
  // Predicated region
  $region22: #{resnet_forward.3} parent=0 // pred_check
    _
  $region23: #{resnet_forward.3} parent=0 // pred_check_branch
    %29 = sbr.rel (0) target = $region25
  $region24: #{resnet_forward.3} parent=0 // pred_region
    _
  $region25: #{resnet_forward.3} parent=0 // pred_fallthru
    _
  // Predicated region
  $region26: #{resnet_forward.3} parent=0 // pred_check
    _
  $region27: #{resnet_forward.3} parent=0 // pred_check_branch
    %31 = sbr.rel (0) target = $region29
  $region28: #{resnet_forward.3} parent=0 // pred_region
    _
  $region29: #{resnet_forward.3} parent=0 // pred_fallthru
    _
  // Predicated region
  $region30: #{resnet_forward.3} parent=0 // pred_check
    _
  $region31: #{resnet_forward.3} parent=0 // pred_check_branch
    %33 = sbr.rel (0) target = $region33
  $region32: #{resnet_forward.3} parent=0 // pred_region
    _
  $region33: #{resnet_forward.3} parent=0 // pred_fallthru
    _
  // Predicated region
  $region34: #{resnet_forward.3} parent=0 // pred_check
    _
  $region35: #{resnet_forward.3} parent=0 // pred_check_branch
    %35 = sbr.rel (0) target = $region37
  $region36: #{resnet_forward.3} parent=0 // pred_region
    _
  $region37: #{resnet_forward.3} parent=0 // pred_fallthru
    _
  // Predicated region
  $region38: #{resnet_forward.3} parent=0 // pred_check
    _
  $region39: #{resnet_forward.3} parent=0 // pred_check_branch
    %37 = sbr.rel (0) target = $region41
  $region40: #{resnet_forward.3} parent=0 // pred_region
    _
  $region41: #{resnet_forward.3} parent=0 // pred_fallthru
    _
  // Predicated region
  $region42: #{resnet_forward.3} parent=0 // pred_check
    _
  $region43: #{resnet_forward.3} parent=0 // pred_check_branch
    %39 = sbr.rel (0) target = $region45
  $region44: #{resnet_forward.3} parent=0 // pred_region
    _
  $region45: #{resnet_forward.3} parent=0 // pred_fallthru
    _
  // Predicated region
  $region46: #{resnet_forward.3} parent=0 // pred_check
    _
  $region47: #{resnet_forward.3} parent=0 // pred_check_branch
    %41 = sbr.rel (0) target = $region49
  $region48: #{resnet_forward.3} parent=0 // pred_region
    _
  $region49: #{resnet_forward.3} parent=0 // pred_fallthru
    _
  // Predicated region
  $region50: #{resnet_forward.3} parent=0 // pred_check
    _
  $region51: #{resnet_forward.3} parent=0 // pred_check_branch
    %43 = sbr.rel (0) target = $region53
  $region52: #{resnet_forward.3} parent=0 // pred_region
    _
  $region53: #{resnet_forward.3} parent=0 // pred_fallthru
    _
  %v44 = vlaneseq
  %v45 = vand.u32 %v44, 127
  %vm46 = vcmp.lt.s32.totalorder %v45, 0
  %v47 = vsub.s32 0, %v45
  %v48 = vsel %vm46, %v47, %v45
  %v49 = vshrl.u32 %v48, 4
  %v50 = vand.u32 %v48, 15
  %v51 = vsub.s32 0, %v50
  %v52 = vsel %vm46, %v51, %v50
  %vm53 = vcmp.ne.s32.totalorder %v52, 0
  %vm54 = vcmp.lt.s32.totalorder %v52, 0
  %vm55 = vmand %vm54, %vm53
  %v56 = vadd.s32 %v52, 16
  %v57 = vsel %vm55, %v56, %v52
  %vm58 = vcmp.lt.s32.totalorder %v45, 32
  %v59 = vld [vmem:[%s0] sm:$0x1]
  %v60 = vadd.s32 %v57, 4294967295
  %vm61 = vcmp.ge.s32.totalorder %v60, 0
  %vm62 = vcmp.lt.s32.totalorder %v60, 16
  %vm63 = vmand %vm61, %vm62
  %vm64 = vmand %vm58, %vm63
  %65 = vrot.lane.b32.xlu0 %v59, 1
  %v66 = vpop.permute.xlu0 %65
  %v67 = vsel %vm64, %v66, 0.0
  %vm68 = vcmp.ge.s32.totalorder %v57, 0
  %vm69 = vcmp.lt.s32.totalorder %v57, 16
  %vm70 = vmand %vm68, %vm69
  %vm71 = vmand %vm58, %vm70
  %v72 = vsel %vm71, %v59, 0.0
  %v73 = vadd.s32 %v57, 1
  %vm74 = vcmp.ge.s32.totalorder %v73, 0
  %vm75 = vcmp.lt.s32.totalorder %v73, 16
  %vm76 = vmand %vm74, %vm75
  %vm77 = vmand %vm58, %vm76
  %78 = vrot.lane.b32.xlu0 %v59, 127
  %v79 = vpop.permute.xlu0 %78
  %v80 = vsel %vm77, %v79, 0.0
  %v81 = vld [vmem:[%s1] sm:$0xff]
  %83 = vset.pattern.permute.xlu0 0
  %84 = vperm.xlu0 %83, %v81
  %v85 = vpop.permute.xlu0 %84
  %v87 = vlaneseq
  %v88 = vshrl.u32 %v87, 7
  %v89 = vsub.s32 0, %v88
  %v90 = vrot.slane %v67, %v89
  %v91 = vmul.f32 %v85, %v90
  %92 = vset.pattern.permute.xlu0 1
  %93 = vperm.xlu0 %92, %v81
  %v94 = vpop.permute.xlu0 %93
  %v96 = vlaneseq
  %v97 = vshrl.u32 %v96, 7
  %v98 = vsub.s32 0, %v97
  %v99 = vrot.slane %v72, %v98
  %v100 = vmul.f32 %v94, %v99
  %v101 = vadd.f32 %v91, %v100
  %102 = vset.pattern.permute.xlu0 2
  %103 = vperm.xlu0 %102, %v81
  %v104 = vpop.permute.xlu0 %103
  %v106 = vlaneseq
  %v107 = vshrl.u32 %v106, 7
  %v108 = vsub.s32 0, %v107
  %v109 = vrot.slane %v80, %v108
  %v110 = vmul.f32 %v104, %v109
  %v111 = vadd.f32 %v101, %v110
  %112 = vadd.xlane.f32.xlu0 %v111
  %v113 = vpop.xlane.xlu0 %112
  %v114 = vmul.f32 %v113, 0.03125
  %v115 = vmul.f32 %v111, %v111
  %116 = vadd.xlane.f32.xlu0 %v115
  %v117 = vpop.xlane.xlu0 %116
  %v118 = vmul.f32 %v117, 0.03125
  %v119 = vmul.f32 %v114, %v114
  %v120 = vsub.f32 %v118, %v119
  %v121 = vmax.f32 %v120, 0.0
  %v122 = vld [vmem:[%s2] sm:$0xff]
  %v123 = vadd.f32 %v121, 1e-05
  %v124 = vrsqrt.pop %v123
  %v125 = vmul.f32 %v122, %v124
  %v126 = vld [vmem:[%s3] sm:$0xff]
  %v127 = vmul.f32 %v114, %v125
  %v128 = vsub.f32 %v126, %v127
  %130 = vset.pattern.permute.xlu0 0
  %131 = vperm.xlu0 %130, %v125
  %v132 = vpop.permute.xlu0 %131
  %v134 = vmul.f32 %v111, %v132
  %136 = vset.pattern.permute.xlu0 0
  %137 = vperm.xlu0 %136, %v128
  %v138 = vpop.permute.xlu0 %137
  %v140 = vadd.f32 %v134, %v138
  %v141 = vmax.f32 %v140, 0.0
  %v142 = vadd.s32 %v57, 4294967294
  %vm143 = vcmp.ge.s32.totalorder %v142, 0
  %vm144 = vcmp.lt.s32.totalorder %v142, 16
  %vm145 = vmand %vm143, %vm144
  %vm146 = vmand %vm58, %vm145
  %147 = vrot.lane.b32.xlu0 %v141, 2
  %v148 = vpop.permute.xlu0 %147
  %v149 = vsel %vm146, 1, 0
  %vm150 = vcmp.eq.s32.totalorder %v149, 1
  %v151 = vsel %vm150, %v148, 0.0
  %152 = vrot.lane.b32.xlu0 %v141, 1
  %v153 = vpop.permute.xlu0 %152
  %v154 = vsel %vm64, 1, 0
  %vm155 = vcmp.eq.s32.totalorder %v154, 1
  %v156 = vsel %vm155, %v153, 0.0
  %v157 = vsel %vm71, 1, 0
  %vm158 = vcmp.eq.s32.totalorder %v157, 1
  %v159 = vsel %vm158, %v141, 0.0
  %160 = vrot.lane.b32.xlu0 %v141, 127
  %v161 = vpop.permute.xlu0 %160
  %v162 = vsel %vm77, 1, 0
  %vm163 = vcmp.eq.s32.totalorder %v162, 1
  %v164 = vsel %vm163, %v161, 0.0
  %v165 = vadd.s32 %v57, 2
  %vm166 = vcmp.ge.s32.totalorder %v165, 0
  %vm167 = vcmp.lt.s32.totalorder %v165, 16
  %vm168 = vmand %vm166, %vm167
  %vm169 = vmand %vm58, %vm168
  %170 = vrot.lane.b32.xlu0 %v141, 126
  %v171 = vpop.permute.xlu0 %170
  %v172 = vsel %vm169, 1, 0
  %vm173 = vcmp.eq.s32.totalorder %v172, 1
  %v174 = vsel %vm173, %v171, 0.0
  %v175 = vld [vmem:[%s4] sm:$0xff]
  %vm176 = vcmask 326656
  %v178 = vsel %vm176, %v175, 0
  %180 = vmatprep.subr.mxu0 0.0
  %181 = vmatpush1.msra.mxu0 %v151
  %182 = vmatprep.subr.mxu0 0.0
  %183 = vmatpush1.msra.mxu0 %v156
  %184 = vmatprep.subr.mxu0 0.0
  %185 = vmatpush1.msra.mxu0 %v159
  %186 = vmatprep.subr.mxu0 0.0
  %187 = vmatpush1.msra.mxu0 %v164
  %188 = vmatprep.subr.mxu0 0.0
  %189 = vmatpush1.msra.mxu0 %v174
  %190 = vmatprep.subr.mxu0 0.0
  %191 = vmatpush1.msra.mxu0 0.0
  %192 = vmatprep.subr.mxu0 0.0
  %193 = vmatpush1.msra.mxu0 0.0
  %194 = vmatprep.subr.mxu0 0.0
  %195 = vmatpush1.msra.mxu0 0.0
  %196 = vmatprep.subr.mxu0 0.0
  %197 = vmatpush1.msra.mxu0 0.0
  %198 = vmatprep.subr.mxu0 0.0
  %199 = vmatpush1.msra.mxu0 0.0
  %200 = vmatprep.subr.mxu0 0.0
  %201 = vmatpush1.msra.mxu0 0.0
  %202 = vmatprep.subr.mxu0 0.0
  %203 = vmatpush1.msra.mxu0 0.0
  %204 = vmatprep.subr.mxu0 0.0
  %205 = vmatpush1.msra.mxu0 0.0
  %206 = vmatprep.subr.mxu0 0.0
  %207 = vmatpush1.msra.mxu0 0.0
  %208 = vmatprep.subr.mxu0 0.0
  %209 = vmatpush1.msra.mxu0 0.0
  %210 = vmatprep.subr.mxu0 0.0
  %211 = vmatpush1.msra.mxu0 0.0
  %212 = vmatprep.subr.mxu0 0.0
  %213 = vmatpush1.msra.mxu0 0.0
  %214 = vmatprep.subr.mxu0 0.0
  %215 = vmatpush1.msra.mxu0 0.0
  %216 = vmatprep.subr.mxu0 0.0
  %217 = vmatpush1.msra.mxu0 0.0
  %218 = vmatprep.subr.mxu0 0.0
  %219 = vmatpush1.msra.mxu0 0.0
  %220 = vmatprep.subr.mxu0 0.0
  %221 = vmatpush1.msra.mxu0 0.0
  %222 = vmatprep.subr.mxu0 0.0
  %223 = vmatpush1.msra.mxu0 0.0
  %224 = vmatprep.subr.mxu0 0.0
  %225 = vmatpush1.msra.mxu0 0.0
  %226 = vmatprep.subr.mxu0 0.0
  %227 = vmatpush1.msra.mxu0 0.0
  %228 = vmatprep.subr.mxu0 0.0
  %229 = vmatpush1.msra.mxu0 0.0
  %230 = vmatprep.subr.mxu0 0.0
  %231 = vmatpush1.msra.mxu0 0.0
  %232 = vmatprep.subr.mxu0 0.0
  %233 = vmatpush1.msra.mxu0 0.0
  %234 = vmatprep.subr.mxu0 0.0
  %235 = vmatpush1.msra.mxu0 0.0
  %236 = vmatprep.subr.mxu0 0.0
  %237 = vmatpush1.msra.mxu0 0.0
  %238 = vmatprep.subr.mxu0 0.0
  %239 = vmatpush1.msra.mxu0 0.0
  %240 = vmatprep.subr.mxu0 0.0
  %241 = vmatpush1.msra.mxu0 0.0
  %242 = vmatprep.subr.mxu0 0.0
  %243 = vmatpush1.msra.mxu0 0.0
  %244 = vmatprep.mubr.f32.mxu0 0.0
  %245 = vmatmul.mubr.f32.gmra.mrb[0].mxu0 %v178
  %v246 = vpop.f32.mrb[0].mxu0
  %v247 = vadd.f32 0.0, %v246
  %v248 = vpop.f32.mrb[0].mxu0
  %249 = vdwg.mxu0
  %250 = vadd.xlane.f32.xlu0 %v247
  %v251 = vpop.xlane.xlu0 %250
  %v252 = vmul.f32 %v251, 0.03125
  %v253 = vmul.f32 %v247, %v247
  %254 = vadd.xlane.f32.xlu0 %v253
  %v255 = vpop.xlane.xlu0 %254
  %v256 = vmul.f32 %v255, 0.03125
  %v257 = vmul.f32 %v252, %v252
  %v258 = vsub.f32 %v256, %v257
  %v259 = vmax.f32 %v258, 0.0
  %v260 = vld [vmem:[%s5] sm:$0xff]
  %v261 = vadd.f32 %v259, 1e-05
  %v262 = vrsqrt.pop %v261
  %v263 = vmul.f32 %v260, %v262
  %v264 = vld [vmem:[%s6] sm:$0xff]
  %v265 = vmul.f32 %v252, %v263
  %v266 = vsub.f32 %v264, %v265
  %268 = vset.pattern.permute.xlu0 0
  %269 = vperm.xlu0 %268, %v263
  %v270 = vpop.permute.xlu0 %269
  %v272 = vmul.f32 %v247, %v270
  %274 = vset.pattern.permute.xlu0 0
  %275 = vperm.xlu0 %274, %v266
  %v276 = vpop.permute.xlu0 %275
  %v278 = vadd.f32 %v272, %v276
  %v279 = vmax.f32 %v278, 0.0
  %280 = vrot.lane.b32.xlu0 %v279, 1
  %v281 = vpop.permute.xlu0 %280
  %v282 = vsel %vm155, %v281, 0.0
  %v283 = vsel %vm158, %v279, 0.0
  %284 = vrot.lane.b32.xlu0 %v279, 127
  %v285 = vpop.permute.xlu0 %284
  %v286 = vsel %vm163, %v285, 0.0
  %v287 = vld [vmem:[%s7] sm:$0xff]
  %vm288 = vcmask 195584
  %v290 = vsel %vm288, %v287, 0
  %292 = vmatprep.subr.mxu0 0.0
  %293 = vmatpush1.msra.mxu0 %v282
  %294 = vmatprep.subr.mxu0 0.0
  %295 = vmatpush1.msra.mxu0 %v283
  %296 = vmatprep.subr.mxu0 0.0
  %297 = vmatpush1.msra.mxu0 %v286
  %298 = vmatprep.subr.mxu0 0.0
  %299 = vmatpush1.msra.mxu0 0.0
  %300 = vmatprep.subr.mxu0 0.0
  %301 = vmatpush1.msra.mxu0 0.0
  %302 = vmatprep.subr.mxu0 0.0
  %303 = vmatpush1.msra.mxu0 0.0
  %304 = vmatprep.subr.mxu0 0.0
  %305 = vmatpush1.msra.mxu0 0.0
  %306 = vmatprep.subr.mxu0 0.0
  %307 = vmatpush1.msra.mxu0 0.0
  %308 = vmatprep.subr.mxu0 0.0
  %309 = vmatpush1.msra.mxu0 0.0
  %310 = vmatprep.subr.mxu0 0.0
  %311 = vmatpush1.msra.mxu0 0.0
  %312 = vmatprep.subr.mxu0 0.0
  %313 = vmatpush1.msra.mxu0 0.0
  %314 = vmatprep.subr.mxu0 0.0
  %315 = vmatpush1.msra.mxu0 0.0
  %316 = vmatprep.subr.mxu0 0.0
  %317 = vmatpush1.msra.mxu0 0.0
  %318 = vmatprep.subr.mxu0 0.0
  %319 = vmatpush1.msra.mxu0 0.0
  %320 = vmatprep.subr.mxu0 0.0
  %321 = vmatpush1.msra.mxu0 0.0
  %322 = vmatprep.subr.mxu0 0.0
  %323 = vmatpush1.msra.mxu0 0.0
  %324 = vmatprep.subr.mxu0 0.0
  %325 = vmatpush1.msra.mxu0 0.0
  %326 = vmatprep.subr.mxu0 0.0
  %327 = vmatpush1.msra.mxu0 0.0
  %328 = vmatprep.subr.mxu0 0.0
  %329 = vmatpush1.msra.mxu0 0.0
  %330 = vmatprep.subr.mxu0 0.0
  %331 = vmatpush1.msra.mxu0 0.0
  %332 = vmatprep.subr.mxu0 0.0
  %333 = vmatpush1.msra.mxu0 0.0
  %334 = vmatprep.subr.mxu0 0.0
  %335 = vmatpush1.msra.mxu0 0.0
  %336 = vmatprep.subr.mxu0 0.0
  %337 = vmatpush1.msra.mxu0 0.0
  %338 = vmatprep.subr.mxu0 0.0
  %339 = vmatpush1.msra.mxu0 0.0
  %340 = vmatprep.subr.mxu0 0.0
  %341 = vmatpush1.msra.mxu0 0.0
  %342 = vmatprep.subr.mxu0 0.0
  %343 = vmatpush1.msra.mxu0 0.0
  %344 = vmatprep.subr.mxu0 0.0
  %345 = vmatpush1.msra.mxu0 0.0
  %346 = vmatprep.subr.mxu0 0.0
  %347 = vmatpush1.msra.mxu0 0.0
  %348 = vmatprep.subr.mxu0 0.0
  %349 = vmatpush1.msra.mxu0 0.0
  %350 = vmatprep.subr.mxu0 0.0
  %351 = vmatpush1.msra.mxu0 0.0
  %352 = vmatprep.subr.mxu0 0.0
  %353 = vmatpush1.msra.mxu0 0.0
  %354 = vmatprep.subr.mxu0 0.0
  %355 = vmatpush1.msra.mxu0 0.0
  %356 = vmatprep.mubr.f32.mxu0 0.0
  %357 = vmatmul.mubr.f32.gmra.mrb[0].mxu0 %v290
  %v358 = vpop.f32.mrb[0].mxu0
  %v359 = vadd.f32 0.0, %v358
  %v360 = vpop.f32.mrb[0].mxu0
  %361 = vdwg.mxu0
  %362 = vadd.xlane.f32.xlu0 %v359
  %v363 = vpop.xlane.xlu0 %362
  %v364 = vmul.f32 %v363, 0.03125
  %v365 = vmul.f32 %v359, %v359
  %366 = vadd.xlane.f32.xlu0 %v365
  %v367 = vpop.xlane.xlu0 %366
  %v368 = vmul.f32 %v367, 0.03125
  %v369 = vmul.f32 %v364, %v364
  %v370 = vsub.f32 %v368, %v369
  %v371 = vmax.f32 %v370, 0.0
  %v372 = vld [vmem:[%s8] sm:$0xff]
  %v373 = vadd.f32 %v371, 1e-05
  %v374 = vrsqrt.pop %v373
  %v375 = vmul.f32 %v372, %v374
  %v376 = vld [vmem:[%s9] sm:$0xff]
  %v377 = vmul.f32 %v364, %v375
  %v378 = vsub.f32 %v376, %v377
  %380 = vset.pattern.permute.xlu0 0
  %381 = vperm.xlu0 %380, %v375
  %v382 = vpop.permute.xlu0 %381
  %v384 = vmul.f32 %v359, %v382
  %386 = vset.pattern.permute.xlu0 0
  %387 = vperm.xlu0 %386, %v378
  %v388 = vpop.permute.xlu0 %387
  %v390 = vadd.f32 %v384, %v388
  %v391 = vld [vmem:[%s10] sm:$0xff]
  %393 = vset.pattern.permute.xlu0 0
  %394 = vperm.xlu0 %393, %v391
  %v395 = vpop.permute.xlu0 %394
  %v398 = vlaneseq
  %v399 = vshrl.u32 %v398, 7
  %v400 = vsub.s32 0, %v399
  %v401 = vrot.slane %v59, %v400
  %v403 = vmul.f32 %v395, %v401
  %404 = vadd.xlane.f32.xlu0 %v403
  %v405 = vpop.xlane.xlu0 %404
  %v406 = vmul.f32 %v405, 0.03125
  %v407 = vmul.f32 %v403, %v403
  %408 = vadd.xlane.f32.xlu0 %v407
  %v409 = vpop.xlane.xlu0 %408
  %v410 = vmul.f32 %v409, 0.03125
  %v411 = vmul.f32 %v406, %v406
  %v412 = vsub.f32 %v410, %v411
  %v413 = vmax.f32 %v412, 0.0
  %v414 = vld [vmem:[%s11] sm:$0xff]
  %v415 = vadd.f32 %v413, 1e-05
  %v416 = vrsqrt.pop %v415
  %v417 = vmul.f32 %v414, %v416
  %v418 = vld [vmem:[%s12] sm:$0xff]
  %v419 = vmul.f32 %v406, %v417
  %v420 = vsub.f32 %v418, %v419
  %422 = vset.pattern.permute.xlu0 0
  %423 = vperm.xlu0 %422, %v417
  %v424 = vpop.permute.xlu0 %423
  %v426 = vmul.f32 %v403, %v424
  %428 = vset.pattern.permute.xlu0 0
  %429 = vperm.xlu0 %428, %v420
  %v430 = vpop.permute.xlu0 %429
  %v432 = vadd.f32 %v426, %v430
  %v433 = vadd.f32 %v390, %v432
  %v434 = vmax.f32 %v433, 0.0
  %v435 = vsel %vm58, 1, 0
  %vm436 = vcmp.eq.s32.totalorder %v435, 1
  %v437 = vsel %vm436, %v434, 0.0
  %438 = vst [vmem:[%s13] sm:$0xff] %v437
  // Predicated region
  $region54: #{resnet_forward.3} parent=0 // pred_check
    _
  $region55: #{resnet_forward.3} parent=0 // pred_check_branch
    %440 = sbr.rel (0) target = $region57
  $region56: #{resnet_forward.3} parent=0 // pred_region
    _
  $region57: #{resnet_forward.3} parent=0 // pred_fallthru
    _
  // Predicated region
  $region58: #{resnet_forward.3} parent=0 // pred_check
    _
  $region59: #{resnet_forward.3} parent=0 // pred_check_branch
    %442 = sbr.rel (0) target = $region61
  $region60: #{resnet_forward.3} parent=0 // pred_region
    _
  $region61: #{resnet_forward.3} parent=0 // pred_fallthru
    _

// kernel: resnet_forward.5
$region0: #{resnet_forward.5}
  #allocation0 [shape = 'u32[]', space=smem, size = 0x4, offset = 0x4, fixed_abs, tag = 'smem constant byte address 0x4 - core index']
  #allocation1 [shape = 'u32[144,128]{1,0:T(1,128)}', space=vmem, size = 0x12000, scoped, tag = 'internal scratch']
  #allocation2 [shape = 'f32[1,1]{1,0:T(1,128)S(1)}', space=vmem, size = 0x200, scoped, tag = 'scoped memory for resnet_forward.5']
  %s0 = inlined_call_operand.vmem [shape: f32[8,128], index: 0, kind: input, shape index: {}]
  %s1 = inlined_call_operand.vmem [shape: f32[16,24], index: 1, kind: input, shape index: {}]
  %s2 = inlined_call_operand.vmem [shape: f32[16,1], index: 2, kind: input, shape index: {}]
  %s3 = inlined_call_operand.vmem [shape: f32[16,1], index: 3, kind: input, shape index: {}]
  %s4 = inlined_call_operand.vmem [shape: f32[16,80], index: 4, kind: input, shape index: {}]
  %s5 = inlined_call_operand.vmem [shape: f32[16,1], index: 5, kind: input, shape index: {}]
  %s6 = inlined_call_operand.vmem [shape: f32[16,1], index: 6, kind: input, shape index: {}]
  %s7 = inlined_call_operand.vmem [shape: f32[16,48], index: 7, kind: input, shape index: {}]
  %s8 = inlined_call_operand.vmem [shape: f32[16,1], index: 8, kind: input, shape index: {}]
  %s9 = inlined_call_operand.vmem [shape: f32[16,1], index: 9, kind: input, shape index: {}]
  %s10 = inlined_call_operand.vmem [shape: f32[16,8], index: 10, kind: input, shape index: {}]
  %s11 = inlined_call_operand.vmem [shape: f32[16,1], index: 11, kind: input, shape index: {}]
  %s12 = inlined_call_operand.vmem [shape: f32[16,1], index: 12, kind: input, shape index: {}]
  %s13 = inlined_call_operand.vmem [shape: f32[128,2], index: 13, kind: input, shape index: {}]
  %s14 = inlined_call_operand.vmem [shape: f32[1,16], index: 14, kind: input, shape index: {}]
  %s15 = inlined_call_operand.<no memory space> [shape: f32[1,1], index: 15, kind: input, shape index: {}]
  %s16 = inlined_call_operand.hbm [shape: f32[1,2], index: 16, kind: output, shape index: {}]
  %s17 = sld [smem:[#allocation0]]
  $region74: #{resnet_forward.5} parent=0
    _
  %s19 = ssub.s32 1, %s17
  %s20 = scalar_select 0, %s19, %s17
  %v21 = vstv %s15
  %22 = vst [vmem:[#allocation2] sm:$0x1] %v21
  $region1: #{resnet_forward.5} parent=0
    #allocation3 [shape = 'u8[512]{0}', space=vmem, size = 0x400, scoped, tag = 'output window, operand 0, single buffered']
    #allocation4 [shape = 's32[1]{0}', space=sflag, size = 0x4, scoped, tag = 'scoped memory for resnet_forward.5']
    %23 = vsyncpa [#allocation4], 0
    // Predicated region
    $region2: #{resnet_forward.5} parent=1 // pred_check
      _
    $region3: #{resnet_forward.5} parent=1 // pred_check_branch
      %25 = sbr.rel (0) target = $region5
    $region4: #{resnet_forward.5} parent=1 // pred_region
      _
    $region5: #{resnet_forward.5} parent=1 // pred_fallthru
      _
    // Predicated region
    $region6: #{resnet_forward.5} parent=1 // pred_check
      _
    $region7: #{resnet_forward.5} parent=1 // pred_check_branch
      %27 = sbr.rel (0) target = $region9
    $region8: #{resnet_forward.5} parent=1 // pred_region
      _
    $region9: #{resnet_forward.5} parent=1 // pred_fallthru
      _
    // Predicated region
    $region10: #{resnet_forward.5} parent=1 // pred_check
      _
    $region11: #{resnet_forward.5} parent=1 // pred_check_branch
      %29 = sbr.rel (0) target = $region13
    $region12: #{resnet_forward.5} parent=1 // pred_region
      _
    $region13: #{resnet_forward.5} parent=1 // pred_fallthru
      _
    // Predicated region
    $region14: #{resnet_forward.5} parent=1 // pred_check
      _
    $region15: #{resnet_forward.5} parent=1 // pred_check_branch
      %31 = sbr.rel (0) target = $region17
    $region16: #{resnet_forward.5} parent=1 // pred_region
      _
    $region17: #{resnet_forward.5} parent=1 // pred_fallthru
      _
    // Predicated region
    $region18: #{resnet_forward.5} parent=1 // pred_check
      _
    $region19: #{resnet_forward.5} parent=1 // pred_check_branch
      %33 = sbr.rel (0) target = $region21
    $region20: #{resnet_forward.5} parent=1 // pred_region
      _
    $region21: #{resnet_forward.5} parent=1 // pred_fallthru
      _
    // Predicated region
    $region22: #{resnet_forward.5} parent=1 // pred_check
      _
    $region23: #{resnet_forward.5} parent=1 // pred_check_branch
      %35 = sbr.rel (0) target = $region25
    $region24: #{resnet_forward.5} parent=1 // pred_region
      _
    $region25: #{resnet_forward.5} parent=1 // pred_fallthru
      _
    // Predicated region
    $region26: #{resnet_forward.5} parent=1 // pred_check
      _
    $region27: #{resnet_forward.5} parent=1 // pred_check_branch
      %37 = sbr.rel (0) target = $region29
    $region28: #{resnet_forward.5} parent=1 // pred_region
      _
    $region29: #{resnet_forward.5} parent=1 // pred_fallthru
      _
    // Predicated region
    $region30: #{resnet_forward.5} parent=1 // pred_check
      _
    $region31: #{resnet_forward.5} parent=1 // pred_check_branch
      %39 = sbr.rel (0) target = $region33
    $region32: #{resnet_forward.5} parent=1 // pred_region
      _
    $region33: #{resnet_forward.5} parent=1 // pred_fallthru
      _
    // Predicated region
    $region34: #{resnet_forward.5} parent=1 // pred_check
      _
    $region35: #{resnet_forward.5} parent=1 // pred_check_branch
      %41 = sbr.rel (0) target = $region37
    $region36: #{resnet_forward.5} parent=1 // pred_region
      _
    $region37: #{resnet_forward.5} parent=1 // pred_fallthru
      _
    // Predicated region
    $region38: #{resnet_forward.5} parent=1 // pred_check
      _
    $region39: #{resnet_forward.5} parent=1 // pred_check_branch
      %43 = sbr.rel (0) target = $region41
    $region40: #{resnet_forward.5} parent=1 // pred_region
      _
    $region41: #{resnet_forward.5} parent=1 // pred_fallthru
      _
    // Predicated region
    $region42: #{resnet_forward.5} parent=1 // pred_check
      _
    $region43: #{resnet_forward.5} parent=1 // pred_check_branch
      %45 = sbr.rel (0) target = $region45
    $region44: #{resnet_forward.5} parent=1 // pred_region
      _
    $region45: #{resnet_forward.5} parent=1 // pred_fallthru
      _
    // Predicated region
    $region46: #{resnet_forward.5} parent=1 // pred_check
      _
    $region47: #{resnet_forward.5} parent=1 // pred_check_branch
      %47 = sbr.rel (0) target = $region49
    $region48: #{resnet_forward.5} parent=1 // pred_region
      _
    $region49: #{resnet_forward.5} parent=1 // pred_fallthru
      _
    // Predicated region
    $region50: #{resnet_forward.5} parent=1 // pred_check
      _
    $region51: #{resnet_forward.5} parent=1 // pred_check_branch
      %49 = sbr.rel (0) target = $region53
    $region52: #{resnet_forward.5} parent=1 // pred_region
      _
    $region53: #{resnet_forward.5} parent=1 // pred_fallthru
      _
    // Predicated region
    $region54: #{resnet_forward.5} parent=1 // pred_check
      _
    $region55: #{resnet_forward.5} parent=1 // pred_check_branch
      %51 = sbr.rel (0) target = $region57
    $region56: #{resnet_forward.5} parent=1 // pred_region
      _
    $region57: #{resnet_forward.5} parent=1 // pred_fallthru
      _
    // Predicated region
    $region58: #{resnet_forward.5} parent=1 // pred_check
      _
    $region59: #{resnet_forward.5} parent=1 // pred_check_branch
      %53 = sbr.rel (0) target = $region61
    $region60: #{resnet_forward.5} parent=1 // pred_region
      _
    $region61: #{resnet_forward.5} parent=1 // pred_fallthru
      _
    // Predicated region
    $region62: #{resnet_forward.5} parent=1 // pred_check
      _
    $region63: #{resnet_forward.5} parent=1 // pred_check_branch
      %55 = sbr.rel (0) target = $region65
    $region64: #{resnet_forward.5} parent=1 // pred_region
      _
    $region65: #{resnet_forward.5} parent=1 // pred_fallthru
      _
    %v56 = vlaneseq
    %v57 = vand.u32 %v56, 127
    %vm58 = vcmp.lt.s32.totalorder %v57, 0
    %v59 = vsub.s32 0, %v57
    %v60 = vsel %vm58, %v59, %v57
    %v61 = vshrl.u32 %v60, 4
    %v62 = vand.u32 %v60, 15
    %v63 = vsub.s32 0, %v62
    %v64 = vsel %vm58, %v63, %v62
    %vm65 = vcmp.ne.s32.totalorder %v64, 0
    %vm66 = vcmp.lt.s32.totalorder %v64, 0
    %vm67 = vmand %vm66, %vm65
    %v68 = vadd.s32 %v64, 16
    %v69 = vsel %vm67, %v68, %v64
    %vm70 = vcmp.lt.s32.totalorder %v57, 32
    %v71 = vld [vmem:[%s0] sm:$0xff]
    %v72 = vadd.s32 %v69, 4294967295
    %vm73 = vcmp.ge.s32.totalorder %v72, 0
    %vm74 = vcmp.lt.s32.totalorder %v72, 16
    %vm75 = vmand %vm73, %vm74
    %vm76 = vmand %vm70, %vm75
    %77 = vrot.lane.b32.xlu0 %v71, 1
    %v78 = vpop.permute.xlu0 %77
    %v79 = vsel %vm76, 1, 0
    %vm80 = vcmp.eq.s32.totalorder %v79, 1
    %v81 = vsel %vm80, %v78, 0.0
    %vm82 = vcmp.ge.s32.totalorder %v69, 0
    %vm83 = vcmp.lt.s32.totalorder %v69, 16
    %vm84 = vmand %vm82, %vm83
    %vm85 = vmand %vm70, %vm84
    %v86 = vsel %vm85, 1, 0
    %vm87 = vcmp.eq.s32.totalorder %v86, 1
    %v88 = vsel %vm87, %v71, 0.0
    %v89 = vadd.s32 %v69, 1
    %vm90 = vcmp.ge.s32.totalorder %v89, 0
    %vm91 = vcmp.lt.s32.totalorder %v89, 16
    %vm92 = vmand %vm90, %vm91
    %vm93 = vmand %vm70, %vm92
    %94 = vrot.lane.b32.xlu0 %v71, 127
    %v95 = vpop.permute.xlu0 %94
    %v96 = vsel %vm93, 1, 0
    %vm97 = vcmp.eq.s32.totalorder %v96, 1
    %v98 = vsel %vm97, %v95, 0.0
    %v99 = vld [vmem:[%s1] sm:$0xff]
    %v100 = vld [vmem:[%s1 + $0x8] sm:$0xff]
    %vm101 = vcmask 195584
    %v103 = vsel %vm101, %v99, 0
    %v106 = vsel %vm101, %v100, 0
    %108 = vmatprep.subr.mxu0 0.0
    %109 = vmatpush1.msra.mxu0 %v81
    %110 = vmatprep.subr.mxu0 0.0
    %111 = vmatpush1.msra.mxu0 %v88
    %112 = vmatprep.subr.mxu0 0.0
    %113 = vmatpush1.msra.mxu0 %v98
    %114 = vmatprep.subr.mxu0 0.0
    %115 = vmatpush1.msra.mxu0 0.0
    %116 = vmatprep.subr.mxu0 0.0
    %117 = vmatpush1.msra.mxu0 0.0
    %118 = vmatprep.subr.mxu0 0.0
    %119 = vmatpush1.msra.mxu0 0.0
    %120 = vmatprep.subr.mxu0 0.0
    %121 = vmatpush1.msra.mxu0 0.0
    %122 = vmatprep.subr.mxu0 0.0
    %123 = vmatpush1.msra.mxu0 0.0
    %124 = vmatprep.subr.mxu0 0.0
    %125 = vmatpush1.msra.mxu0 0.0
    %126 = vmatprep.subr.mxu0 0.0
    %127 = vmatpush1.msra.mxu0 0.0
    %128 = vmatprep.subr.mxu0 0.0
    %129 = vmatpush1.msra.mxu0 0.0
    %130 = vmatprep.subr.mxu0 0.0
    %131 = vmatpush1.msra.mxu0 0.0
    %132 = vmatprep.subr.mxu0 0.0
    %133 = vmatpush1.msra.mxu0 0.0
    %134 = vmatprep.subr.mxu0 0.0
    %135 = vmatpush1.msra.mxu0 0.0
    %136 = vmatprep.subr.mxu0 0.0
    %137 = vmatpush1.msra.mxu0 0.0
    %138 = vmatprep.subr.mxu0 0.0
    %139 = vmatpush1.msra.mxu0 0.0
    %140 = vmatprep.subr.mxu0 0.0
    %141 = vmatpush1.msra.mxu0 0.0
    %142 = vmatprep.subr.mxu0 0.0
    %143 = vmatpush1.msra.mxu0 0.0
    %144 = vmatprep.subr.mxu0 0.0
    %145 = vmatpush1.msra.mxu0 0.0
    %146 = vmatprep.subr.mxu0 0.0
    %147 = vmatpush1.msra.mxu0 0.0
    %148 = vmatprep.subr.mxu0 0.0
    %149 = vmatpush1.msra.mxu0 0.0
    %150 = vmatprep.subr.mxu0 0.0
    %151 = vmatpush1.msra.mxu0 0.0
    %152 = vmatprep.subr.mxu0 0.0
    %153 = vmatpush1.msra.mxu0 0.0
    %154 = vmatprep.subr.mxu0 0.0
    %155 = vmatpush1.msra.mxu0 0.0
    %156 = vmatprep.subr.mxu0 0.0
    %157 = vmatpush1.msra.mxu0 0.0
    %158 = vmatprep.subr.mxu0 0.0
    %159 = vmatpush1.msra.mxu0 0.0
    %160 = vmatprep.subr.mxu0 0.0
    %161 = vmatpush1.msra.mxu0 0.0
    %162 = vmatprep.subr.mxu0 0.0
    %163 = vmatpush1.msra.mxu0 0.0
    %164 = vmatprep.subr.mxu0 0.0
    %165 = vmatpush1.msra.mxu0 0.0
    %166 = vmatprep.subr.mxu0 0.0
    %167 = vmatpush1.msra.mxu0 0.0
    %168 = vmatprep.subr.mxu0 0.0
    %169 = vmatpush1.msra.mxu0 0.0
    %170 = vmatprep.subr.mxu0 0.0
    %171 = vmatpush1.msra.mxu0 0.0
    %172 = vmatprep.mubr.f32.mxu0 0.0
    %173 = vmatmul.mubr.f32.gmra.mrb[0].mxu0 %v103
    %v174 = vpop.f32.mrb[0].mxu0
    %v175 = vadd.f32 0.0, %v174
    %v176 = vpop.f32.mrb[0].mxu0
    %177 = vmatprep.mubr.f32.mxu0 0.0
    %178 = vmatmul.mubr.f32.gmra.mrb[0].mxu0 %v106
    %v179 = vpop.f32.mrb[0].mxu0
    %v180 = vadd.f32 0.0, %v179
    %v181 = vpop.f32.mrb[0].mxu0
    %182 = vdwg.mxu0
    %183 = vadd.xlane.f32.xlu0 %v175
    %v184 = vpop.xlane.xlu0 %183
    %185 = vadd.xlane.f32.xlu0 %v180
    %v186 = vpop.xlane.xlu0 %185
    %v187 = vmul.f32 %v184, 0.03125
    %v188 = vmul.f32 %v186, 0.03125
    %v189 = vmul.f32 %v175, %v175
    %v190 = vmul.f32 %v180, %v180
    %191 = vadd.xlane.f32.xlu0 %v189
    %v192 = vpop.xlane.xlu0 %191
    %193 = vadd.xlane.f32.xlu0 %v190
    %v194 = vpop.xlane.xlu0 %193
    %v195 = vmul.f32 %v192, 0.03125
    %v196 = vmul.f32 %v194, 0.03125
    %v197 = vmul.f32 %v187, %v187
    %v198 = vmul.f32 %v188, %v188
    %v199 = vsub.f32 %v195, %v197
    %v200 = vsub.f32 %v196, %v198
    %v201 = vmax.f32 %v199, 0.0
    %v202 = vmax.f32 %v200, 0.0
    %v203 = vld [vmem:[%s2] sm:$0xff]
    %v204 = vld [vmem:[%s2 + $0x8] sm:$0xff]
    %v205 = vadd.f32 %v201, 1e-05
    %v206 = vadd.f32 %v202, 1e-05
    %v207 = vrsqrt.pop %v205
    %v208 = vrsqrt.pop %v206
    %v209 = vmul.f32 %v203, %v207
    %v210 = vmul.f32 %v204, %v208
    %v211 = vld [vmem:[%s3] sm:$0xff]
    %v212 = vld [vmem:[%s3 + $0x8] sm:$0xff]
    %v213 = vmul.f32 %v187, %v209
    %v214 = vmul.f32 %v188, %v210
    %v215 = vsub.f32 %v211, %v213
    %v216 = vsub.f32 %v212, %v214
    %218 = vset.pattern.permute.xlu0 0
    %219 = vperm.xlu0 %218, %v209
    %v220 = vpop.permute.xlu0 %219
    %223 = vset.pattern.permute.xlu0 0
    %224 = vperm.xlu0 %223, %v210
    %v225 = vpop.permute.xlu0 %224
    %v227 = vmul.f32 %v175, %v220
    %v228 = vmul.f32 %v180, %v225
    %230 = vset.pattern.permute.xlu0 0
    %231 = vperm.xlu0 %230, %v215
    %v232 = vpop.permute.xlu0 %231
    %235 = vset.pattern.permute.xlu0 0
    %236 = vperm.xlu0 %235, %v216
    %v237 = vpop.permute.xlu0 %236
    %v239 = vadd.f32 %v227, %v232
    %v240 = vadd.f32 %v228, %v237
    %v241 = vmax.f32 %v239, 0.0
    %v242 = vmax.f32 %v240, 0.0
    %v243 = vadd.s32 %v69, 4294967294
    %vm244 = vcmp.ge.s32.totalorder %v243, 0
    %vm245 = vcmp.lt.s32.totalorder %v243, 16
    %vm246 = vmand %vm244, %vm245
    %vm247 = vmand %vm70, %vm246
    %248 = vrot.lane.b32.xlu0 %v241, 2
    %v249 = vpop.permute.xlu0 %248
    %250 = vrot.lane.b32.xlu0 %v242, 2
    %v251 = vpop.permute.xlu0 %250
    %v252 = vsel %vm247, 1, 0
    %vm253 = vcmp.eq.s32.totalorder %v252, 1
    %v254 = vsel %vm253, %v249, 0.0
    %v255 = vsel %vm253, %v251, 0.0
    %256 = vrot.lane.b32.xlu0 %v241, 1
    %v257 = vpop.permute.xlu0 %256
    %258 = vrot.lane.b32.xlu0 %v242, 1
    %v259 = vpop.permute.xlu0 %258
    %v260 = vsel %vm80, %v257, 0.0
    %v261 = vsel %vm80, %v259, 0.0
    %v262 = vsel %vm87, %v241, 0.0
    %v263 = vsel %vm87, %v242, 0.0
    %264 = vrot.lane.b32.xlu0 %v241, 127
    %v265 = vpop.permute.xlu0 %264
    %266 = vrot.lane.b32.xlu0 %v242, 127
    %v267 = vpop.permute.xlu0 %266
    %v268 = vsel %vm97, %v265, 0.0
    %v269 = vsel %vm97, %v267, 0.0
    %v270 = vadd.s32 %v69, 2
    %vm271 = vcmp.ge.s32.totalorder %v270, 0
    %vm272 = vcmp.lt.s32.totalorder %v270, 16
    %vm273 = vmand %vm271, %vm272
    %vm274 = vmand %vm70, %vm273
    %275 = vrot.lane.b32.xlu0 %v241, 126
    %v276 = vpop.permute.xlu0 %275
    %277 = vrot.lane.b32.xlu0 %v242, 126
    %v278 = vpop.permute.xlu0 %277
    %v279 = vsel %vm274, 1, 0
    %vm280 = vcmp.eq.s32.totalorder %v279, 1
    %v281 = vsel %vm280, %v276, 0.0
    %v282 = vsel %vm280, %v278, 0.0
    %v283 = vld [vmem:[%s4] sm:$0xff]
    %v284 = vld [vmem:[%s4 + $0x8] sm:$0xff]
    %vm285 = vcmask 654336
    %v287 = vsel %vm285, %v283, 0
    %v290 = vsel %vm285, %v284, 0
    %292 = vmatprep.subr.mxu0 0.0
    %293 = vmatpush1.msra.mxu0 %v254
    %294 = vmatprep.subr.mxu0 0.0
    %295 = vmatpush1.msra.mxu0 %v255
    %296 = vmatprep.subr.mxu0 0.0
    %297 = vmatpush1.msra.mxu0 %v260
    %298 = vmatprep.subr.mxu0 0.0
    %299 = vmatpush1.msra.mxu0 %v261
    %300 = vmatprep.subr.mxu0 0.0
    %301 = vmatpush1.msra.mxu0 %v262
    %302 = vmatprep.subr.mxu0 0.0
    %303 = vmatpush1.msra.mxu0 %v263
    %304 = vmatprep.subr.mxu0 0.0
    %305 = vmatpush1.msra.mxu0 %v268
    %306 = vmatprep.subr.mxu0 0.0
    %307 = vmatpush1.msra.mxu0 %v269
    %308 = vmatprep.subr.mxu0 0.0
    %309 = vmatpush1.msra.mxu0 %v281
    %310 = vmatprep.subr.mxu0 0.0
    %311 = vmatpush1.msra.mxu0 %v282
    %312 = vmatprep.subr.mxu0 0.0
    %313 = vmatpush1.msra.mxu0 0.0
    %314 = vmatprep.subr.mxu0 0.0
    %315 = vmatpush1.msra.mxu0 0.0
    %316 = vmatprep.subr.mxu0 0.0
    %317 = vmatpush1.msra.mxu0 0.0
    %318 = vmatprep.subr.mxu0 0.0
    %319 = vmatpush1.msra.mxu0 0.0
    %320 = vmatprep.subr.mxu0 0.0
    %321 = vmatpush1.msra.mxu0 0.0
    %322 = vmatprep.subr.mxu0 0.0
    %323 = vmatpush1.msra.mxu0 0.0
    %324 = vmatprep.subr.mxu0 0.0
    %325 = vmatpush1.msra.mxu0 0.0
    %326 = vmatprep.subr.mxu0 0.0
    %327 = vmatpush1.msra.mxu0 0.0
    %328 = vmatprep.subr.mxu0 0.0
    %329 = vmatpush1.msra.mxu0 0.0
    %330 = vmatprep.subr.mxu0 0.0
    %331 = vmatpush1.msra.mxu0 0.0
    %332 = vmatprep.subr.mxu0 0.0
    %333 = vmatpush1.msra.mxu0 0.0
    %334 = vmatprep.subr.mxu0 0.0
    %335 = vmatpush1.msra.mxu0 0.0
    %336 = vmatprep.subr.mxu0 0.0
    %337 = vmatpush1.msra.mxu0 0.0
    %338 = vmatprep.subr.mxu0 0.0
    %339 = vmatpush1.msra.mxu0 0.0
    %340 = vmatprep.subr.mxu0 0.0
    %341 = vmatpush1.msra.mxu0 0.0
    %342 = vmatprep.subr.mxu0 0.0
    %343 = vmatpush1.msra.mxu0 0.0
    %344 = vmatprep.subr.mxu0 0.0
    %345 = vmatpush1.msra.mxu0 0.0
    %346 = vmatprep.subr.mxu0 0.0
    %347 = vmatpush1.msra.mxu0 0.0
    %348 = vmatprep.subr.mxu0 0.0
    %349 = vmatpush1.msra.mxu0 0.0
    %350 = vmatprep.subr.mxu0 0.0
    %351 = vmatpush1.msra.mxu0 0.0
    %352 = vmatprep.subr.mxu0 0.0
    %353 = vmatpush1.msra.mxu0 0.0
    %354 = vmatprep.subr.mxu0 0.0
    %355 = vmatpush1.msra.mxu0 0.0
    %356 = vmatprep.mubr.f32.mxu0 0.0
    %357 = vmatmul.mubr.f32.gmra.mrb[0].mxu0 %v287
    %v358 = vpop.f32.mrb[0].mxu0
    %v359 = vadd.f32 0.0, %v358
    %v360 = vpop.f32.mrb[0].mxu0
    %361 = vmatprep.mubr.f32.mxu0 0.0
    %362 = vmatmul.mubr.f32.gmra.mrb[0].mxu0 %v290
    %v363 = vpop.f32.mrb[0].mxu0
    %v364 = vadd.f32 0.0, %v363
    %v365 = vpop.f32.mrb[0].mxu0
    %366 = vdwg.mxu0
    %367 = vadd.xlane.f32.xlu0 %v359
    %v368 = vpop.xlane.xlu0 %367
    %369 = vadd.xlane.f32.xlu0 %v364
    %v370 = vpop.xlane.xlu0 %369
    %v371 = vmul.f32 %v368, 0.03125
    %v372 = vmul.f32 %v370, 0.03125
    %v373 = vmul.f32 %v359, %v359
    %v374 = vmul.f32 %v364, %v364
    %375 = vadd.xlane.f32.xlu0 %v373
    %v376 = vpop.xlane.xlu0 %375
    %377 = vadd.xlane.f32.xlu0 %v374
    %v378 = vpop.xlane.xlu0 %377
    %v379 = vmul.f32 %v376, 0.03125
    %v380 = vmul.f32 %v378, 0.03125
    %v381 = vmul.f32 %v371, %v371
    %v382 = vmul.f32 %v372, %v372
    %v383 = vsub.f32 %v379, %v381
    %v384 = vsub.f32 %v380, %v382
    %v385 = vmax.f32 %v383, 0.0
    %v386 = vmax.f32 %v384, 0.0
    %v387 = vld [vmem:[%s5] sm:$0xff]
    %v388 = vld [vmem:[%s5 + $0x8] sm:$0xff]
    %v389 = vadd.f32 %v385, 1e-05
    %v390 = vadd.f32 %v386, 1e-05
    %v391 = vrsqrt.pop %v389
    %v392 = vrsqrt.pop %v390
    %v393 = vmul.f32 %v387, %v391
    %v394 = vmul.f32 %v388, %v392
    %v395 = vld [vmem:[%s6] sm:$0xff]
    %v396 = vld [vmem:[%s6 + $0x8] sm:$0xff]
    %v397 = vmul.f32 %v371, %v393
    %v398 = vmul.f32 %v372, %v394
    %v399 = vsub.f32 %v395, %v397
    %v400 = vsub.f32 %v396, %v398
    %402 = vset.pattern.permute.xlu0 0
    %403 = vperm.xlu0 %402, %v393
    %v404 = vpop.permute.xlu0 %403
    %407 = vset.pattern.permute.xlu0 0
    %408 = vperm.xlu0 %407, %v394
    %v409 = vpop.permute.xlu0 %408
    %v411 = vmul.f32 %v359, %v404
    %v412 = vmul.f32 %v364, %v409
    %414 = vset.pattern.permute.xlu0 0
    %415 = vperm.xlu0 %414, %v399
    %v416 = vpop.permute.xlu0 %415
    %419 = vset.pattern.permute.xlu0 0
    %420 = vperm.xlu0 %419, %v400
    %v421 = vpop.permute.xlu0 %420
    %v423 = vadd.f32 %v411, %v416
    %v424 = vadd.f32 %v412, %v421
    %v425 = vmax.f32 %v423, 0.0
    %v426 = vmax.f32 %v424, 0.0
    %427 = vrot.lane.b32.xlu0 %v425, 1
    %v428 = vpop.permute.xlu0 %427
    %429 = vrot.lane.b32.xlu0 %v426, 1
    %v430 = vpop.permute.xlu0 %429
    %v431 = vsel %vm80, %v428, 0.0
    %v432 = vsel %vm80, %v430, 0.0
    %v433 = vsel %vm87, %v425, 0.0
    %v434 = vsel %vm87, %v426, 0.0
    %435 = vrot.lane.b32.xlu0 %v425, 127
    %v436 = vpop.permute.xlu0 %435
    %437 = vrot.lane.b32.xlu0 %v426, 127
    %v438 = vpop.permute.xlu0 %437
    %v439 = vsel %vm97, %v436, 0.0
    %v440 = vsel %vm97, %v438, 0.0
    %v441 = vld [vmem:[%s7] sm:$0xff]
    %v442 = vld [vmem:[%s7 + $0x8] sm:$0xff]
    %vm443 = vcmask 392192
    %v445 = vsel %vm443, %v441, 0
    %v448 = vsel %vm443, %v442, 0
    %450 = vmatprep.subr.mxu0 0.0
    %451 = vmatpush1.msra.mxu0 %v431
    %452 = vmatprep.subr.mxu0 0.0
    %453 = vmatpush1.msra.mxu0 %v432
    %454 = vmatprep.subr.mxu0 0.0
    %455 = vmatpush1.msra.mxu0 %v433
    %456 = vmatprep.subr.mxu0 0.0
    %457 = vmatpush1.msra.mxu0 %v434
    %458 = vmatprep.subr.mxu0 0.0
    %459 = vmatpush1.msra.mxu0 %v439
    %460 = vmatprep.subr.mxu0 0.0
    %461 = vmatpush1.msra.mxu0 %v440
    %462 = vmatprep.subr.mxu0 0.0
    %463 = vmatpush1.msra.mxu0 0.0
    %464 = vmatprep.subr.mxu0 0.0
    %465 = vmatpush1.msra.mxu0 0.0
    %466 = vmatprep.subr.mxu0 0.0
    %467 = vmatpush1.msra.mxu0 0.0
    %468 = vmatprep.subr.mxu0 0.0
    %469 = vmatpush1.msra.mxu0 0.0
    %470 = vmatprep.subr.mxu0 0.0
    %471 = vmatpush1.msra.mxu0 0.0
    %472 = vmatprep.subr.mxu0 0.0
    %473 = vmatpush1.msra.mxu0 0.0
    %474 = vmatprep.subr.mxu0 0.0
    %475 = vmatpush1.msra.mxu0 0.0
    %476 = vmatprep.subr.mxu0 0.0
    %477 = vmatpush1.msra.mxu0 0.0
    %478 = vmatprep.subr.mxu0 0.0
    %479 = vmatpush1.msra.mxu0 0.0
    %480 = vmatprep.subr.mxu0 0.0
    %481 = vmatpush1.msra.mxu0 0.0
    %482 = vmatprep.subr.mxu0 0.0
    %483 = vmatpush1.msra.mxu0 0.0
    %484 = vmatprep.subr.mxu0 0.0
    %485 = vmatpush1.msra.mxu0 0.0
    %486 = vmatprep.subr.mxu0 0.0
    %487 = vmatpush1.msra.mxu0 0.0
    %488 = vmatprep.subr.mxu0 0.0
    %489 = vmatpush1.msra.mxu0 0.0
    %490 = vmatprep.subr.mxu0 0.0
    %491 = vmatpush1.msra.mxu0 0.0
    %492 = vmatprep.subr.mxu0 0.0
    %493 = vmatpush1.msra.mxu0 0.0
    %494 = vmatprep.subr.mxu0 0.0
    %495 = vmatpush1.msra.mxu0 0.0
    %496 = vmatprep.subr.mxu0 0.0
    %497 = vmatpush1.msra.mxu0 0.0
    %498 = vmatprep.subr.mxu0 0.0
    %499 = vmatpush1.msra.mxu0 0.0
    %500 = vmatprep.subr.mxu0 0.0
    %501 = vmatpush1.msra.mxu0 0.0
    %502 = vmatprep.subr.mxu0 0.0
    %503 = vmatpush1.msra.mxu0 0.0
    %504 = vmatprep.subr.mxu0 0.0
    %505 = vmatpush1.msra.mxu0 0.0
    %506 = vmatprep.subr.mxu0 0.0
    %507 = vmatpush1.msra.mxu0 0.0
    %508 = vmatprep.subr.mxu0 0.0
    %509 = vmatpush1.msra.mxu0 0.0
    %510 = vmatprep.subr.mxu0 0.0
    %511 = vmatpush1.msra.mxu0 0.0
    %512 = vmatprep.subr.mxu0 0.0
    %513 = vmatpush1.msra.mxu0 0.0
    %514 = vmatprep.mubr.f32.mxu0 0.0
    %515 = vmatmul.mubr.f32.gmra.mrb[0].mxu0 %v445
    %v516 = vpop.f32.mrb[0].mxu0
    %v517 = vadd.f32 0.0, %v516
    %v518 = vpop.f32.mrb[0].mxu0
    %519 = vmatprep.mubr.f32.mxu0 0.0
    %520 = vmatmul.mubr.f32.gmra.mrb[0].mxu0 %v448
    %v521 = vpop.f32.mrb[0].mxu0
    %v522 = vadd.f32 0.0, %v521
    %v523 = vpop.f32.mrb[0].mxu0
    %524 = vdwg.mxu0
    %525 = vadd.xlane.f32.xlu0 %v517
    %v526 = vpop.xlane.xlu0 %525
    %527 = vadd.xlane.f32.xlu0 %v522
    %v528 = vpop.xlane.xlu0 %527
    %v529 = vmul.f32 %v526, 0.03125
    %v530 = vmul.f32 %v528, 0.03125
    %v531 = vmul.f32 %v517, %v517
    %v532 = vmul.f32 %v522, %v522
    %533 = vadd.xlane.f32.xlu0 %v531
    %v534 = vpop.xlane.xlu0 %533
    %535 = vadd.xlane.f32.xlu0 %v532
    %v536 = vpop.xlane.xlu0 %535
    %v537 = vmul.f32 %v534, 0.03125
    %v538 = vmul.f32 %v536, 0.03125
    %v539 = vmul.f32 %v529, %v529
    %v540 = vmul.f32 %v530, %v530
    %v541 = vsub.f32 %v537, %v539
    %v542 = vsub.f32 %v538, %v540
    %v543 = vmax.f32 %v541, 0.0
    %v544 = vmax.f32 %v542, 0.0
    %v545 = vld [vmem:[%s8] sm:$0xff]
    %v546 = vld [vmem:[%s8 + $0x8] sm:$0xff]
    %v547 = vadd.f32 %v543, 1e-05
    %v548 = vadd.f32 %v544, 1e-05
    %v549 = vrsqrt.pop %v547
    %v550 = vrsqrt.pop %v548
    %v551 = vmul.f32 %v545, %v549
    %v552 = vmul.f32 %v546, %v550
    %v553 = vld [vmem:[%s9] sm:$0xff]
    %v554 = vld [vmem:[%s9 + $0x8] sm:$0xff]
    %v555 = vmul.f32 %v529, %v551
    %v556 = vmul.f32 %v530, %v552
    %v557 = vsub.f32 %v553, %v555
    %v558 = vsub.f32 %v554, %v556
    %560 = vset.pattern.permute.xlu0 0
    %561 = vperm.xlu0 %560, %v551
    %v562 = vpop.permute.xlu0 %561
    %565 = vset.pattern.permute.xlu0 0
    %566 = vperm.xlu0 %565, %v552
    %v567 = vpop.permute.xlu0 %566
    %v569 = vmul.f32 %v517, %v562
    %v570 = vmul.f32 %v522, %v567
    %572 = vset.pattern.permute.xlu0 0
    %573 = vperm.xlu0 %572, %v557
    %v574 = vpop.permute.xlu0 %573
    %577 = vset.pattern.permute.xlu0 0
    %578 = vperm.xlu0 %577, %v558
    %v579 = vpop.permute.xlu0 %578
    %v581 = vadd.f32 %v569, %v574
    %v582 = vadd.f32 %v570, %v579
    %v583 = vld [vmem:[%s10] sm:$0xff]
    %v584 = vld [vmem:[%s10 + $0x8] sm:$0xff]
    %vm585 = vcmask 64512
    %v587 = vsel %vm585, %v583, 0
    %v590 = vsel %vm585, %v584, 0
    %592 = vmatprep.subr.mxu0 0.0
    %593 = vmatpush1.msra.mxu0 %v71
    %594 = vmatprep.subr.mxu0 0.0
    %595 = vmatpush1.msra.mxu0 0.0
    %596 = vmatprep.subr.mxu0 0.0
    %597 = vmatpush1.msra.mxu0 0.0
    %598 = vmatprep.subr.mxu0 0.0
    %599 = vmatpush1.msra.mxu0 0.0
    %600 = vmatprep.subr.mxu0 0.0
    %601 = vmatpush1.msra.mxu0 0.0
    %602 = vmatprep.subr.mxu0 0.0
    %603 = vmatpush1.msra.mxu0 0.0
    %604 = vmatprep.subr.mxu0 0.0
    %605 = vmatpush1.msra.mxu0 0.0
    %606 = vmatprep.subr.mxu0 0.0
    %607 = vmatpush1.msra.mxu0 0.0
    %608 = vmatprep.subr.mxu0 0.0
    %609 = vmatpush1.msra.mxu0 0.0
    %610 = vmatprep.subr.mxu0 0.0
    %611 = vmatpush1.msra.mxu0 0.0
    %612 = vmatprep.subr.mxu0 0.0
    %613 = vmatpush1.msra.mxu0 0.0
    %614 = vmatprep.subr.mxu0 0.0
    %615 = vmatpush1.msra.mxu0 0.0
    %616 = vmatprep.subr.mxu0 0.0
    %617 = vmatpush1.msra.mxu0 0.0
    %618 = vmatprep.subr.mxu0 0.0
    %619 = vmatpush1.msra.mxu0 0.0
    %620 = vmatprep.subr.mxu0 0.0
    %621 = vmatpush1.msra.mxu0 0.0
    %622 = vmatprep.subr.mxu0 0.0
    %623 = vmatpush1.msra.mxu0 0.0
    %624 = vmatprep.subr.mxu0 0.0
    %625 = vmatpush1.msra.mxu0 0.0
    %626 = vmatprep.subr.mxu0 0.0
    %627 = vmatpush1.msra.mxu0 0.0
    %628 = vmatprep.subr.mxu0 0.0
    %629 = vmatpush1.msra.mxu0 0.0
    %630 = vmatprep.subr.mxu0 0.0
    %631 = vmatpush1.msra.mxu0 0.0
    %632 = vmatprep.subr.mxu0 0.0
    %633 = vmatpush1.msra.mxu0 0.0
    %634 = vmatprep.subr.mxu0 0.0
    %635 = vmatpush1.msra.mxu0 0.0
    %636 = vmatprep.subr.mxu0 0.0
    %637 = vmatpush1.msra.mxu0 0.0
    %638 = vmatprep.subr.mxu0 0.0
    %639 = vmatpush1.msra.mxu0 0.0
    %640 = vmatprep.subr.mxu0 0.0
    %641 = vmatpush1.msra.mxu0 0.0
    %642 = vmatprep.subr.mxu0 0.0
    %643 = vmatpush1.msra.mxu0 0.0
    %644 = vmatprep.subr.mxu0 0.0
    %645 = vmatpush1.msra.mxu0 0.0
    %646 = vmatprep.subr.mxu0 0.0
    %647 = vmatpush1.msra.mxu0 0.0
    %648 = vmatprep.subr.mxu0 0.0
    %649 = vmatpush1.msra.mxu0 0.0
    %650 = vmatprep.subr.mxu0 0.0
    %651 = vmatpush1.msra.mxu0 0.0
    %652 = vmatprep.subr.mxu0 0.0
    %653 = vmatpush1.msra.mxu0 0.0
    %654 = vmatprep.subr.mxu0 0.0
    %655 = vmatpush1.msra.mxu0 0.0
    %656 = vmatprep.mubr.f32.mxu0 0.0
    %657 = vmatmul.mubr.f32.gmra.mrb[0].mxu0 %v587
    %v658 = vpop.f32.mrb[0].mxu0
    %v659 = vadd.f32 0.0, %v658
    %v660 = vpop.f32.mrb[0].mxu0
    %661 = vmatprep.mubr.f32.mxu0 0.0
    %662 = vmatmul.mubr.f32.gmra.mrb[0].mxu0 %v590
    %v663 = vpop.f32.mrb[0].mxu0
    %v664 = vadd.f32 0.0, %v663
    %v665 = vpop.f32.mrb[0].mxu0
    %666 = vdwg.mxu0
    %667 = vadd.xlane.f32.xlu0 %v659
    %v668 = vpop.xlane.xlu0 %667
    %669 = vadd.xlane.f32.xlu0 %v664
    %v670 = vpop.xlane.xlu0 %669
    %v671 = vmul.f32 %v668, 0.03125
    %v672 = vmul.f32 %v670, 0.03125
    %v673 = vmul.f32 %v659, %v659
    %v674 = vmul.f32 %v664, %v664
    %675 = vadd.xlane.f32.xlu0 %v673
    %v676 = vpop.xlane.xlu0 %675
    %677 = vadd.xlane.f32.xlu0 %v674
    %v678 = vpop.xlane.xlu0 %677
    %v679 = vmul.f32 %v676, 0.03125
    %v680 = vmul.f32 %v678, 0.03125
    %v681 = vmul.f32 %v671, %v671
    %v682 = vmul.f32 %v672, %v672
    %v683 = vsub.f32 %v679, %v681
    %v684 = vsub.f32 %v680, %v682
    %v685 = vmax.f32 %v683, 0.0
    %v686 = vmax.f32 %v684, 0.0
    %v687 = vld [vmem:[%s11] sm:$0xff]
    %v688 = vld [vmem:[%s11 + $0x8] sm:$0xff]
    %v689 = vadd.f32 %v685, 1e-05
    %v690 = vadd.f32 %v686, 1e-05
    %v691 = vrsqrt.pop %v689
    %v692 = vrsqrt.pop %v690
    %v693 = vmul.f32 %v687, %v691
    %v694 = vmul.f32 %v688, %v692
    %v695 = vld [vmem:[%s12] sm:$0xff]
    %v696 = vld [vmem:[%s12 + $0x8] sm:$0xff]
    %v697 = vmul.f32 %v671, %v693
    %v698 = vmul.f32 %v672, %v694
    %v699 = vsub.f32 %v695, %v697
    %v700 = vsub.f32 %v696, %v698
    %702 = vset.pattern.permute.xlu0 0
    %703 = vperm.xlu0 %702, %v693
    %v704 = vpop.permute.xlu0 %703
    %707 = vset.pattern.permute.xlu0 0
    %708 = vperm.xlu0 %707, %v694
    %v709 = vpop.permute.xlu0 %708
    %v711 = vmul.f32 %v659, %v704
    %v712 = vmul.f32 %v664, %v709
    %714 = vset.pattern.permute.xlu0 0
    %715 = vperm.xlu0 %714, %v699
    %v716 = vpop.permute.xlu0 %715
    %719 = vset.pattern.permute.xlu0 0
    %720 = vperm.xlu0 %719, %v700
    %v721 = vpop.permute.xlu0 %720
    %v723 = vadd.f32 %v711, %v716
    %v724 = vadd.f32 %v712, %v721
    %v725 = vadd.f32 %v581, %v723
    %v726 = vadd.f32 %v582, %v724
    %v727 = vmax.f32 %v725, 0.0
    %v728 = vmax.f32 %v726, 0.0
    %v729 = vsel %vm70, 1, 0
    %vm730 = vcmp.eq.s32.totalorder %v729, 1
    %v731 = vsel %vm730, %v727, 0.0
    %v732 = vsel %vm730, %v728, 0.0
    %v733 = vld [vmem:[%s13] sm:$0xff]
    %v734 = vld [vmem:[%s13 + $0x8] sm:$0xff]
    %v735 = vld [vmem:[%s13 + $0x10] sm:$0xff]
    %v736 = vld [vmem:[%s13 + $0x18] sm:$0xff]
    %v737 = vld [vmem:[%s13 + $0x20] sm:$0xff]
    %v738 = vld [vmem:[%s13 + $0x28] sm:$0xff]
    %v739 = vld [vmem:[%s13 + $0x30] sm:$0xff]
    %v740 = vld [vmem:[%s13 + $0x38] sm:$0xff]
    %v741 = vld [vmem:[%s13 + $0x40] sm:$0xff]
    %v742 = vld [vmem:[%s13 + $0x48] sm:$0xff]
    %v743 = vld [vmem:[%s13 + $0x50] sm:$0xff]
    %v744 = vld [vmem:[%s13 + $0x58] sm:$0xff]
    %v745 = vld [vmem:[%s13 + $0x60] sm:$0xff]
    %v746 = vld [vmem:[%s13 + $0x68] sm:$0xff]
    %v747 = vld [vmem:[%s13 + $0x70] sm:$0xff]
    %v748 = vld [vmem:[%s13 + $0x78] sm:$0xff]
    %749 = vmatprep.subr.mxu0 0.0
    %750 = vmatpush1.msra.mxu0 %v733
    %751 = vmatprep.subr.mxu0 0.0
    %752 = vmatpush1.msra.mxu0 %v734
    %753 = vmatprep.subr.mxu0 0.0
    %754 = vmatpush1.msra.mxu0 %v735
    %755 = vmatprep.subr.mxu0 0.0
    %756 = vmatpush1.msra.mxu0 %v736
    %757 = vmatprep.subr.mxu0 0.0
    %758 = vmatpush1.msra.mxu0 %v737
    %759 = vmatprep.subr.mxu0 0.0
    %760 = vmatpush1.msra.mxu0 %v738
    %761 = vmatprep.subr.mxu0 0.0
    %762 = vmatpush1.msra.mxu0 %v739
    %763 = vmatprep.subr.mxu0 0.0
    %764 = vmatpush1.msra.mxu0 %v740
    %765 = vmatprep.subr.mxu0 0.0
    %766 = vmatpush1.msra.mxu0 %v741
    %767 = vmatprep.subr.mxu0 0.0
    %768 = vmatpush1.msra.mxu0 %v742
    %769 = vmatprep.subr.mxu0 0.0
    %770 = vmatpush1.msra.mxu0 %v743
    %771 = vmatprep.subr.mxu0 0.0
    %772 = vmatpush1.msra.mxu0 %v744
    %773 = vmatprep.subr.mxu0 0.0
    %774 = vmatpush1.msra.mxu0 %v745
    %775 = vmatprep.subr.mxu0 0.0
    %776 = vmatpush1.msra.mxu0 %v746
    %777 = vmatprep.subr.mxu0 0.0
    %778 = vmatpush1.msra.mxu0 %v747
    %779 = vmatprep.subr.mxu0 0.0
    %780 = vmatpush1.msra.mxu0 %v748
    %781 = vmatprep.subr.mxu0 0.0
    %782 = vmatpush1.msra.mxu0 0.0
    %783 = vmatprep.subr.mxu0 0.0
    %784 = vmatpush1.msra.mxu0 0.0
    %785 = vmatprep.subr.mxu0 0.0
    %786 = vmatpush1.msra.mxu0 0.0
    %787 = vmatprep.subr.mxu0 0.0
    %788 = vmatpush1.msra.mxu0 0.0
    %789 = vmatprep.subr.mxu0 0.0
    %790 = vmatpush1.msra.mxu0 0.0
    %791 = vmatprep.subr.mxu0 0.0
    %792 = vmatpush1.msra.mxu0 0.0
    %793 = vmatprep.subr.mxu0 0.0
    %794 = vmatpush1.msra.mxu0 0.0
    %795 = vmatprep.subr.mxu0 0.0
    %796 = vmatpush1.msra.mxu0 0.0
    %797 = vmatprep.subr.mxu0 0.0
    %798 = vmatpush1.msra.mxu0 0.0
    %799 = vmatprep.subr.mxu0 0.0
    %800 = vmatpush1.msra.mxu0 0.0
    %801 = vmatprep.subr.mxu0 0.0
    %802 = vmatpush1.msra.mxu0 0.0
    %803 = vmatprep.subr.mxu0 0.0
    %804 = vmatpush1.msra.mxu0 0.0
    %805 = vmatprep.subr.mxu0 0.0
    %806 = vmatpush1.msra.mxu0 0.0
    %807 = vmatprep.subr.mxu0 0.0
    %808 = vmatpush1.msra.mxu0 0.0
    %809 = vmatprep.subr.mxu0 0.0
    %810 = vmatpush1.msra.mxu0 0.0
    %811 = vmatprep.subr.mxu0 0.0
    %812 = vmatpush1.msra.mxu0 0.0
    %813 = vmatprep.mubr.f32.mxu0 0.0
    %814 = vmatmul.mubr.f32.gmra.mrb[0].mxu0 %v731
    %v815 = vpop.f32.mrb[0].mxu0
    %v816 = vadd.f32 0.0, %v815
    %v817 = vpop.f32.mrb[0].mxu0
    %818 = vmatprep.mubr.f32.mxu0 0.0
    %819 = vmatmul.mubr.f32.gmra.mrb[0].mxu0 %v732
    %v820 = vpop.f32.mrb[0].mxu0
    %v821 = vadd.f32 0.0, %v820
    %v822 = vpop.f32.mrb[0].mxu0
    %823 = vdwg.mxu0
    %v824 = vld [vmem:[%s14] sm:$0x1]
    %v825 = vld [vmem:[#allocation2] sm:$0x1]
    %827 = vset.pattern.permute.xlu0 0
    %828 = vperm.xlu0 %827, %v825
    %v829 = vpop.permute.xlu0 %828
    %v831 = vlaneseq
    %v832 = vshrl.u32 %v831, 7
    %v833 = vsub.s32 0, %v832
    %v834 = vrot.slane %v829, %v833
    %vm835 = vcmask 130048
    %v837 = vsel %vm835, %v824, 0
    %839 = vmatprep.subr.mxu0 0.0
    %840 = vmatpush1.msra.mxu0 %v816
    %841 = vmatprep.subr.mxu0 0.0
    %842 = vmatpush1.msra.mxu0 %v821
    %843 = vmatprep.subr.mxu0 0.0
    %844 = vmatpush1.msra.mxu0 0.0
    %845 = vmatprep.subr.mxu0 0.0
    %846 = vmatpush1.msra.mxu0 0.0
    %847 = vmatprep.subr.mxu0 0.0
    %848 = vmatpush1.msra.mxu0 0.0
    %849 = vmatprep.subr.mxu0 0.0
    %850 = vmatpush1.msra.mxu0 0.0
    %851 = vmatprep.subr.mxu0 0.0
    %852 = vmatpush1.msra.mxu0 0.0
    %853 = vmatprep.subr.mxu0 0.0
    %854 = vmatpush1.msra.mxu0 0.0
    %855 = vmatprep.subr.mxu0 0.0
    %856 = vmatpush1.msra.mxu0 0.0
    %857 = vmatprep.subr.mxu0 0.0
    %858 = vmatpush1.msra.mxu0 0.0
    %859 = vmatprep.subr.mxu0 0.0
    %860 = vmatpush1.msra.mxu0 0.0
    %861 = vmatprep.subr.mxu0 0.0
    %862 = vmatpush1.msra.mxu0 0.0
    %863 = vmatprep.subr.mxu0 0.0
    %864 = vmatpush1.msra.mxu0 0.0
    %865 = vmatprep.subr.mxu0 0.0
    %866 = vmatpush1.msra.mxu0 0.0
    %867 = vmatprep.subr.mxu0 0.0
    %868 = vmatpush1.msra.mxu0 0.0
    %869 = vmatprep.subr.mxu0 0.0
    %870 = vmatpush1.msra.mxu0 0.0
    %871 = vmatprep.subr.mxu0 0.0
    %872 = vmatpush1.msra.mxu0 0.0
    %873 = vmatprep.subr.mxu0 0.0
    %874 = vmatpush1.msra.mxu0 0.0
    %875 = vmatprep.subr.mxu0 0.0
    %876 = vmatpush1.msra.mxu0 0.0
    %877 = vmatprep.subr.mxu0 0.0
    %878 = vmatpush1.msra.mxu0 0.0
    %879 = vmatprep.subr.mxu0 0.0
    %880 = vmatpush1.msra.mxu0 0.0
    %881 = vmatprep.subr.mxu0 0.0
    %882 = vmatpush1.msra.mxu0 0.0
    %883 = vmatprep.subr.mxu0 0.0
    %884 = vmatpush1.msra.mxu0 0.0
    %885 = vmatprep.subr.mxu0 0.0
    %886 = vmatpush1.msra.mxu0 0.0
    %887 = vmatprep.subr.mxu0 0.0
    %888 = vmatpush1.msra.mxu0 0.0
    %889 = vmatprep.subr.mxu0 0.0
    %890 = vmatpush1.msra.mxu0 0.0
    %891 = vmatprep.subr.mxu0 0.0
    %892 = vmatpush1.msra.mxu0 0.0
    %893 = vmatprep.subr.mxu0 0.0
    %894 = vmatpush1.msra.mxu0 0.0
    %895 = vmatprep.subr.mxu0 0.0
    %896 = vmatpush1.msra.mxu0 0.0
    %897 = vmatprep.subr.mxu0 0.0
    %898 = vmatpush1.msra.mxu0 0.0
    %899 = vmatprep.subr.mxu0 0.0
    %900 = vmatpush1.msra.mxu0 0.0
    %901 = vmatprep.subr.mxu0 0.0
    %902 = vmatpush1.msra.mxu0 0.0
    %903 = vmatprep.mubr.f32.mxu0 0.0
    %904 = vmatmul.mubr.f32.gmra.mrb[0].mxu0 %v837
    %v905 = vpop.f32.mrb[0].mxu0
    %v906 = vadd.f32 %v834, %v905
    %v907 = vpop.f32.mrb[0].mxu0
    %908 = vdwg.mxu0
    %vm909 = vcmask 8192
    %910 = vst.msk [vmem:[#allocation3] sm:$0x1] %vm909, %v906
    // Predicated region
    $region66: #{resnet_forward.5} parent=1 // pred_check
      _
    $region67: #{resnet_forward.5} parent=1 // pred_check_branch
      %912 = sbr.rel (0) target = $region69
    $region68: #{resnet_forward.5} parent=1 // pred_region
      %s914 = ssub.s32 16, 16
      %915 = vsyncadd [#allocation4], %s914
      %s917 = sshll.u32 [#allocation3], 4
      %s918 = int_to_ptr.vmem [resolvable:$true] %s917
      %920 = dma.vmem_to_hbm [thread:$0]  %s918, 16, %s16, [#allocation4]
    $region69: #{resnet_forward.5} parent=1 // pred_fallthru
      _
    // Predicated region
    $region70: #{resnet_forward.5} parent=1 // pred_check
      _
    $region71: #{resnet_forward.5} parent=1 // pred_check_branch
      %922 = sbr.rel (0) target = $region73
    $region72: #{resnet_forward.5} parent=1 // pred_region
      %923 = dma.done [#allocation4], 16
    $region73: #{resnet_forward.5} parent=1 // pred_fallthru
      _
    %924 = vsyncpa [#allocation4], 1

</llo_original>
